<compile_context>
chip_gen: v7x
topology: tpu7x:2x2x1
jax: 0.10.0
libtpu: 0.0.40
codegen_flags: <defaults>
</compile_context>

<pallas_src>
import functools

import jax
import jax.numpy as jnp
from jax.experimental import pallas as pl
from jax.experimental.pallas import tpu as pltpu


def _silu_ref(y):
    # host/reference SiLU (exact)
    return y * (1.0 / (1.0 + jnp.exp(-y)))


def _silu(y):
    # in-kernel SiLU: exp on the EUP, approximate reciprocal also on EUP (~free)
    return y * pl.reciprocal(1.0 + jnp.exp(-y), approx=True)


def _cparams(semantics, block_bytes):
    # explicit scoped-VMEM limit derived from block math with generous headroom
    # (kept well under v7x's 64 MiB physical VMEM).
    limit = max(4 * 1024 * 1024, min(48 * 1024 * 1024, 4 * int(block_bytes)))
    return pltpu.CompilerParams(dimension_semantics=semantics,
                                vmem_limit_bytes=limit)


# ----------------------------------------------------------------------------
# Stage 1: fused conv1 + conv2 + Bottleneck 1x1 conv (all 1x1 + BN + SiLU)
# ----------------------------------------------------------------------------
def _stage1_kernel(x_ref, w1_ref, b1_ref, w2_ref, b2_ref, wb1_ref, bb1_ref,
                   x1_ref, x2_ref, y_ref):
    x = x_ref[...]                                               # (tm, Cin) bf16
    x1 = _silu(jnp.dot(x, w1_ref[...], preferred_element_type=jnp.float32)
               + b1_ref[...])
    x2 = _silu(jnp.dot(x, w2_ref[...], preferred_element_type=jnp.float32)
               + b2_ref[...])
    x1b = x1.astype(x1_ref.dtype)
    x1_ref[...] = x1b
    x2_ref[...] = x2.astype(x2_ref.dtype)
    # Bottleneck's 1x1 conv, fused: consumes x1 straight out of registers/VMEM.
    y = _silu(jnp.dot(x1b, wb1_ref[...], preferred_element_type=jnp.float32)
              + bb1_ref[...])
    y_ref[...] = y.astype(y_ref.dtype)


def csp_stage1(x2d, w1, b1, w2, b2, wb1, bb1, *, tm=512):
    """x2d: (M, Cin) bf16 -> (x1, x2, y) each (M, Ch) bf16."""
    M, Cin = x2d.shape
    Ch = w1.shape[1]
    tm = min(tm, M)
    m_pad = pl.cdiv(M, tm) * tm
    if m_pad != M:
        x2d = jnp.pad(x2d, ((0, m_pad - M), (0, 0)))
    blk_bytes = (tm * Cin * 2 + 3 * tm * Ch * 2
                 + (2 * Cin * Ch + Ch * Ch) * 2 + 3 * Ch * 4)
    out_sds = jax.ShapeDtypeStruct((m_pad, Ch), jnp.bfloat16)
    x1, x2, y = pl.pallas_call(
        _stage1_kernel,
        out_shape=(out_sds, out_sds, out_sds),
        grid_spec=pltpu.PrefetchScalarGridSpec(
            num_scalar_prefetch=0,
            grid=(m_pad // tm,),
            in_specs=[
                pl.BlockSpec((tm, Cin), lambda i: (i, 0)),
                pl.BlockSpec((Cin, Ch), lambda i: (0, 0)),
                pl.BlockSpec((1, Ch), lambda i: (0, 0)),
                pl.BlockSpec((Cin, Ch), lambda i: (0, 0)),
                pl.BlockSpec((1, Ch), lambda i: (0, 0)),
                pl.BlockSpec((Ch, Ch), lambda i: (0, 0)),
                pl.BlockSpec((1, Ch), lambda i: (0, 0)),
            ],
            out_specs=(
                pl.BlockSpec((tm, Ch), lambda i: (i, 0)),
                pl.BlockSpec((tm, Ch), lambda i: (i, 0)),
                pl.BlockSpec((tm, Ch), lambda i: (i, 0)),
            ),
        ),
        compiler_params=_cparams(("parallel",), blk_bytes),
    )(x2d, w1, b1, w2, b2, wb1, bb1)
    if m_pad != M:
        x1, x2, y = x1[:M], x2[:M], y[:M]
    return x1, x2, y


# ----------------------------------------------------------------------------
# Stage 2: 3x3 conv (stride 1, pad 1) + folded BN + SiLU + residual add
# ----------------------------------------------------------------------------
def _conv3x3_kernel(x_ref, w_ref, b_ref, r_ref, o_ref, xp_ref,
                    *, H, W, C, use_add):
    # x_ref : (1, H, W, C)   bf16 NHWC input (one image)
    # w_ref : (9, C, Cout)   f32 taps ordered (kh, kw), BN scale pre-folded
    # b_ref : (1, Cout)      f32 folded-BN shift
    # r_ref : (1, H*W, Cout) bf16 residual (flattened pixels)
    # o_ref : (1, H*W, Cout) bf16 output
    # xp_ref: (H+2, W+2, C)  f32 VMEM scratch holding the zero-padded image
    Cout = w_ref.shape[2]
    # in-kernel zero padding (replaces the wrapper-level jnp.pad HBM pass)
    xp_ref[...] = jnp.zeros_like(xp_ref)
    xp_ref[1:H + 1, 1:W + 1, :] = x_ref[0].astype(jnp.float32)
    # accumulator initialised with the folded-BN bias (no zeros + extra add)
    acc = jnp.broadcast_to(b_ref[...], (H * W, Cout))
    for kh in range(3):
        for kw in range(3):
            patch = xp_ref[kh:kh + H, kw:kw + W, :].reshape(H * W, C)
            acc = acc + jnp.dot(patch, w_ref[kh * 3 + kw],
                                preferred_element_type=jnp.float32)
    y = _silu(acc)
    if use_add:
        y = y + r_ref[0].astype(jnp.float32)
    o_ref[0] = y.astype(o_ref.dtype)


def conv3x3_bn_silu_residual(x_nhwc, w9, shift, residual_flat, *, use_add):
    """x_nhwc: (N,H,W,C) bf16, w9: (9,C,Cout) f32, residual: (N,H*W,Cout) bf16."""
    N, H, W, C = x_nhwc.shape
    Cout = w9.shape[2]
    kernel = functools.partial(_conv3x3_kernel, H=H, W=W, C=C, use_add=use_add)
    blk_bytes = (H * W * C * 2                # input block (bf16)
                 + 2 * H * W * Cout * 2       # residual + output blocks (bf16)
                 + 9 * C * Cout * 4 + Cout * 4
                 + (H + 2) * (W + 2) * C * 4)  # f32 padded scratch
    return pl.pallas_call(
        kernel,
        out_shape=jax.ShapeDtypeStruct((N, H * W, Cout), jnp.bfloat16),
        grid_spec=pltpu.PrefetchScalarGridSpec(
            num_scalar_prefetch=0,
            grid=(N,),
            in_specs=[
                pl.BlockSpec((1, H, W, C), lambda b: (b, 0, 0, 0)),
                pl.BlockSpec((9, C, Cout), lambda b: (0, 0, 0)),
                pl.BlockSpec((1, Cout), lambda b: (0, 0)),
                pl.BlockSpec((1, H * W, Cout), lambda b: (b, 0, 0)),
            ],
            out_specs=pl.BlockSpec((1, H * W, Cout), lambda b: (b, 0, 0)),
            scratch_shapes=[pltpu.VMEM((H + 2, W + 2, C), jnp.float32)],
        ),
        compiler_params=_cparams(("parallel",), blk_bytes),
    )(x_nhwc, w9, shift, residual_flat)


# ----------------------------------------------------------------------------
# Stage 3: fused channel-concat + conv3 (1x1 + BN + SiLU)
# ----------------------------------------------------------------------------
def _stage3_kernel(x1_ref, x2_ref, wa_ref, wb_ref, b_ref, o_ref):
    acc = jnp.dot(x1_ref[...], wa_ref[...], preferred_element_type=jnp.float32)
    acc = acc + jnp.dot(x2_ref[...], wb_ref[...],
                        preferred_element_type=jnp.float32)
    o_ref[...] = _silu(acc + b_ref[...]).astype(o_ref.dtype)


def csp_stage3(x1, x2, wa, wb, b, *, tm=512):
    M, Ch = x1.shape
    Cout = wa.shape[1]
    tm = min(tm, M)
    m_pad = pl.cdiv(M, tm) * tm
    if m_pad != M:
        pad = ((0, m_pad - M), (0, 0))
        x1 = jnp.pad(x1, pad)
        x2 = jnp.pad(x2, pad)
    blk_bytes = (2 * tm * Ch * 2 + tm * Cout * 4
                 + 2 * Ch * Cout * 2 + Cout * 4)
    out = pl.pallas_call(
        _stage3_kernel,
        out_shape=jax.ShapeDtypeStruct((m_pad, Cout), jnp.float32),
        grid_spec=pltpu.PrefetchScalarGridSpec(
            num_scalar_prefetch=0,
            grid=(m_pad // tm,),
            in_specs=[
                pl.BlockSpec((tm, Ch), lambda i: (i, 0)),
                pl.BlockSpec((tm, Ch), lambda i: (i, 0)),
                pl.BlockSpec((Ch, Cout), lambda i: (0, 0)),
                pl.BlockSpec((Ch, Cout), lambda i: (0, 0)),
                pl.BlockSpec((1, Cout), lambda i: (0, 0)),
            ],
            out_specs=pl.BlockSpec((tm, Cout), lambda i: (i, 0)),
        ),
        compiler_params=_cparams(("parallel",), blk_bytes),
    )(x1, x2, wa, wb, b)
    return out[:M] if m_pad != M else out


# ----------------------------------------------------------------------------
# CSPLayer forward (wrapper; NCHW in / NCHW out like PyTorch)
# ----------------------------------------------------------------------------
def csp_layer_forward(x_nchw, params):
    N, Cin, H, W = x_nchw.shape
    Ch = params["hidden"]
    Cout = params["out"]
    # NCHW -> NHWC -> flattened pixels; bf16 for MXU inputs / halved HBM bytes.
    xf = jnp.transpose(x_nchw, (0, 2, 3, 1)).reshape(N * H * W, Cin)
    xf = xf.astype(jnp.bfloat16)

    # Stage 1: conv1, conv2 and Bottleneck 1x1 fused into a single pass over x.
    x1, x2, y = csp_stage1(xf, params["w1"], params["b1"],
                           params["w2"], params["b2"],
                           params["wb1"], params["bb1"])

    # Stage 2: Bottleneck 3x3 conv + BN + SiLU + residual (num_bottle=1).
    y_nhwc = y.reshape(N, H, W, Ch)
    x1_res = x1.reshape(N, H * W, Ch)
    x1 = conv3x3_bn_silu_residual(y_nhwc, params["wb2"], params["bb2"],
                                  x1_res, use_add=True)
    x1 = x1.reshape(N * H * W, Ch)

    # Stage 3: channel concat fused into conv3 (x1 @ W3a + x2 @ W3b).
    out = csp_stage3(x1, x2, params["w3a"], params["w3b"], params["b3"])
    out = out.reshape(N, H, W, Cout)
    return jnp.transpose(out, (0, 3, 1, 2))                      # NCHW


# ----------------------------------------------------------------------------
# Deterministic parameter init + pure-JAX reference for validation
# ----------------------------------------------------------------------------
def init_bn(key, c, eps=1e-3):
    k1, k2, k3, k4 = jax.random.split(key, 4)
    gamma = jax.random.normal(k1, (c,), jnp.float32) * 0.2 + 1.0
    beta = jax.random.normal(k2, (c,), jnp.float32) * 0.1
    mean = jax.random.normal(k3, (c,), jnp.float32) * 0.1
    var = jax.random.uniform(k4, (c,), jnp.float32, minval=0.5, maxval=1.5)
    scale = gamma / jnp.sqrt(var + eps)
    shift = beta - mean * scale
    return scale.reshape(1, c), shift.reshape(1, c)


def ref_conv_bn_silu(x_nchw, w_oihw, scale_c, shift_c, pad):
    y = jax.lax.conv_general_dilated(
        x_nchw, w_oihw, window_strides=(1, 1),
        padding=[(pad, pad), (pad, pad)],
        dimension_numbers=("NCHW", "OIHW", "NCHW"),
        precision=jax.lax.Precision.HIGHEST)
    y = y * scale_c[None, :, None, None] + shift_c[None, :, None, None]
    return _silu_ref(y)


if __name__ == "__main__":
    N, Cin, H, W = 2, 4, 16, 16
    Cout = 4
    Ch = int(Cout * 0.5)  # hidden channels = 2

    key = jax.random.PRNGKey(0)
    keys = jax.random.split(key, 12)
    x = jax.random.normal(keys[0], (N, Cin, H, W), dtype=jnp.float32)

    def conv_w(k, co, ci, ks):
        return jax.random.normal(k, (co, ci, ks, ks), jnp.float32) / jnp.sqrt(
            float(ci * ks * ks))

    w1_o = conv_w(keys[1], Ch, Cin, 1)
    w2_o = conv_w(keys[2], Ch, Cin, 1)
    wb1_o = conv_w(keys[3], Ch, Ch, 1)
    wb2_o = conv_w(keys[4], Ch, Ch, 3)
    w3_o = conv_w(keys[5], Cout, 2 * Ch, 1)

    bn1 = init_bn(keys[6], Ch)
    bn2 = init_bn(keys[7], Ch)
    bnb1 = init_bn(keys[8], Ch)
    bnb2 = init_bn(keys[9], Ch)
    bn3 = init_bn(keys[10], Cout)

    # Fold BN scale into the matmul-form weights; keep only the shift as bias.
    def fold1x1(w_oihw, bn):
        w = w_oihw[:, :, 0, 0].T                      # (Cin, Cout)
        return (w * bn[0]).astype(jnp.bfloat16)

    w3s = (w3_o[:, :, 0, 0].T * bn3[0]).astype(jnp.bfloat16)      # (2Ch, Cout)
    # (O,I,kh,kw) -> (kh,kw,I,O) -> (9,I,O), taps ordered (kh,kw); scale folded.
    wb2m = jnp.transpose(wb2_o, (2, 3, 1, 0)).reshape(9, Ch, Ch) * bnb2[0]

    params = dict(
        hidden=Ch, out=Cout,
        w1=fold1x1(w1_o, bn1), b1=bn1[1],
        w2=fold1x1(w2_o, bn2), b2=bn2[1],
        wb1=fold1x1(wb1_o, bnb1), bb1=bnb1[1],
        wb2=wb2m, bb2=bnb2[1],
        w3a=w3s[:Ch], w3b=w3s[Ch:], b3=bn3[1],
    )

    out = jax.block_until_ready(csp_layer_forward(x, params))

    # Pure-JAX reference mirroring the PyTorch CSPLayer forward (eval-mode BN).
    r1 = ref_conv_bn_silu(x, w1_o, bn1[0][0], bn1[1][0], 0)
    r2 = ref_conv_bn_silu(x, w2_o, bn2[0][0], bn2[1][0], 0)
    ry = ref_conv_bn_silu(r1, wb1_o, bnb1[0][0], bnb1[1][0], 0)
    ry = ref_conv_bn_silu(ry, wb2_o, bnb2[0][0], bnb2[1][0], 1)
    r1 = ry + r1
    rcat = jnp.concatenate([r1, r2], axis=1)
    ref = ref_conv_bn_silu(rcat, w3_o, bn3[0][0], bn3[1][0], 0)

    assert out.shape == (N, Cout, H, W), out.shape
    err = float(jnp.max(jnp.abs(out - ref)))
    # bf16 MXU inputs + bf16 intermediates -> loosened tolerance vs f32 ref.
    assert jnp.allclose(out, ref, atol=5e-2, rtol=5e-2), err
    print("KERNEL_OK")
</pallas_src>

<mosaic_0001>
module attributes {stable_mosaic.version = 11 : i64} {
  func.func @_stage1_kernel(%arg0: i32, %arg1: memref<512x4xbf16, #tpu.memory_space<vmem>>, %arg2: memref<4x2xbf16, #tpu.memory_space<vmem>>, %arg3: memref<1x2xf32, #tpu.memory_space<vmem>>, %arg4: memref<4x2xbf16, #tpu.memory_space<vmem>>, %arg5: memref<1x2xf32, #tpu.memory_space<vmem>>, %arg6: memref<2x2xbf16, #tpu.memory_space<vmem>>, %arg7: memref<1x2xf32, #tpu.memory_space<vmem>>, %arg8: memref<512x2xbf16, #tpu.memory_space<vmem>>, %arg9: memref<512x2xbf16, #tpu.memory_space<vmem>>, %arg10: memref<512x2xbf16, #tpu.memory_space<vmem>>) attributes {dimension_semantics = [#tpu.dimension_semantics<parallel>], iteration_bounds = array<i64: 1>, scalar_prefetch = 0 : i64, scratch_operands = 0 : i64, tpu.core_type = #tpu.core_type<tc>, window_params = [{transform_indices = @transform_0, window_bounds = array<i64: 512, 4>}, {pipeline_mode = #tpu.pipeline_mode<synchronous>, transform_indices = @transform_1, window_bounds = array<i64: 4, 2>}, {pipeline_mode = #tpu.pipeline_mode<synchronous>, transform_indices = @transform_2, window_bounds = array<i64: 1, 2>}, {pipeline_mode = #tpu.pipeline_mode<synchronous>, transform_indices = @transform_3, window_bounds = array<i64: 4, 2>}, {pipeline_mode = #tpu.pipeline_mode<synchronous>, transform_indices = @transform_4, window_bounds = array<i64: 1, 2>}, {pipeline_mode = #tpu.pipeline_mode<synchronous>, transform_indices = @transform_5, window_bounds = array<i64: 2, 2>}, {pipeline_mode = #tpu.pipeline_mode<synchronous>, transform_indices = @transform_6, window_bounds = array<i64: 1, 2>}, {transform_indices = @transform_7, window_bounds = array<i64: 512, 2>}, {transform_indices = @transform_8, window_bounds = array<i64: 512, 2>}, {transform_indices = @transform_9, window_bounds = array<i64: 512, 2>}]} {
    %c0 = arith.constant 0 : index
    %c0_0 = arith.constant 0 : index
    %0 = vector.load %arg1[%c0, %c0_0] : memref<512x4xbf16, #tpu.memory_space<vmem>>, vector<512x4xbf16>
    %c0_1 = arith.constant 0 : index
    %c0_2 = arith.constant 0 : index
    %1 = vector.load %arg2[%c0_1, %c0_2] : memref<4x2xbf16, #tpu.memory_space<vmem>>, vector<4x2xbf16>
    %cst = arith.constant dense<0.000000e+00> : vector<512x2xf32>
    %2 = tpu.matmul %0, %1, %cst {dimension_numbers = #tpu.dot_dimension_numbers<[1], [0], [0], [1], [0, 0, 1, 1], [], []>} : vector<512x4xbf16>, vector<4x2xbf16>, vector<512x2xf32> -> vector<512x2xf32>
    %c0_3 = arith.constant 0 : index
    %c0_4 = arith.constant 0 : index
    %3 = vector.load %arg3[%c0_3, %c0_4] : memref<1x2xf32, #tpu.memory_space<vmem>>, vector<1x2xf32>
    %4 = vector.broadcast %3 : vector<1x2xf32> to vector<512x2xf32>
    %5 = arith.addf %2, %4 : vector<512x2xf32>
    %cst_5 = arith.constant 0.000000e+00 : f32
    %6 = vector.broadcast %cst_5 : f32 to vector<512x2xf32>
    %7 = arith.subf %6, %5 : vector<512x2xf32>
    %8 = math.exp %7 : vector<512x2xf32>
    %cst_6 = arith.constant 1.000000e+00 : f32
    %9 = vector.broadcast %cst_6 : f32 to vector<512x2xf32>
    %10 = arith.addf %9, %8 : vector<512x2xf32>
    %11 = tpu.reciprocal %10 {approx = true} : vector<512x2xf32> -> vector<512x2xf32>
    %12 = arith.mulf %5, %11 : vector<512x2xf32>
    %c0_7 = arith.constant 0 : index
    %c0_8 = arith.constant 0 : index
    %13 = vector.load %arg4[%c0_7, %c0_8] : memref<4x2xbf16, #tpu.memory_space<vmem>>, vector<4x2xbf16>
    %cst_9 = arith.constant dense<0.000000e+00> : vector<512x2xf32>
    %14 = tpu.matmul %0, %13, %cst_9 {dimension_numbers = #tpu.dot_dimension_numbers<[1], [0], [0], [1], [0, 0, 1, 1], [], []>} : vector<512x4xbf16>, vector<4x2xbf16>, vector<512x2xf32> -> vector<512x2xf32>
    %c0_10 = arith.constant 0 : index
    %c0_11 = arith.constant 0 : index
    %15 = vector.load %arg5[%c0_10, %c0_11] : memref<1x2xf32, #tpu.memory_space<vmem>>, vector<1x2xf32>
    %16 = vector.broadcast %15 : vector<1x2xf32> to vector<512x2xf32>
    %17 = arith.addf %14, %16 : vector<512x2xf32>
    %cst_12 = arith.constant 0.000000e+00 : f32
    %18 = vector.broadcast %cst_12 : f32 to vector<512x2xf32>
    %19 = arith.subf %18, %17 : vector<512x2xf32>
    %20 = math.exp %19 : vector<512x2xf32>
    %cst_13 = arith.constant 1.000000e+00 : f32
    %21 = vector.broadcast %cst_13 : f32 to vector<512x2xf32>
    %22 = arith.addf %21, %20 : vector<512x2xf32>
    %23 = tpu.reciprocal %22 {approx = true} : vector<512x2xf32> -> vector<512x2xf32>
    %24 = arith.mulf %17, %23 : vector<512x2xf32>
    %25 = arith.truncf %12 : vector<512x2xf32> to vector<512x2xbf16>
    %c0_14 = arith.constant 0 : index
    %c0_15 = arith.constant 0 : index
    %26 = vector.load %arg8[%c0_14, %c0_15] : memref<512x2xbf16, #tpu.memory_space<vmem>>, vector<512x2xbf16>
    tpu.vector_store %arg8[%c0_14, %c0_15], %25 {strides = array<i32>} : memref<512x2xbf16, #tpu.memory_space<vmem>>, vector<512x2xbf16>,
    %27 = arith.truncf %24 : vector<512x2xf32> to vector<512x2xbf16>
    %c0_16 = arith.constant 0 : index
    %c0_17 = arith.constant 0 : index
    %28 = vector.load %arg9[%c0_16, %c0_17] : memref<512x2xbf16, #tpu.memory_space<vmem>>, vector<512x2xbf16>
    tpu.vector_store %arg9[%c0_16, %c0_17], %27 {strides = array<i32>} : memref<512x2xbf16, #tpu.memory_space<vmem>>, vector<512x2xbf16>,
    %c0_18 = arith.constant 0 : index
    %c0_19 = arith.constant 0 : index
    %29 = vector.load %arg6[%c0_18, %c0_19] : memref<2x2xbf16, #tpu.memory_space<vmem>>, vector<2x2xbf16>
    %cst_20 = arith.constant dense<0.000000e+00> : vector<512x2xf32>
    %30 = tpu.matmul %25, %29, %cst_20 {dimension_numbers = #tpu.dot_dimension_numbers<[1], [0], [0], [1], [0, 0, 1, 1], [], []>} : vector<512x2xbf16>, vector<2x2xbf16>, vector<512x2xf32> -> vector<512x2xf32>
    %c0_21 = arith.constant 0 : index
    %c0_22 = arith.constant 0 : index
    %31 = vector.load %arg7[%c0_21, %c0_22] : memref<1x2xf32, #tpu.memory_space<vmem>>, vector<1x2xf32>
    %32 = vector.broadcast %31 : vector<1x2xf32> to vector<512x2xf32>
    %33 = arith.addf %30, %32 : vector<512x2xf32>
    %cst_23 = arith.constant 0.000000e+00 : f32
    %34 = vector.broadcast %cst_23 : f32 to vector<512x2xf32>
    %35 = arith.subf %34, %33 : vector<512x2xf32>
    %36 = math.exp %35 : vector<512x2xf32>
    %cst_24 = arith.constant 1.000000e+00 : f32
    %37 = vector.broadcast %cst_24 : f32 to vector<512x2xf32>
    %38 = arith.addf %37, %36 : vector<512x2xf32>
    %39 = tpu.reciprocal %38 {approx = true} : vector<512x2xf32> -> vector<512x2xf32>
    %40 = arith.mulf %33, %39 : vector<512x2xf32>
    %41 = arith.truncf %40 : vector<512x2xf32> to vector<512x2xbf16>
    %c0_25 = arith.constant 0 : index
    %c0_26 = arith.constant 0 : index
    %42 = vector.load %arg10[%c0_25, %c0_26] : memref<512x2xbf16, #tpu.memory_space<vmem>>, vector<512x2xbf16>
    tpu.vector_store %arg10[%c0_25, %c0_26], %41 {strides = array<i32>} : memref<512x2xbf16, #tpu.memory_space<vmem>>, vector<512x2xbf16>,
    return
  }
  func.func @transform_0(%arg0: i32) -> (i32, i32) {
    %c0_i32 = arith.constant 0 : i32
    %c0_i32_0 = arith.constant 0 : i32
    return %arg0, %c0_i32 : i32, i32
  }
  func.func @transform_1(%arg0: i32) -> (i32, i32) {
    %c0_i32 = arith.constant 0 : i32
    %c0_i32_0 = arith.constant 0 : i32
    %c0_i32_1 = arith.constant 0 : i32
    return %c0_i32, %c0_i32_0 : i32, i32
  }
  func.func @transform_2(%arg0: i32) -> (i32, i32) {
    %c0_i32 = arith.constant 0 : i32
    %c0_i32_0 = arith.constant 0 : i32
    %c0_i32_1 = arith.constant 0 : i32
    return %c0_i32, %c0_i32_0 : i32, i32
  }
  func.func @transform_3(%arg0: i32) -> (i32, i32) {
    %c0_i32 = arith.constant 0 : i32
    %c0_i32_0 = arith.constant 0 : i32
    %c0_i32_1 = arith.constant 0 : i32
    return %c0_i32, %c0_i32_0 : i32, i32
  }
  func.func @transform_4(%arg0: i32) -> (i32, i32) {
    %c0_i32 = arith.constant 0 : i32
    %c0_i32_0 = arith.constant 0 : i32
    %c0_i32_1 = arith.constant 0 : i32
    return %c0_i32, %c0_i32_0 : i32, i32
  }
  func.func @transform_5(%arg0: i32) -> (i32, i32) {
    %c0_i32 = arith.constant 0 : i32
    %c0_i32_0 = arith.constant 0 : i32
    %c0_i32_1 = arith.constant 0 : i32
    return %c0_i32, %c0_i32_0 : i32, i32
  }
  func.func @transform_6(%arg0: i32) -> (i32, i32) {
    %c0_i32 = arith.constant 0 : i32
    %c0_i32_0 = arith.constant 0 : i32
    %c0_i32_1 = arith.constant 0 : i32
    return %c0_i32, %c0_i32_0 : i32, i32
  }
  func.func @transform_7(%arg0: i32) -> (i32, i32) {
    %c0_i32 = arith.constant 0 : i32
    %c0_i32_0 = arith.constant 0 : i32
    return %arg0, %c0_i32 : i32, i32
  }
  func.func @transform_8(%arg0: i32) -> (i32, i32) {
    %c0_i32 = arith.constant 0 : i32
    %c0_i32_0 = arith.constant 0 : i32
    return %arg0, %c0_i32 : i32, i32
  }
  func.func @transform_9(%arg0: i32) -> (i32, i32) {
    %c0_i32 = arith.constant 0 : i32
    %c0_i32_0 = arith.constant 0 : i32
    return %arg0, %c0_i32 : i32, i32
  }
}

</mosaic_0001>

<llo_original>
// kernel: tpu_custom_call.1
$region0: #{tpu_custom_call.1}
  #allocation0 [shape = 'u32[]', space=smem, size = 0x4, offset = 0x4, fixed_abs, tag = 'smem constant byte address 0x4 - core index']
  #allocation1 [shape = 'u32[144,128]{1,0:T(1,128)}', space=vmem, size = 0x12000, scoped, tag = 'internal scratch']
  %s0 = inlined_call_operand.vmem [shape: bf16[512,4], index: 0, kind: input, shape index: {}]
  %s1 = inlined_call_operand.vmem [shape: bf16[4,2], index: 1, kind: input, shape index: {}]
  %s2 = inlined_call_operand.vmem [shape: f32[1,2], index: 2, kind: input, shape index: {}]
  %s3 = inlined_call_operand.vmem [shape: bf16[4,2], index: 3, kind: input, shape index: {}]
  %s4 = inlined_call_operand.vmem [shape: f32[1,2], index: 4, kind: input, shape index: {}]
  %s5 = inlined_call_operand.vmem [shape: bf16[2,2], index: 5, kind: input, shape index: {}]
  %s6 = inlined_call_operand.vmem [shape: f32[1,2], index: 6, kind: input, shape index: {}]
  %s7 = inlined_call_operand.vmem [shape: bf16[512,2], index: 7, kind: output, shape index: {0}]
  %s8 = inlined_call_operand.vmem [shape: bf16[512,2], index: 8, kind: output, shape index: {1}]
  %s9 = inlined_call_operand.vmem [shape: bf16[512,2], index: 9, kind: output, shape index: {2}]
  %10 = xla_tuple %s7, %s8, %s9
  %s11 = sld [smem:[#allocation0]]
  $region54: #{tpu_custom_call.1} parent=0
    _
  %s13 = ssub.s32 1, %s11
  %s14 = scalar_select 0, %s13, %s11
  // Predicated region
  $region2: #{tpu_custom_call.1} parent=0 // pred_check
    _
  $region3: #{tpu_custom_call.1} parent=0 // pred_check_branch
    %16 = sbr.rel (0) target = $region5
  $region4: #{tpu_custom_call.1} parent=0 // pred_region
    _
  $region5: #{tpu_custom_call.1} parent=0 // pred_fallthru
    _
  // Predicated region
  $region6: #{tpu_custom_call.1} parent=0 // pred_check
    _
  $region7: #{tpu_custom_call.1} parent=0 // pred_check_branch
    %18 = sbr.rel (0) target = $region9
  $region8: #{tpu_custom_call.1} parent=0 // pred_region
    _
  $region9: #{tpu_custom_call.1} parent=0 // pred_fallthru
    _
  // Predicated region
  $region10: #{tpu_custom_call.1} parent=0 // pred_check
    _
  $region11: #{tpu_custom_call.1} parent=0 // pred_check_branch
    %20 = sbr.rel (0) target = $region13
  $region12: #{tpu_custom_call.1} parent=0 // pred_region
    _
  $region13: #{tpu_custom_call.1} parent=0 // pred_fallthru
    _
  // Predicated region
  $region14: #{tpu_custom_call.1} parent=0 // pred_check
    _
  $region15: #{tpu_custom_call.1} parent=0 // pred_check_branch
    %22 = sbr.rel (0) target = $region17
  $region16: #{tpu_custom_call.1} parent=0 // pred_region
    _
  $region17: #{tpu_custom_call.1} parent=0 // pred_fallthru
    _
  // Predicated region
  $region18: #{tpu_custom_call.1} parent=0 // pred_check
    _
  $region19: #{tpu_custom_call.1} parent=0 // pred_check_branch
    %24 = sbr.rel (0) target = $region21
  $region20: #{tpu_custom_call.1} parent=0 // pred_region
    _
  $region21: #{tpu_custom_call.1} parent=0 // pred_fallthru
    _
  // Predicated region
  $region22: #{tpu_custom_call.1} parent=0 // pred_check
    _
  $region23: #{tpu_custom_call.1} parent=0 // pred_check_branch
    %26 = sbr.rel (0) target = $region25
  $region24: #{tpu_custom_call.1} parent=0 // pred_region
    _
  $region25: #{tpu_custom_call.1} parent=0 // pred_fallthru
    _
  // Predicated region
  $region26: #{tpu_custom_call.1} parent=0 // pred_check
    _
  $region27: #{tpu_custom_call.1} parent=0 // pred_check_branch
    %28 = sbr.rel (0) target = $region29
  $region28: #{tpu_custom_call.1} parent=0 // pred_region
    _
  $region29: #{tpu_custom_call.1} parent=0 // pred_fallthru
    _
  %v30 = vld [vmem:[%s0] sm:$0xf]
  %v31 = vld [vmem:[%s0 + $0x4] sm:$0xf]
  %v32 = vld [vmem:[%s0 + $0x8] sm:$0xf]
  %v33 = vld [vmem:[%s0 + $0xc] sm:$0xf]
  %v34 = vld [vmem:[%s0 + $0x10] sm:$0xf]
  %v35 = vld [vmem:[%s0 + $0x14] sm:$0xf]
  %v36 = vld [vmem:[%s0 + $0x18] sm:$0xf]
  %v37 = vld [vmem:[%s0 + $0x1c] sm:$0xf]
  %v38 = vld [vmem:[%s0 + $0x20] sm:$0xf]
  %v39 = vld [vmem:[%s0 + $0x24] sm:$0xf]
  %v40 = vld [vmem:[%s0 + $0x28] sm:$0xf]
  %v41 = vld [vmem:[%s0 + $0x2c] sm:$0xf]
  %v42 = vld [vmem:[%s0 + $0x30] sm:$0xf]
  %v43 = vld [vmem:[%s0 + $0x34] sm:$0xf]
  %v44 = vld [vmem:[%s0 + $0x38] sm:$0xf]
  %v45 = vld [vmem:[%s0 + $0x3c] sm:$0xf]
  %v46 = vld [vmem:[%s0 + $0x40] sm:$0xf]
  %v47 = vld [vmem:[%s0 + $0x44] sm:$0xf]
  %v48 = vld [vmem:[%s0 + $0x48] sm:$0xf]
  %v49 = vld [vmem:[%s0 + $0x4c] sm:$0xf]
  %v50 = vld [vmem:[%s0 + $0x50] sm:$0xf]
  %v51 = vld [vmem:[%s0 + $0x54] sm:$0xf]
  %v52 = vld [vmem:[%s0 + $0x58] sm:$0xf]
  %v53 = vld [vmem:[%s0 + $0x5c] sm:$0xf]
  %v54 = vld [vmem:[%s0 + $0x60] sm:$0xf]
  %v55 = vld [vmem:[%s0 + $0x64] sm:$0xf]
  %v56 = vld [vmem:[%s0 + $0x68] sm:$0xf]
  %v57 = vld [vmem:[%s0 + $0x6c] sm:$0xf]
  %v58 = vld [vmem:[%s0 + $0x70] sm:$0xf]
  %v59 = vld [vmem:[%s0 + $0x74] sm:$0xf]
  %v60 = vld [vmem:[%s0 + $0x78] sm:$0xf]
  %v61 = vld [vmem:[%s0 + $0x7c] sm:$0xf]
  %v62 = vld [vmem:[%s0 + $0x80] sm:$0xf]
  %v63 = vld [vmem:[%s0 + $0x84] sm:$0xf]
  %v64 = vld [vmem:[%s0 + $0x88] sm:$0xf]
  %v65 = vld [vmem:[%s0 + $0x8c] sm:$0xf]
  %v66 = vld [vmem:[%s0 + $0x90] sm:$0xf]
  %v67 = vld [vmem:[%s0 + $0x94] sm:$0xf]
  %v68 = vld [vmem:[%s0 + $0x98] sm:$0xf]
  %v69 = vld [vmem:[%s0 + $0x9c] sm:$0xf]
  %v70 = vld [vmem:[%s0 + $0xa0] sm:$0xf]
  %v71 = vld [vmem:[%s0 + $0xa4] sm:$0xf]
  %v72 = vld [vmem:[%s0 + $0xa8] sm:$0xf]
  %v73 = vld [vmem:[%s0 + $0xac] sm:$0xf]
  %v74 = vld [vmem:[%s0 + $0xb0] sm:$0xf]
  %v75 = vld [vmem:[%s0 + $0xb4] sm:$0xf]
  %v76 = vld [vmem:[%s0 + $0xb8] sm:$0xf]
  %v77 = vld [vmem:[%s0 + $0xbc] sm:$0xf]
  %v78 = vld [vmem:[%s0 + $0xc0] sm:$0xf]
  %v79 = vld [vmem:[%s0 + $0xc4] sm:$0xf]
  %v80 = vld [vmem:[%s0 + $0xc8] sm:$0xf]
  %v81 = vld [vmem:[%s0 + $0xcc] sm:$0xf]
  %v82 = vld [vmem:[%s0 + $0xd0] sm:$0xf]
  %v83 = vld [vmem:[%s0 + $0xd4] sm:$0xf]
  %v84 = vld [vmem:[%s0 + $0xd8] sm:$0xf]
  %v85 = vld [vmem:[%s0 + $0xdc] sm:$0xf]
  %v86 = vld [vmem:[%s0 + $0xe0] sm:$0xf]
  %v87 = vld [vmem:[%s0 + $0xe4] sm:$0xf]
  %v88 = vld [vmem:[%s0 + $0xe8] sm:$0xf]
  %v89 = vld [vmem:[%s0 + $0xec] sm:$0xf]
  %v90 = vld [vmem:[%s0 + $0xf0] sm:$0xf]
  %v91 = vld [vmem:[%s0 + $0xf4] sm:$0xf]
  %v92 = vld [vmem:[%s0 + $0xf8] sm:$0xf]
  %v93 = vld [vmem:[%s0 + $0xfc] sm:$0xf]
  %v94 = vld [vmem:[%s1] sm:$0x3]
  %v95 = vld [vmem:[%s2] sm:$0x1]
  %v97 = vlaneseq
  %v98 = vshrl.u32 %v97, 7
  %v99 = vsub.s32 0, %v98
  %v100 = vrot.slane %v95, %v99
  %v166 = vunpack.c.l.b16 %v30
  %v167 = vunpack.c.l.b16 %v31
  %v168 = vunpack.c.l.b16 %v32
  %v169 = vunpack.c.l.b16 %v33
  %v170 = vunpack.c.l.b16 %v34
  %v171 = vunpack.c.l.b16 %v35
  %v172 = vunpack.c.l.b16 %v36
  %v173 = vunpack.c.l.b16 %v37
  %v174 = vunpack.c.l.b16 %v38
  %v175 = vunpack.c.l.b16 %v39
  %v176 = vunpack.c.l.b16 %v40
  %v177 = vunpack.c.l.b16 %v41
  %v178 = vunpack.c.l.b16 %v42
  %v179 = vunpack.c.l.b16 %v43
  %v180 = vunpack.c.l.b16 %v44
  %v181 = vunpack.c.l.b16 %v45
  %v182 = vunpack.c.l.b16 %v46
  %v183 = vunpack.c.l.b16 %v47
  %v184 = vunpack.c.l.b16 %v48
  %v185 = vunpack.c.l.b16 %v49
  %v186 = vunpack.c.l.b16 %v50
  %v187 = vunpack.c.l.b16 %v51
  %v188 = vunpack.c.l.b16 %v52
  %v189 = vunpack.c.l.b16 %v53
  %v190 = vunpack.c.l.b16 %v54
  %v191 = vunpack.c.l.b16 %v55
  %v192 = vunpack.c.l.b16 %v56
  %v193 = vunpack.c.l.b16 %v57
  %v194 = vunpack.c.l.b16 %v58
  %v195 = vunpack.c.l.b16 %v59
  %v196 = vunpack.c.l.b16 %v60
  %v197 = vunpack.c.l.b16 %v61
  %v198 = vunpack.c.l.b16 %v62
  %v199 = vunpack.c.l.b16 %v63
  %v200 = vunpack.c.l.b16 %v64
  %v201 = vunpack.c.l.b16 %v65
  %v202 = vunpack.c.l.b16 %v66
  %v203 = vunpack.c.l.b16 %v67
  %v204 = vunpack.c.l.b16 %v68
  %v205 = vunpack.c.l.b16 %v69
  %v206 = vunpack.c.l.b16 %v70
  %v207 = vunpack.c.l.b16 %v71
  %v208 = vunpack.c.l.b16 %v72
  %v209 = vunpack.c.l.b16 %v73
  %v210 = vunpack.c.l.b16 %v74
  %v211 = vunpack.c.l.b16 %v75
  %v212 = vunpack.c.l.b16 %v76
  %v213 = vunpack.c.l.b16 %v77
  %v214 = vunpack.c.l.b16 %v78
  %v215 = vunpack.c.l.b16 %v79
  %v216 = vunpack.c.l.b16 %v80
  %v217 = vunpack.c.l.b16 %v81
  %v218 = vunpack.c.l.b16 %v82
  %v219 = vunpack.c.l.b16 %v83
  %v220 = vunpack.c.l.b16 %v84
  %v221 = vunpack.c.l.b16 %v85
  %v222 = vunpack.c.l.b16 %v86
  %v223 = vunpack.c.l.b16 %v87
  %v224 = vunpack.c.l.b16 %v88
  %v225 = vunpack.c.l.b16 %v89
  %v226 = vunpack.c.l.b16 %v90
  %v227 = vunpack.c.l.b16 %v91
  %v228 = vunpack.c.l.b16 %v92
  %v229 = vunpack.c.l.b16 %v93
  %v230 = vpack.c.b16 %v167, %v166
  %v231 = vpack.c.b16 %v169, %v168
  %v232 = vpack.c.b16 %v171, %v170
  %v233 = vpack.c.b16 %v173, %v172
  %v234 = vpack.c.b16 %v175, %v174
  %v235 = vpack.c.b16 %v177, %v176
  %v236 = vpack.c.b16 %v179, %v178
  %v237 = vpack.c.b16 %v181, %v180
  %v238 = vpack.c.b16 %v183, %v182
  %v239 = vpack.c.b16 %v185, %v184
  %v240 = vpack.c.b16 %v187, %v186
  %v241 = vpack.c.b16 %v189, %v188
  %v242 = vpack.c.b16 %v191, %v190
  %v243 = vpack.c.b16 %v193, %v192
  %v244 = vpack.c.b16 %v195, %v194
  %v245 = vpack.c.b16 %v197, %v196
  %v246 = vpack.c.b16 %v199, %v198
  %v247 = vpack.c.b16 %v201, %v200
  %v248 = vpack.c.b16 %v203, %v202
  %v249 = vpack.c.b16 %v205, %v204
  %v250 = vpack.c.b16 %v207, %v206
  %v251 = vpack.c.b16 %v209, %v208
  %v252 = vpack.c.b16 %v211, %v210
  %v253 = vpack.c.b16 %v213, %v212
  %v254 = vpack.c.b16 %v215, %v214
  %v255 = vpack.c.b16 %v217, %v216
  %v256 = vpack.c.b16 %v219, %v218
  %v257 = vpack.c.b16 %v221, %v220
  %v258 = vpack.c.b16 %v223, %v222
  %v259 = vpack.c.b16 %v225, %v224
  %v260 = vpack.c.b16 %v227, %v226
  %v261 = vpack.c.b16 %v229, %v228
  %vm262 = vcmask 31744
  %v264 = vsel %vm262, %v230, 0
  %v267 = vsel %vm262, %v231, 0
  %v270 = vsel %vm262, %v232, 0
  %v273 = vsel %vm262, %v233, 0
  %v276 = vsel %vm262, %v234, 0
  %v279 = vsel %vm262, %v235, 0
  %v282 = vsel %vm262, %v236, 0
  %v285 = vsel %vm262, %v237, 0
  %v288 = vsel %vm262, %v238, 0
  %v291 = vsel %vm262, %v239, 0
  %v294 = vsel %vm262, %v240, 0
  %v297 = vsel %vm262, %v241, 0
  %v300 = vsel %vm262, %v242, 0
  %v303 = vsel %vm262, %v243, 0
  %v306 = vsel %vm262, %v244, 0
  %v309 = vsel %vm262, %v245, 0
  %v312 = vsel %vm262, %v246, 0
  %v315 = vsel %vm262, %v247, 0
  %v318 = vsel %vm262, %v248, 0
  %v321 = vsel %vm262, %v249, 0
  %v324 = vsel %vm262, %v250, 0
  %v327 = vsel %vm262, %v251, 0
  %v330 = vsel %vm262, %v252, 0
  %v333 = vsel %vm262, %v253, 0
  %v336 = vsel %vm262, %v254, 0
  %v339 = vsel %vm262, %v255, 0
  %v342 = vsel %vm262, %v256, 0
  %v345 = vsel %vm262, %v257, 0
  %v348 = vsel %vm262, %v258, 0
  %v351 = vsel %vm262, %v259, 0
  %v354 = vsel %vm262, %v260, 0
  %v357 = vsel %vm262, %v261, 0
  %vm359 = vcmask 1041408
  %v361 = vsel %vm359, %v94, 0
  %363 = vmatprep.subr.bf16.mxu0 0
  %364 = vmatpush1.bf16.msra.mxu0 %v361
  %365 = vmatprep.subr.bf16.mxu0 0
  %366 = vmatpush1.bf16.msra.mxu0 0
  %367 = vmatprep.subr.bf16.mxu0 0
  %368 = vmatpush1.bf16.msra.mxu0 0
  %369 = vmatprep.subr.bf16.mxu0 0
  %370 = vmatpush1.bf16.msra.mxu0 0
  %371 = vmatprep.subr.bf16.mxu0 0
  %372 = vmatpush1.bf16.msra.mxu0 0
  %373 = vmatprep.subr.bf16.mxu0 0
  %374 = vmatpush1.bf16.msra.mxu0 0
  %375 = vmatprep.subr.bf16.mxu0 0
  %376 = vmatpush1.bf16.msra.mxu0 0
  %377 = vmatprep.subr.bf16.mxu0 0
  %378 = vmatpush1.bf16.msra.mxu0 0
  %379 = vmatprep.subr.bf16.mxu0 0
  %380 = vmatpush1.bf16.msra.mxu0 0
  %381 = vmatprep.subr.bf16.mxu0 0
  %382 = vmatpush1.bf16.msra.mxu0 0
  %383 = vmatprep.subr.bf16.mxu0 0
  %384 = vmatpush1.bf16.msra.mxu0 0
  %385 = vmatprep.subr.bf16.mxu0 0
  %386 = vmatpush1.bf16.msra.mxu0 0
  %387 = vmatprep.subr.bf16.mxu0 0
  %388 = vmatpush1.bf16.msra.mxu0 0
  %389 = vmatprep.subr.bf16.mxu0 0
  %390 = vmatpush1.bf16.msra.mxu0 0
  %391 = vmatprep.subr.bf16.mxu0 0
  %392 = vmatpush1.bf16.msra.mxu0 0
  %393 = vmatprep.subr.bf16.mxu0 0
  %394 = vmatpush1.bf16.msra.mxu0 0
  %395 = vmatprep.mubr.bf16.mxu0 0
  %396 = vmatmul.mubr.bf16.gmra.mrb[0].mxu0 %v264
  %v397 = vpop.f32.mrb[0].mxu0
  %v398 = vadd.f32 %v100, %v397
  %v399 = vpop.f32.mrb[0].mxu0
  %v400 = vpop.f32.mrb[0].mxu0
  %v401 = vadd.f32 %v100, %v400
  %v402 = vpop.f32.mrb[0].mxu0
  %403 = vmatprep.mubr.bf16.mxu0 0
  %404 = vmatmul.mubr.bf16.gmra.mrb[0].mxu0 %v267
  %v405 = vpop.f32.mrb[0].mxu0
  %v406 = vadd.f32 %v100, %v405
  %v407 = vpop.f32.mrb[0].mxu0
  %v408 = vpop.f32.mrb[0].mxu0
  %v409 = vadd.f32 %v100, %v408
  %v410 = vpop.f32.mrb[0].mxu0
  %411 = vmatprep.mubr.bf16.mxu0 0
  %412 = vmatmul.mubr.bf16.gmra.mrb[0].mxu0 %v270
  %v413 = vpop.f32.mrb[0].mxu0
  %v414 = vadd.f32 %v100, %v413
  %v415 = vpop.f32.mrb[0].mxu0
  %v416 = vpop.f32.mrb[0].mxu0
  %v417 = vadd.f32 %v100, %v416
  %v418 = vpop.f32.mrb[0].mxu0
  %419 = vmatprep.mubr.bf16.mxu0 0
  %420 = vmatmul.mubr.bf16.gmra.mrb[0].mxu0 %v273
  %v421 = vpop.f32.mrb[0].mxu0
  %v422 = vadd.f32 %v100, %v421
  %v423 = vpop.f32.mrb[0].mxu0
  %v424 = vpop.f32.mrb[0].mxu0
  %v425 = vadd.f32 %v100, %v424
  %v426 = vpop.f32.mrb[0].mxu0
  %427 = vmatprep.mubr.bf16.mxu0 0
  %428 = vmatmul.mubr.bf16.gmra.mrb[0].mxu0 %v276
  %v429 = vpop.f32.mrb[0].mxu0
  %v430 = vadd.f32 %v100, %v429
  %v431 = vpop.f32.mrb[0].mxu0
  %v432 = vpop.f32.mrb[0].mxu0
  %v433 = vadd.f32 %v100, %v432
  %v434 = vpop.f32.mrb[0].mxu0
  %435 = vmatprep.mubr.bf16.mxu0 0
  %436 = vmatmul.mubr.bf16.gmra.mrb[0].mxu0 %v279
  %v437 = vpop.f32.mrb[0].mxu0
  %v438 = vadd.f32 %v100, %v437
  %v439 = vpop.f32.mrb[0].mxu0
  %v440 = vpop.f32.mrb[0].mxu0
  %v441 = vadd.f32 %v100, %v440
  %v442 = vpop.f32.mrb[0].mxu0
  %443 = vmatprep.mubr.bf16.mxu0 0
  %444 = vmatmul.mubr.bf16.gmra.mrb[0].mxu0 %v282
  %v445 = vpop.f32.mrb[0].mxu0
  %v446 = vadd.f32 %v100, %v445
  %v447 = vpop.f32.mrb[0].mxu0
  %v448 = vpop.f32.mrb[0].mxu0
  %v449 = vadd.f32 %v100, %v448
  %v450 = vpop.f32.mrb[0].mxu0
  %451 = vmatprep.mubr.bf16.mxu0 0
  %452 = vmatmul.mubr.bf16.gmra.mrb[0].mxu0 %v285
  %v453 = vpop.f32.mrb[0].mxu0
  %v454 = vadd.f32 %v100, %v453
  %v455 = vpop.f32.mrb[0].mxu0
  %v456 = vpop.f32.mrb[0].mxu0
  %v457 = vadd.f32 %v100, %v456
  %v458 = vpop.f32.mrb[0].mxu0
  %459 = vmatprep.mubr.bf16.mxu0 0
  %460 = vmatmul.mubr.bf16.gmra.mrb[0].mxu0 %v288
  %v461 = vpop.f32.mrb[0].mxu0
  %v462 = vadd.f32 %v100, %v461
  %v463 = vpop.f32.mrb[0].mxu0
  %v464 = vpop.f32.mrb[0].mxu0
  %v465 = vadd.f32 %v100, %v464
  %v466 = vpop.f32.mrb[0].mxu0
  %467 = vmatprep.mubr.bf16.mxu0 0
  %468 = vmatmul.mubr.bf16.gmra.mrb[0].mxu0 %v291
  %v469 = vpop.f32.mrb[0].mxu0
  %v470 = vadd.f32 %v100, %v469
  %v471 = vpop.f32.mrb[0].mxu0
  %v472 = vpop.f32.mrb[0].mxu0
  %v473 = vadd.f32 %v100, %v472
  %v474 = vpop.f32.mrb[0].mxu0
  %475 = vmatprep.mubr.bf16.mxu0 0
  %476 = vmatmul.mubr.bf16.gmra.mrb[0].mxu0 %v294
  %v477 = vpop.f32.mrb[0].mxu0
  %v478 = vadd.f32 %v100, %v477
  %v479 = vpop.f32.mrb[0].mxu0
  %v480 = vpop.f32.mrb[0].mxu0
  %v481 = vadd.f32 %v100, %v480
  %v482 = vpop.f32.mrb[0].mxu0
  %483 = vmatprep.mubr.bf16.mxu0 0
  %484 = vmatmul.mubr.bf16.gmra.mrb[0].mxu0 %v297
  %v485 = vpop.f32.mrb[0].mxu0
  %v486 = vadd.f32 %v100, %v485
  %v487 = vpop.f32.mrb[0].mxu0
  %v488 = vpop.f32.mrb[0].mxu0
  %v489 = vadd.f32 %v100, %v488
  %v490 = vpop.f32.mrb[0].mxu0
  %491 = vmatprep.mubr.bf16.mxu0 0
  %492 = vmatmul.mubr.bf16.gmra.mrb[0].mxu0 %v300
  %v493 = vpop.f32.mrb[0].mxu0
  %v494 = vadd.f32 %v100, %v493
  %v495 = vpop.f32.mrb[0].mxu0
  %v496 = vpop.f32.mrb[0].mxu0
  %v497 = vadd.f32 %v100, %v496
  %v498 = vpop.f32.mrb[0].mxu0
  %499 = vmatprep.mubr.bf16.mxu0 0
  %500 = vmatmul.mubr.bf16.gmra.mrb[0].mxu0 %v303
  %v501 = vpop.f32.mrb[0].mxu0
  %v502 = vadd.f32 %v100, %v501
  %v503 = vpop.f32.mrb[0].mxu0
  %v504 = vpop.f32.mrb[0].mxu0
  %v505 = vadd.f32 %v100, %v504
  %v506 = vpop.f32.mrb[0].mxu0
  %507 = vmatprep.mubr.bf16.mxu0 0
  %508 = vmatmul.mubr.bf16.gmra.mrb[0].mxu0 %v306
  %v509 = vpop.f32.mrb[0].mxu0
  %v510 = vadd.f32 %v100, %v509
  %v511 = vpop.f32.mrb[0].mxu0
  %v512 = vpop.f32.mrb[0].mxu0
  %v513 = vadd.f32 %v100, %v512
  %v514 = vpop.f32.mrb[0].mxu0
  %515 = vmatprep.mubr.bf16.mxu0 0
  %516 = vmatmul.mubr.bf16.gmra.mrb[0].mxu0 %v309
  %v517 = vpop.f32.mrb[0].mxu0
  %v518 = vadd.f32 %v100, %v517
  %v519 = vpop.f32.mrb[0].mxu0
  %v520 = vpop.f32.mrb[0].mxu0
  %v521 = vadd.f32 %v100, %v520
  %v522 = vpop.f32.mrb[0].mxu0
  %523 = vmatprep.mubr.bf16.mxu0 0
  %524 = vmatmul.mubr.bf16.gmra.mrb[0].mxu0 %v312
  %v525 = vpop.f32.mrb[0].mxu0
  %v526 = vadd.f32 %v100, %v525
  %v527 = vpop.f32.mrb[0].mxu0
  %v528 = vpop.f32.mrb[0].mxu0
  %v529 = vadd.f32 %v100, %v528
  %v530 = vpop.f32.mrb[0].mxu0
  %531 = vmatprep.mubr.bf16.mxu0 0
  %532 = vmatmul.mubr.bf16.gmra.mrb[0].mxu0 %v315
  %v533 = vpop.f32.mrb[0].mxu0
  %v534 = vadd.f32 %v100, %v533
  %v535 = vpop.f32.mrb[0].mxu0
  %v536 = vpop.f32.mrb[0].mxu0
  %v537 = vadd.f32 %v100, %v536
  %v538 = vpop.f32.mrb[0].mxu0
  %539 = vmatprep.mubr.bf16.mxu0 0
  %540 = vmatmul.mubr.bf16.gmra.mrb[0].mxu0 %v318
  %v541 = vpop.f32.mrb[0].mxu0
  %v542 = vadd.f32 %v100, %v541
  %v543 = vpop.f32.mrb[0].mxu0
  %v544 = vpop.f32.mrb[0].mxu0
  %v545 = vadd.f32 %v100, %v544
  %v546 = vpop.f32.mrb[0].mxu0
  %547 = vmatprep.mubr.bf16.mxu0 0
  %548 = vmatmul.mubr.bf16.gmra.mrb[0].mxu0 %v321
  %v549 = vpop.f32.mrb[0].mxu0
  %v550 = vadd.f32 %v100, %v549
  %v551 = vpop.f32.mrb[0].mxu0
  %v552 = vpop.f32.mrb[0].mxu0
  %v553 = vadd.f32 %v100, %v552
  %v554 = vpop.f32.mrb[0].mxu0
  %555 = vmatprep.mubr.bf16.mxu0 0
  %556 = vmatmul.mubr.bf16.gmra.mrb[0].mxu0 %v324
  %v557 = vpop.f32.mrb[0].mxu0
  %v558 = vadd.f32 %v100, %v557
  %v559 = vpop.f32.mrb[0].mxu0
  %v560 = vpop.f32.mrb[0].mxu0
  %v561 = vadd.f32 %v100, %v560
  %v562 = vpop.f32.mrb[0].mxu0
  %563 = vmatprep.mubr.bf16.mxu0 0
  %564 = vmatmul.mubr.bf16.gmra.mrb[0].mxu0 %v327
  %v565 = vpop.f32.mrb[0].mxu0
  %v566 = vadd.f32 %v100, %v565
  %v567 = vpop.f32.mrb[0].mxu0
  %v568 = vpop.f32.mrb[0].mxu0
  %v569 = vadd.f32 %v100, %v568
  %v570 = vpop.f32.mrb[0].mxu0
  %571 = vmatprep.mubr.bf16.mxu0 0
  %572 = vmatmul.mubr.bf16.gmra.mrb[0].mxu0 %v330
  %v573 = vpop.f32.mrb[0].mxu0
  %v574 = vadd.f32 %v100, %v573
  %v575 = vpop.f32.mrb[0].mxu0
  %v576 = vpop.f32.mrb[0].mxu0
  %v577 = vadd.f32 %v100, %v576
  %v578 = vpop.f32.mrb[0].mxu0
  %579 = vmatprep.mubr.bf16.mxu0 0
  %580 = vmatmul.mubr.bf16.gmra.mrb[0].mxu0 %v333
  %v581 = vpop.f32.mrb[0].mxu0
  %v582 = vadd.f32 %v100, %v581
  %v583 = vpop.f32.mrb[0].mxu0
  %v584 = vpop.f32.mrb[0].mxu0
  %v585 = vadd.f32 %v100, %v584
  %v586 = vpop.f32.mrb[0].mxu0
  %587 = vmatprep.mubr.bf16.mxu0 0
  %588 = vmatmul.mubr.bf16.gmra.mrb[0].mxu0 %v336
  %v589 = vpop.f32.mrb[0].mxu0
  %v590 = vadd.f32 %v100, %v589
  %v591 = vpop.f32.mrb[0].mxu0
  %v592 = vpop.f32.mrb[0].mxu0
  %v593 = vadd.f32 %v100, %v592
  %v594 = vpop.f32.mrb[0].mxu0
  %595 = vmatprep.mubr.bf16.mxu0 0
  %596 = vmatmul.mubr.bf16.gmra.mrb[0].mxu0 %v339
  %v597 = vpop.f32.mrb[0].mxu0
  %v598 = vadd.f32 %v100, %v597
  %v599 = vpop.f32.mrb[0].mxu0
  %v600 = vpop.f32.mrb[0].mxu0
  %v601 = vadd.f32 %v100, %v600
  %v602 = vpop.f32.mrb[0].mxu0
  %603 = vmatprep.mubr.bf16.mxu0 0
  %604 = vmatmul.mubr.bf16.gmra.mrb[0].mxu0 %v342
  %v605 = vpop.f32.mrb[0].mxu0
  %v606 = vadd.f32 %v100, %v605
  %v607 = vpop.f32.mrb[0].mxu0
  %v608 = vpop.f32.mrb[0].mxu0
  %v609 = vadd.f32 %v100, %v608
  %v610 = vpop.f32.mrb[0].mxu0
  %611 = vmatprep.mubr.bf16.mxu0 0
  %612 = vmatmul.mubr.bf16.gmra.mrb[0].mxu0 %v345
  %v613 = vpop.f32.mrb[0].mxu0
  %v614 = vadd.f32 %v100, %v613
  %v615 = vpop.f32.mrb[0].mxu0
  %v616 = vpop.f32.mrb[0].mxu0
  %v617 = vadd.f32 %v100, %v616
  %v618 = vpop.f32.mrb[0].mxu0
  %619 = vmatprep.mubr.bf16.mxu0 0
  %620 = vmatmul.mubr.bf16.gmra.mrb[0].mxu0 %v348
  %v621 = vpop.f32.mrb[0].mxu0
  %v622 = vadd.f32 %v100, %v621
  %v623 = vpop.f32.mrb[0].mxu0
  %v624 = vpop.f32.mrb[0].mxu0
  %v625 = vadd.f32 %v100, %v624
  %v626 = vpop.f32.mrb[0].mxu0
  %627 = vmatprep.mubr.bf16.mxu0 0
  %628 = vmatmul.mubr.bf16.gmra.mrb[0].mxu0 %v351
  %v629 = vpop.f32.mrb[0].mxu0
  %v630 = vadd.f32 %v100, %v629
  %v631 = vpop.f32.mrb[0].mxu0
  %v632 = vpop.f32.mrb[0].mxu0
  %v633 = vadd.f32 %v100, %v632
  %v634 = vpop.f32.mrb[0].mxu0
  %635 = vmatprep.mubr.bf16.mxu0 0
  %636 = vmatmul.mubr.bf16.gmra.mrb[0].mxu0 %v354
  %v637 = vpop.f32.mrb[0].mxu0
  %v638 = vadd.f32 %v100, %v637
  %v639 = vpop.f32.mrb[0].mxu0
  %v640 = vpop.f32.mrb[0].mxu0
  %v641 = vadd.f32 %v100, %v640
  %v642 = vpop.f32.mrb[0].mxu0
  %643 = vmatprep.mubr.bf16.mxu0 0
  %644 = vmatmul.mubr.bf16.gmra.mrb[0].mxu0 %v357
  %v645 = vpop.f32.mrb[0].mxu0
  %v646 = vadd.f32 %v100, %v645
  %v647 = vpop.f32.mrb[0].mxu0
  %v648 = vpop.f32.mrb[0].mxu0
  %v649 = vadd.f32 %v100, %v648
  %v650 = vpop.f32.mrb[0].mxu0
  %651 = vdwg.mxu0
  %v652 = vsub.f32 0.0, %v398
  %v653 = vsub.f32 0.0, %v401
  %v654 = vsub.f32 0.0, %v406
  %v655 = vsub.f32 0.0, %v409
  %v656 = vsub.f32 0.0, %v414
  %v657 = vsub.f32 0.0, %v417
  %v658 = vsub.f32 0.0, %v422
  %v659 = vsub.f32 0.0, %v425
  %v660 = vsub.f32 0.0, %v430
  %v661 = vsub.f32 0.0, %v433
  %v662 = vsub.f32 0.0, %v438
  %v663 = vsub.f32 0.0, %v441
  %v664 = vsub.f32 0.0, %v446
  %v665 = vsub.f32 0.0, %v449
  %v666 = vsub.f32 0.0, %v454
  %v667 = vsub.f32 0.0, %v457
  %v668 = vsub.f32 0.0, %v462
  %v669 = vsub.f32 0.0, %v465
  %v670 = vsub.f32 0.0, %v470
  %v671 = vsub.f32 0.0, %v473
  %v672 = vsub.f32 0.0, %v478
  %v673 = vsub.f32 0.0, %v481
  %v674 = vsub.f32 0.0, %v486
  %v675 = vsub.f32 0.0, %v489
  %v676 = vsub.f32 0.0, %v494
  %v677 = vsub.f32 0.0, %v497
  %v678 = vsub.f32 0.0, %v502
  %v679 = vsub.f32 0.0, %v505
  %v680 = vsub.f32 0.0, %v510
  %v681 = vsub.f32 0.0, %v513
  %v682 = vsub.f32 0.0, %v518
  %v683 = vsub.f32 0.0, %v521
  %v684 = vsub.f32 0.0, %v526
  %v685 = vsub.f32 0.0, %v529
  %v686 = vsub.f32 0.0, %v534
  %v687 = vsub.f32 0.0, %v537
  %v688 = vsub.f32 0.0, %v542
  %v689 = vsub.f32 0.0, %v545
  %v690 = vsub.f32 0.0, %v550
  %v691 = vsub.f32 0.0, %v553
  %v692 = vsub.f32 0.0, %v558
  %v693 = vsub.f32 0.0, %v561
  %v694 = vsub.f32 0.0, %v566
  %v695 = vsub.f32 0.0, %v569
  %v696 = vsub.f32 0.0, %v574
  %v697 = vsub.f32 0.0, %v577
  %v698 = vsub.f32 0.0, %v582
  %v699 = vsub.f32 0.0, %v585
  %v700 = vsub.f32 0.0, %v590
  %v701 = vsub.f32 0.0, %v593
  %v702 = vsub.f32 0.0, %v598
  %v703 = vsub.f32 0.0, %v601
  %v704 = vsub.f32 0.0, %v606
  %v705 = vsub.f32 0.0, %v609
  %v706 = vsub.f32 0.0, %v614
  %v707 = vsub.f32 0.0, %v617
  %v708 = vsub.f32 0.0, %v622
  %v709 = vsub.f32 0.0, %v625
  %v710 = vsub.f32 0.0, %v630
  %v711 = vsub.f32 0.0, %v633
  %v712 = vsub.f32 0.0, %v638
  %v713 = vsub.f32 0.0, %v641
  %v714 = vsub.f32 0.0, %v646
  %v715 = vsub.f32 0.0, %v649
  %v716 = vmul.f32 %v652, 1.442695
  %v717 = vpow.pop %v716
  %v718 = vmul.f32 %v653, 1.442695
  %v719 = vpow.pop %v718
  %v720 = vmul.f32 %v654, 1.442695
  %v721 = vpow.pop %v720
  %v722 = vmul.f32 %v655, 1.442695
  %v723 = vpow.pop %v722
  %v724 = vmul.f32 %v656, 1.442695
  %v725 = vpow.pop %v724
  %v726 = vmul.f32 %v657, 1.442695
  %v727 = vpow.pop %v726
  %v728 = vmul.f32 %v658, 1.442695
  %v729 = vpow.pop %v728
  %v730 = vmul.f32 %v659, 1.442695
  %v731 = vpow.pop %v730
  %v732 = vmul.f32 %v660, 1.442695
  %v733 = vpow.pop %v732
  %v734 = vmul.f32 %v661, 1.442695
  %v735 = vpow.pop %v734
  %v736 = vmul.f32 %v662, 1.442695
  %v737 = vpow.pop %v736
  %v738 = vmul.f32 %v663, 1.442695
  %v739 = vpow.pop %v738
  %v740 = vmul.f32 %v664, 1.442695
  %v741 = vpow.pop %v740
  %v742 = vmul.f32 %v665, 1.442695
  %v743 = vpow.pop %v742
  %v744 = vmul.f32 %v666, 1.442695
  %v745 = vpow.pop %v744
  %v746 = vmul.f32 %v667, 1.442695
  %v747 = vpow.pop %v746
  %v748 = vmul.f32 %v668, 1.442695
  %v749 = vpow.pop %v748
  %v750 = vmul.f32 %v669, 1.442695
  %v751 = vpow.pop %v750
  %v752 = vmul.f32 %v670, 1.442695
  %v753 = vpow.pop %v752
  %v754 = vmul.f32 %v671, 1.442695
  %v755 = vpow.pop %v754
  %v756 = vmul.f32 %v672, 1.442695
  %v757 = vpow.pop %v756
  %v758 = vmul.f32 %v673, 1.442695
  %v759 = vpow.pop %v758
  %v760 = vmul.f32 %v674, 1.442695
  %v761 = vpow.pop %v760
  %v762 = vmul.f32 %v675, 1.442695
  %v763 = vpow.pop %v762
  %v764 = vmul.f32 %v676, 1.442695
  %v765 = vpow.pop %v764
  %v766 = vmul.f32 %v677, 1.442695
  %v767 = vpow.pop %v766
  %v768 = vmul.f32 %v678, 1.442695
  %v769 = vpow.pop %v768
  %v770 = vmul.f32 %v679, 1.442695
  %v771 = vpow.pop %v770
  %v772 = vmul.f32 %v680, 1.442695
  %v773 = vpow.pop %v772
  %v774 = vmul.f32 %v681, 1.442695
  %v775 = vpow.pop %v774
  %v776 = vmul.f32 %v682, 1.442695
  %v777 = vpow.pop %v776
  %v778 = vmul.f32 %v683, 1.442695
  %v779 = vpow.pop %v778
  %v780 = vmul.f32 %v684, 1.442695
  %v781 = vpow.pop %v780
  %v782 = vmul.f32 %v685, 1.442695
  %v783 = vpow.pop %v782
  %v784 = vmul.f32 %v686, 1.442695
  %v785 = vpow.pop %v784
  %v786 = vmul.f32 %v687, 1.442695
  %v787 = vpow.pop %v786
  %v788 = vmul.f32 %v688, 1.442695
  %v789 = vpow.pop %v788
  %v790 = vmul.f32 %v689, 1.442695
  %v791 = vpow.pop %v790
  %v792 = vmul.f32 %v690, 1.442695
  %v793 = vpow.pop %v792
  %v794 = vmul.f32 %v691, 1.442695
  %v795 = vpow.pop %v794
  %v796 = vmul.f32 %v692, 1.442695
  %v797 = vpow.pop %v796
  %v798 = vmul.f32 %v693, 1.442695
  %v799 = vpow.pop %v798
  %v800 = vmul.f32 %v694, 1.442695
  %v801 = vpow.pop %v800
  %v802 = vmul.f32 %v695, 1.442695
  %v803 = vpow.pop %v802
  %v804 = vmul.f32 %v696, 1.442695
  %v805 = vpow.pop %v804
  %v806 = vmul.f32 %v697, 1.442695
  %v807 = vpow.pop %v806
  %v808 = vmul.f32 %v698, 1.442695
  %v809 = vpow.pop %v808
  %v810 = vmul.f32 %v699, 1.442695
  %v811 = vpow.pop %v810
  %v812 = vmul.f32 %v700, 1.442695
  %v813 = vpow.pop %v812
  %v814 = vmul.f32 %v701, 1.442695
  %v815 = vpow.pop %v814
  %v816 = vmul.f32 %v702, 1.442695
  %v817 = vpow.pop %v816
  %v818 = vmul.f32 %v703, 1.442695
  %v819 = vpow.pop %v818
  %v820 = vmul.f32 %v704, 1.442695
  %v821 = vpow.pop %v820
  %v822 = vmul.f32 %v705, 1.442695
  %v823 = vpow.pop %v822
  %v824 = vmul.f32 %v706, 1.442695
  %v825 = vpow.pop %v824
  %v826 = vmul.f32 %v707, 1.442695
  %v827 = vpow.pop %v826
  %v828 = vmul.f32 %v708, 1.442695
  %v829 = vpow.pop %v828
  %v830 = vmul.f32 %v709, 1.442695
  %v831 = vpow.pop %v830
  %v832 = vmul.f32 %v710, 1.442695
  %v833 = vpow.pop %v832
  %v834 = vmul.f32 %v711, 1.442695
  %v835 = vpow.pop %v834
  %v836 = vmul.f32 %v712, 1.442695
  %v837 = vpow.pop %v836
  %v838 = vmul.f32 %v713, 1.442695
  %v839 = vpow.pop %v838
  %v840 = vmul.f32 %v714, 1.442695
  %v841 = vpow.pop %v840
  %v842 = vmul.f32 %v715, 1.442695
  %v843 = vpow.pop %v842
  %v844 = vadd.f32 %v717, 1.0
  %v845 = vadd.f32 %v719, 1.0
  %v846 = vadd.f32 %v721, 1.0
  %v847 = vadd.f32 %v723, 1.0
  %v848 = vadd.f32 %v725, 1.0
  %v849 = vadd.f32 %v727, 1.0
  %v850 = vadd.f32 %v729, 1.0
  %v851 = vadd.f32 %v731, 1.0
  %v852 = vadd.f32 %v733, 1.0
  %v853 = vadd.f32 %v735, 1.0
  %v854 = vadd.f32 %v737, 1.0
  %v855 = vadd.f32 %v739, 1.0
  %v856 = vadd.f32 %v741, 1.0
  %v857 = vadd.f32 %v743, 1.0
  %v858 = vadd.f32 %v745, 1.0
  %v859 = vadd.f32 %v747, 1.0
  %v860 = vadd.f32 %v749, 1.0
  %v861 = vadd.f32 %v751, 1.0
  %v862 = vadd.f32 %v753, 1.0
  %v863 = vadd.f32 %v755, 1.0
  %v864 = vadd.f32 %v757, 1.0
  %v865 = vadd.f32 %v759, 1.0
  %v866 = vadd.f32 %v761, 1.0
  %v867 = vadd.f32 %v763, 1.0
  %v868 = vadd.f32 %v765, 1.0
  %v869 = vadd.f32 %v767, 1.0
  %v870 = vadd.f32 %v769, 1.0
  %v871 = vadd.f32 %v771, 1.0
  %v872 = vadd.f32 %v773, 1.0
  %v873 = vadd.f32 %v775, 1.0
  %v874 = vadd.f32 %v777, 1.0
  %v875 = vadd.f32 %v779, 1.0
  %v876 = vadd.f32 %v781, 1.0
  %v877 = vadd.f32 %v783, 1.0
  %v878 = vadd.f32 %v785, 1.0
  %v879 = vadd.f32 %v787, 1.0
  %v880 = vadd.f32 %v789, 1.0
  %v881 = vadd.f32 %v791, 1.0
  %v882 = vadd.f32 %v793, 1.0
  %v883 = vadd.f32 %v795, 1.0
  %v884 = vadd.f32 %v797, 1.0
  %v885 = vadd.f32 %v799, 1.0
  %v886 = vadd.f32 %v801, 1.0
  %v887 = vadd.f32 %v803, 1.0
  %v888 = vadd.f32 %v805, 1.0
  %v889 = vadd.f32 %v807, 1.0
  %v890 = vadd.f32 %v809, 1.0
  %v891 = vadd.f32 %v811, 1.0
  %v892 = vadd.f32 %v813, 1.0
  %v893 = vadd.f32 %v815, 1.0
  %v894 = vadd.f32 %v817, 1.0
  %v895 = vadd.f32 %v819, 1.0
  %v896 = vadd.f32 %v821, 1.0
  %v897 = vadd.f32 %v823, 1.0
  %v898 = vadd.f32 %v825, 1.0
  %v899 = vadd.f32 %v827, 1.0
  %v900 = vadd.f32 %v829, 1.0
  %v901 = vadd.f32 %v831, 1.0
  %v902 = vadd.f32 %v833, 1.0
  %v903 = vadd.f32 %v835, 1.0
  %v904 = vadd.f32 %v837, 1.0
  %v905 = vadd.f32 %v839, 1.0
  %v906 = vadd.f32 %v841, 1.0
  %v907 = vadd.f32 %v843, 1.0
  %v908 = vrcp.pop %v844
  %v909 = vrcp.pop %v845
  %v910 = vrcp.pop %v846
  %v911 = vrcp.pop %v847
  %v912 = vrcp.pop %v848
  %v913 = vrcp.pop %v849
  %v914 = vrcp.pop %v850
  %v915 = vrcp.pop %v851
  %v916 = vrcp.pop %v852
  %v917 = vrcp.pop %v853
  %v918 = vrcp.pop %v854
  %v919 = vrcp.pop %v855
  %v920 = vrcp.pop %v856
  %v921 = vrcp.pop %v857
  %v922 = vrcp.pop %v858
  %v923 = vrcp.pop %v859
  %v924 = vrcp.pop %v860
  %v925 = vrcp.pop %v861
  %v926 = vrcp.pop %v862
  %v927 = vrcp.pop %v863
  %v928 = vrcp.pop %v864
  %v929 = vrcp.pop %v865
  %v930 = vrcp.pop %v866
  %v931 = vrcp.pop %v867
  %v932 = vrcp.pop %v868
  %v933 = vrcp.pop %v869
  %v934 = vrcp.pop %v870
  %v935 = vrcp.pop %v871
  %v936 = vrcp.pop %v872
  %v937 = vrcp.pop %v873
  %v938 = vrcp.pop %v874
  %v939 = vrcp.pop %v875
  %v940 = vrcp.pop %v876
  %v941 = vrcp.pop %v877
  %v942 = vrcp.pop %v878
  %v943 = vrcp.pop %v879
  %v944 = vrcp.pop %v880
  %v945 = vrcp.pop %v881
  %v946 = vrcp.pop %v882
  %v947 = vrcp.pop %v883
  %v948 = vrcp.pop %v884
  %v949 = vrcp.pop %v885
  %v950 = vrcp.pop %v886
  %v951 = vrcp.pop %v887
  %v952 = vrcp.pop %v888
  %v953 = vrcp.pop %v889
  %v954 = vrcp.pop %v890
  %v955 = vrcp.pop %v891
  %v956 = vrcp.pop %v892
  %v957 = vrcp.pop %v893
  %v958 = vrcp.pop %v894
  %v959 = vrcp.pop %v895
  %v960 = vrcp.pop %v896
  %v961 = vrcp.pop %v897
  %v962 = vrcp.pop %v898
  %v963 = vrcp.pop %v899
  %v964 = vrcp.pop %v900
  %v965 = vrcp.pop %v901
  %v966 = vrcp.pop %v902
  %v967 = vrcp.pop %v903
  %v968 = vrcp.pop %v904
  %v969 = vrcp.pop %v905
  %v970 = vrcp.pop %v906
  %v971 = vrcp.pop %v907
  %v972 = vmul.f32 %v398, %v908
  %v973 = vmul.f32 %v401, %v909
  %v974 = vmul.f32 %v406, %v910
  %v975 = vmul.f32 %v409, %v911
  %v976 = vmul.f32 %v414, %v912
  %v977 = vmul.f32 %v417, %v913
  %v978 = vmul.f32 %v422, %v914
  %v979 = vmul.f32 %v425, %v915
  %v980 = vmul.f32 %v430, %v916
  %v981 = vmul.f32 %v433, %v917
  %v982 = vmul.f32 %v438, %v918
  %v983 = vmul.f32 %v441, %v919
  %v984 = vmul.f32 %v446, %v920
  %v985 = vmul.f32 %v449, %v921
  %v986 = vmul.f32 %v454, %v922
  %v987 = vmul.f32 %v457, %v923
  %v988 = vmul.f32 %v462, %v924
  %v989 = vmul.f32 %v465, %v925
  %v990 = vmul.f32 %v470, %v926
  %v991 = vmul.f32 %v473, %v927
  %v992 = vmul.f32 %v478, %v928
  %v993 = vmul.f32 %v481, %v929
  %v994 = vmul.f32 %v486, %v930
  %v995 = vmul.f32 %v489, %v931
  %v996 = vmul.f32 %v494, %v932
  %v997 = vmul.f32 %v497, %v933
  %v998 = vmul.f32 %v502, %v934
  %v999 = vmul.f32 %v505, %v935
  %v1000 = vmul.f32 %v510, %v936
  %v1001 = vmul.f32 %v513, %v937
  %v1002 = vmul.f32 %v518, %v938
  %v1003 = vmul.f32 %v521, %v939
  %v1004 = vmul.f32 %v526, %v940
  %v1005 = vmul.f32 %v529, %v941
  %v1006 = vmul.f32 %v534, %v942
  %v1007 = vmul.f32 %v537, %v943
  %v1008 = vmul.f32 %v542, %v944
  %v1009 = vmul.f32 %v545, %v945
  %v1010 = vmul.f32 %v550, %v946
  %v1011 = vmul.f32 %v553, %v947
  %v1012 = vmul.f32 %v558, %v948
  %v1013 = vmul.f32 %v561, %v949
  %v1014 = vmul.f32 %v566, %v950
  %v1015 = vmul.f32 %v569, %v951
  %v1016 = vmul.f32 %v574, %v952
  %v1017 = vmul.f32 %v577, %v953
  %v1018 = vmul.f32 %v582, %v954
  %v1019 = vmul.f32 %v585, %v955
  %v1020 = vmul.f32 %v590, %v956
  %v1021 = vmul.f32 %v593, %v957
  %v1022 = vmul.f32 %v598, %v958
  %v1023 = vmul.f32 %v601, %v959
  %v1024 = vmul.f32 %v606, %v960
  %v1025 = vmul.f32 %v609, %v961
  %v1026 = vmul.f32 %v614, %v962
  %v1027 = vmul.f32 %v617, %v963
  %v1028 = vmul.f32 %v622, %v964
  %v1029 = vmul.f32 %v625, %v965
  %v1030 = vmul.f32 %v630, %v966
  %v1031 = vmul.f32 %v633, %v967
  %v1032 = vmul.f32 %v638, %v968
  %v1033 = vmul.f32 %v641, %v969
  %v1034 = vmul.f32 %v646, %v970
  %v1035 = vmul.f32 %v649, %v971
  %v1036 = vld [vmem:[%s3] sm:$0x3]
  %v1037 = vld [vmem:[%s4] sm:$0x1]
  %v1039 = vlaneseq
  %v1040 = vshrl.u32 %v1039, 7
  %v1041 = vsub.s32 0, %v1040
  %v1042 = vrot.slane %v1037, %v1041
  %v1045 = vsel %vm359, %v1036, 0
  %1047 = vmatprep.subr.bf16.mxu0 0
  %1048 = vmatpush1.bf16.msra.mxu0 %v1045
  %1049 = vmatprep.subr.bf16.mxu0 0
  %1050 = vmatpush1.bf16.msra.mxu0 0
  %1051 = vmatprep.subr.bf16.mxu0 0
  %1052 = vmatpush1.bf16.msra.mxu0 0
  %1053 = vmatprep.subr.bf16.mxu0 0
  %1054 = vmatpush1.bf16.msra.mxu0 0
  %1055 = vmatprep.subr.bf16.mxu0 0
  %1056 = vmatpush1.bf16.msra.mxu0 0
  %1057 = vmatprep.subr.bf16.mxu0 0
  %1058 = vmatpush1.bf16.msra.mxu0 0
  %1059 = vmatprep.subr.bf16.mxu0 0
  %1060 = vmatpush1.bf16.msra.mxu0 0
  %1061 = vmatprep.subr.bf16.mxu0 0
  %1062 = vmatpush1.bf16.msra.mxu0 0
  %1063 = vmatprep.subr.bf16.mxu0 0
  %1064 = vmatpush1.bf16.msra.mxu0 0
  %1065 = vmatprep.subr.bf16.mxu0 0
  %1066 = vmatpush1.bf16.msra.mxu0 0
  %1067 = vmatprep.subr.bf16.mxu0 0
  %1068 = vmatpush1.bf16.msra.mxu0 0
  %1069 = vmatprep.subr.bf16.mxu0 0
  %1070 = vmatpush1.bf16.msra.mxu0 0
  %1071 = vmatprep.subr.bf16.mxu0 0
  %1072 = vmatpush1.bf16.msra.mxu0 0
  %1073 = vmatprep.subr.bf16.mxu0 0
  %1074 = vmatpush1.bf16.msra.mxu0 0
  %1075 = vmatprep.subr.bf16.mxu0 0
  %1076 = vmatpush1.bf16.msra.mxu0 0
  %1077 = vmatprep.subr.bf16.mxu0 0
  %1078 = vmatpush1.bf16.msra.mxu0 0
  %1079 = vmatprep.mubr.bf16.mxu0 0
  %1080 = vmatmul.mubr.bf16.gmra.mrb[0].mxu0 %v264
  %v1081 = vpop.f32.mrb[0].mxu0
  %v1082 = vadd.f32 %v1042, %v1081
  %v1083 = vpop.f32.mrb[0].mxu0
  %v1084 = vpop.f32.mrb[0].mxu0
  %v1085 = vadd.f32 %v1042, %v1084
  %v1086 = vpop.f32.mrb[0].mxu0
  %1087 = vmatprep.mubr.bf16.mxu0 0
  %1088 = vmatmul.mubr.bf16.gmra.mrb[0].mxu0 %v267
  %v1089 = vpop.f32.mrb[0].mxu0
  %v1090 = vadd.f32 %v1042, %v1089
  %v1091 = vpop.f32.mrb[0].mxu0
  %v1092 = vpop.f32.mrb[0].mxu0
  %v1093 = vadd.f32 %v1042, %v1092
  %v1094 = vpop.f32.mrb[0].mxu0
  %1095 = vmatprep.mubr.bf16.mxu0 0
  %1096 = vmatmul.mubr.bf16.gmra.mrb[0].mxu0 %v270
  %v1097 = vpop.f32.mrb[0].mxu0
  %v1098 = vadd.f32 %v1042, %v1097
  %v1099 = vpop.f32.mrb[0].mxu0
  %v1100 = vpop.f32.mrb[0].mxu0
  %v1101 = vadd.f32 %v1042, %v1100
  %v1102 = vpop.f32.mrb[0].mxu0
  %1103 = vmatprep.mubr.bf16.mxu0 0
  %1104 = vmatmul.mubr.bf16.gmra.mrb[0].mxu0 %v273
  %v1105 = vpop.f32.mrb[0].mxu0
  %v1106 = vadd.f32 %v1042, %v1105
  %v1107 = vpop.f32.mrb[0].mxu0
  %v1108 = vpop.f32.mrb[0].mxu0
  %v1109 = vadd.f32 %v1042, %v1108
  %v1110 = vpop.f32.mrb[0].mxu0
  %1111 = vmatprep.mubr.bf16.mxu0 0
  %1112 = vmatmul.mubr.bf16.gmra.mrb[0].mxu0 %v276
  %v1113 = vpop.f32.mrb[0].mxu0
  %v1114 = vadd.f32 %v1042, %v1113
  %v1115 = vpop.f32.mrb[0].mxu0
  %v1116 = vpop.f32.mrb[0].mxu0
  %v1117 = vadd.f32 %v1042, %v1116
  %v1118 = vpop.f32.mrb[0].mxu0
  %1119 = vmatprep.mubr.bf16.mxu0 0
  %1120 = vmatmul.mubr.bf16.gmra.mrb[0].mxu0 %v279
  %v1121 = vpop.f32.mrb[0].mxu0
  %v1122 = vadd.f32 %v1042, %v1121
  %v1123 = vpop.f32.mrb[0].mxu0
  %v1124 = vpop.f32.mrb[0].mxu0
  %v1125 = vadd.f32 %v1042, %v1124
  %v1126 = vpop.f32.mrb[0].mxu0
  %1127 = vmatprep.mubr.bf16.mxu0 0
  %1128 = vmatmul.mubr.bf16.gmra.mrb[0].mxu0 %v282
  %v1129 = vpop.f32.mrb[0].mxu0
  %v1130 = vadd.f32 %v1042, %v1129
  %v1131 = vpop.f32.mrb[0].mxu0
  %v1132 = vpop.f32.mrb[0].mxu0
  %v1133 = vadd.f32 %v1042, %v1132
  %v1134 = vpop.f32.mrb[0].mxu0
  %1135 = vmatprep.mubr.bf16.mxu0 0
  %1136 = vmatmul.mubr.bf16.gmra.mrb[0].mxu0 %v285
  %v1137 = vpop.f32.mrb[0].mxu0
  %v1138 = vadd.f32 %v1042, %v1137
  %v1139 = vpop.f32.mrb[0].mxu0
  %v1140 = vpop.f32.mrb[0].mxu0
  %v1141 = vadd.f32 %v1042, %v1140
  %v1142 = vpop.f32.mrb[0].mxu0
  %1143 = vmatprep.mubr.bf16.mxu0 0
  %1144 = vmatmul.mubr.bf16.gmra.mrb[0].mxu0 %v288
  %v1145 = vpop.f32.mrb[0].mxu0
  %v1146 = vadd.f32 %v1042, %v1145
  %v1147 = vpop.f32.mrb[0].mxu0
  %v1148 = vpop.f32.mrb[0].mxu0
  %v1149 = vadd.f32 %v1042, %v1148
  %v1150 = vpop.f32.mrb[0].mxu0
  %1151 = vmatprep.mubr.bf16.mxu0 0
  %1152 = vmatmul.mubr.bf16.gmra.mrb[0].mxu0 %v291
  %v1153 = vpop.f32.mrb[0].mxu0
  %v1154 = vadd.f32 %v1042, %v1153
  %v1155 = vpop.f32.mrb[0].mxu0
  %v1156 = vpop.f32.mrb[0].mxu0
  %v1157 = vadd.f32 %v1042, %v1156
  %v1158 = vpop.f32.mrb[0].mxu0
  %1159 = vmatprep.mubr.bf16.mxu0 0
  %1160 = vmatmul.mubr.bf16.gmra.mrb[0].mxu0 %v294
  %v1161 = vpop.f32.mrb[0].mxu0
  %v1162 = vadd.f32 %v1042, %v1161
  %v1163 = vpop.f32.mrb[0].mxu0
  %v1164 = vpop.f32.mrb[0].mxu0
  %v1165 = vadd.f32 %v1042, %v1164
  %v1166 = vpop.f32.mrb[0].mxu0
  %1167 = vmatprep.mubr.bf16.mxu0 0
  %1168 = vmatmul.mubr.bf16.gmra.mrb[0].mxu0 %v297
  %v1169 = vpop.f32.mrb[0].mxu0
  %v1170 = vadd.f32 %v1042, %v1169
  %v1171 = vpop.f32.mrb[0].mxu0
  %v1172 = vpop.f32.mrb[0].mxu0
  %v1173 = vadd.f32 %v1042, %v1172
  %v1174 = vpop.f32.mrb[0].mxu0
  %1175 = vmatprep.mubr.bf16.mxu0 0
  %1176 = vmatmul.mubr.bf16.gmra.mrb[0].mxu0 %v300
  %v1177 = vpop.f32.mrb[0].mxu0
  %v1178 = vadd.f32 %v1042, %v1177
  %v1179 = vpop.f32.mrb[0].mxu0
  %v1180 = vpop.f32.mrb[0].mxu0
  %v1181 = vadd.f32 %v1042, %v1180
  %v1182 = vpop.f32.mrb[0].mxu0
  %1183 = vmatprep.mubr.bf16.mxu0 0
  %1184 = vmatmul.mubr.bf16.gmra.mrb[0].mxu0 %v303
  %v1185 = vpop.f32.mrb[0].mxu0
  %v1186 = vadd.f32 %v1042, %v1185
  %v1187 = vpop.f32.mrb[0].mxu0
  %v1188 = vpop.f32.mrb[0].mxu0
  %v1189 = vadd.f32 %v1042, %v1188
  %v1190 = vpop.f32.mrb[0].mxu0
  %1191 = vmatprep.mubr.bf16.mxu0 0
  %1192 = vmatmul.mubr.bf16.gmra.mrb[0].mxu0 %v306
  %v1193 = vpop.f32.mrb[0].mxu0
  %v1194 = vadd.f32 %v1042, %v1193
  %v1195 = vpop.f32.mrb[0].mxu0
  %v1196 = vpop.f32.mrb[0].mxu0
  %v1197 = vadd.f32 %v1042, %v1196
  %v1198 = vpop.f32.mrb[0].mxu0
  %1199 = vmatprep.mubr.bf16.mxu0 0
  %1200 = vmatmul.mubr.bf16.gmra.mrb[0].mxu0 %v309
  %v1201 = vpop.f32.mrb[0].mxu0
  %v1202 = vadd.f32 %v1042, %v1201
  %v1203 = vpop.f32.mrb[0].mxu0
  %v1204 = vpop.f32.mrb[0].mxu0
  %v1205 = vadd.f32 %v1042, %v1204
  %v1206 = vpop.f32.mrb[0].mxu0
  %1207 = vmatprep.mubr.bf16.mxu0 0
  %1208 = vmatmul.mubr.bf16.gmra.mrb[0].mxu0 %v312
  %v1209 = vpop.f32.mrb[0].mxu0
  %v1210 = vadd.f32 %v1042, %v1209
  %v1211 = vpop.f32.mrb[0].mxu0
  %v1212 = vpop.f32.mrb[0].mxu0
  %v1213 = vadd.f32 %v1042, %v1212
  %v1214 = vpop.f32.mrb[0].mxu0
  %1215 = vmatprep.mubr.bf16.mxu0 0
  %1216 = vmatmul.mubr.bf16.gmra.mrb[0].mxu0 %v315
  %v1217 = vpop.f32.mrb[0].mxu0
  %v1218 = vadd.f32 %v1042, %v1217
  %v1219 = vpop.f32.mrb[0].mxu0
  %v1220 = vpop.f32.mrb[0].mxu0
  %v1221 = vadd.f32 %v1042, %v1220
  %v1222 = vpop.f32.mrb[0].mxu0
  %1223 = vmatprep.mubr.bf16.mxu0 0
  %1224 = vmatmul.mubr.bf16.gmra.mrb[0].mxu0 %v318
  %v1225 = vpop.f32.mrb[0].mxu0
  %v1226 = vadd.f32 %v1042, %v1225
  %v1227 = vpop.f32.mrb[0].mxu0
  %v1228 = vpop.f32.mrb[0].mxu0
  %v1229 = vadd.f32 %v1042, %v1228
  %v1230 = vpop.f32.mrb[0].mxu0
  %1231 = vmatprep.mubr.bf16.mxu0 0
  %1232 = vmatmul.mubr.bf16.gmra.mrb[0].mxu0 %v321
  %v1233 = vpop.f32.mrb[0].mxu0
  %v1234 = vadd.f32 %v1042, %v1233
  %v1235 = vpop.f32.mrb[0].mxu0
  %v1236 = vpop.f32.mrb[0].mxu0
  %v1237 = vadd.f32 %v1042, %v1236
  %v1238 = vpop.f32.mrb[0].mxu0
  %1239 = vmatprep.mubr.bf16.mxu0 0
  %1240 = vmatmul.mubr.bf16.gmra.mrb[0].mxu0 %v324
  %v1241 = vpop.f32.mrb[0].mxu0
  %v1242 = vadd.f32 %v1042, %v1241
  %v1243 = vpop.f32.mrb[0].mxu0
  %v1244 = vpop.f32.mrb[0].mxu0
  %v1245 = vadd.f32 %v1042, %v1244
  %v1246 = vpop.f32.mrb[0].mxu0
  %1247 = vmatprep.mubr.bf16.mxu0 0
  %1248 = vmatmul.mubr.bf16.gmra.mrb[0].mxu0 %v327
  %v1249 = vpop.f32.mrb[0].mxu0
  %v1250 = vadd.f32 %v1042, %v1249
  %v1251 = vpop.f32.mrb[0].mxu0
  %v1252 = vpop.f32.mrb[0].mxu0
  %v1253 = vadd.f32 %v1042, %v1252
  %v1254 = vpop.f32.mrb[0].mxu0
  %1255 = vmatprep.mubr.bf16.mxu0 0
  %1256 = vmatmul.mubr.bf16.gmra.mrb[0].mxu0 %v330
  %v1257 = vpop.f32.mrb[0].mxu0
  %v1258 = vadd.f32 %v1042, %v1257
  %v1259 = vpop.f32.mrb[0].mxu0
  %v1260 = vpop.f32.mrb[0].mxu0
  %v1261 = vadd.f32 %v1042, %v1260
  %v1262 = vpop.f32.mrb[0].mxu0
  %1263 = vmatprep.mubr.bf16.mxu0 0
  %1264 = vmatmul.mubr.bf16.gmra.mrb[0].mxu0 %v333
  %v1265 = vpop.f32.mrb[0].mxu0
  %v1266 = vadd.f32 %v1042, %v1265
  %v1267 = vpop.f32.mrb[0].mxu0
  %v1268 = vpop.f32.mrb[0].mxu0
  %v1269 = vadd.f32 %v1042, %v1268
  %v1270 = vpop.f32.mrb[0].mxu0
  %1271 = vmatprep.mubr.bf16.mxu0 0
  %1272 = vmatmul.mubr.bf16.gmra.mrb[0].mxu0 %v336
  %v1273 = vpop.f32.mrb[0].mxu0
  %v1274 = vadd.f32 %v1042, %v1273
  %v1275 = vpop.f32.mrb[0].mxu0
  %v1276 = vpop.f32.mrb[0].mxu0
  %v1277 = vadd.f32 %v1042, %v1276
  %v1278 = vpop.f32.mrb[0].mxu0
  %1279 = vmatprep.mubr.bf16.mxu0 0
  %1280 = vmatmul.mubr.bf16.gmra.mrb[0].mxu0 %v339
  %v1281 = vpop.f32.mrb[0].mxu0
  %v1282 = vadd.f32 %v1042, %v1281
  %v1283 = vpop.f32.mrb[0].mxu0
  %v1284 = vpop.f32.mrb[0].mxu0
  %v1285 = vadd.f32 %v1042, %v1284
  %v1286 = vpop.f32.mrb[0].mxu0
  %1287 = vmatprep.mubr.bf16.mxu0 0
  %1288 = vmatmul.mubr.bf16.gmra.mrb[0].mxu0 %v342
  %v1289 = vpop.f32.mrb[0].mxu0
  %v1290 = vadd.f32 %v1042, %v1289
  %v1291 = vpop.f32.mrb[0].mxu0
  %v1292 = vpop.f32.mrb[0].mxu0
  %v1293 = vadd.f32 %v1042, %v1292
  %v1294 = vpop.f32.mrb[0].mxu0
  %1295 = vmatprep.mubr.bf16.mxu0 0
  %1296 = vmatmul.mubr.bf16.gmra.mrb[0].mxu0 %v345
  %v1297 = vpop.f32.mrb[0].mxu0
  %v1298 = vadd.f32 %v1042, %v1297
  %v1299 = vpop.f32.mrb[0].mxu0
  %v1300 = vpop.f32.mrb[0].mxu0
  %v1301 = vadd.f32 %v1042, %v1300
  %v1302 = vpop.f32.mrb[0].mxu0
  %1303 = vmatprep.mubr.bf16.mxu0 0
  %1304 = vmatmul.mubr.bf16.gmra.mrb[0].mxu0 %v348
  %v1305 = vpop.f32.mrb[0].mxu0
  %v1306 = vadd.f32 %v1042, %v1305
  %v1307 = vpop.f32.mrb[0].mxu0
  %v1308 = vpop.f32.mrb[0].mxu0
  %v1309 = vadd.f32 %v1042, %v1308
  %v1310 = vpop.f32.mrb[0].mxu0
  %1311 = vmatprep.mubr.bf16.mxu0 0
  %1312 = vmatmul.mubr.bf16.gmra.mrb[0].mxu0 %v351
  %v1313 = vpop.f32.mrb[0].mxu0
  %v1314 = vadd.f32 %v1042, %v1313
  %v1315 = vpop.f32.mrb[0].mxu0
  %v1316 = vpop.f32.mrb[0].mxu0
  %v1317 = vadd.f32 %v1042, %v1316
  %v1318 = vpop.f32.mrb[0].mxu0
  %1319 = vmatprep.mubr.bf16.mxu0 0
  %1320 = vmatmul.mubr.bf16.gmra.mrb[0].mxu0 %v354
  %v1321 = vpop.f32.mrb[0].mxu0
  %v1322 = vadd.f32 %v1042, %v1321
  %v1323 = vpop.f32.mrb[0].mxu0
  %v1324 = vpop.f32.mrb[0].mxu0
  %v1325 = vadd.f32 %v1042, %v1324
  %v1326 = vpop.f32.mrb[0].mxu0
  %1327 = vmatprep.mubr.bf16.mxu0 0
  %1328 = vmatmul.mubr.bf16.gmra.mrb[0].mxu0 %v357
  %v1329 = vpop.f32.mrb[0].mxu0
  %v1330 = vadd.f32 %v1042, %v1329
  %v1331 = vpop.f32.mrb[0].mxu0
  %v1332 = vpop.f32.mrb[0].mxu0
  %v1333 = vadd.f32 %v1042, %v1332
  %v1334 = vpop.f32.mrb[0].mxu0
  %1335 = vdwg.mxu0
  %v1336 = vsub.f32 0.0, %v1082
  %v1337 = vsub.f32 0.0, %v1085
  %v1338 = vsub.f32 0.0, %v1090
  %v1339 = vsub.f32 0.0, %v1093
  %v1340 = vsub.f32 0.0, %v1098
  %v1341 = vsub.f32 0.0, %v1101
  %v1342 = vsub.f32 0.0, %v1106
  %v1343 = vsub.f32 0.0, %v1109
  %v1344 = vsub.f32 0.0, %v1114
  %v1345 = vsub.f32 0.0, %v1117
  %v1346 = vsub.f32 0.0, %v1122
  %v1347 = vsub.f32 0.0, %v1125
  %v1348 = vsub.f32 0.0, %v1130
  %v1349 = vsub.f32 0.0, %v1133
  %v1350 = vsub.f32 0.0, %v1138
  %v1351 = vsub.f32 0.0, %v1141
  %v1352 = vsub.f32 0.0, %v1146
  %v1353 = vsub.f32 0.0, %v1149
  %v1354 = vsub.f32 0.0, %v1154
  %v1355 = vsub.f32 0.0, %v1157
  %v1356 = vsub.f32 0.0, %v1162
  %v1357 = vsub.f32 0.0, %v1165
  %v1358 = vsub.f32 0.0, %v1170
  %v1359 = vsub.f32 0.0, %v1173
  %v1360 = vsub.f32 0.0, %v1178
  %v1361 = vsub.f32 0.0, %v1181
  %v1362 = vsub.f32 0.0, %v1186
  %v1363 = vsub.f32 0.0, %v1189
  %v1364 = vsub.f32 0.0, %v1194
  %v1365 = vsub.f32 0.0, %v1197
  %v1366 = vsub.f32 0.0, %v1202
  %v1367 = vsub.f32 0.0, %v1205
  %v1368 = vsub.f32 0.0, %v1210
  %v1369 = vsub.f32 0.0, %v1213
  %v1370 = vsub.f32 0.0, %v1218
  %v1371 = vsub.f32 0.0, %v1221
  %v1372 = vsub.f32 0.0, %v1226
  %v1373 = vsub.f32 0.0, %v1229
  %v1374 = vsub.f32 0.0, %v1234
  %v1375 = vsub.f32 0.0, %v1237
  %v1376 = vsub.f32 0.0, %v1242
  %v1377 = vsub.f32 0.0, %v1245
  %v1378 = vsub.f32 0.0, %v1250
  %v1379 = vsub.f32 0.0, %v1253
  %v1380 = vsub.f32 0.0, %v1258
  %v1381 = vsub.f32 0.0, %v1261
  %v1382 = vsub.f32 0.0, %v1266
  %v1383 = vsub.f32 0.0, %v1269
  %v1384 = vsub.f32 0.0, %v1274
  %v1385 = vsub.f32 0.0, %v1277
  %v1386 = vsub.f32 0.0, %v1282
  %v1387 = vsub.f32 0.0, %v1285
  %v1388 = vsub.f32 0.0, %v1290
  %v1389 = vsub.f32 0.0, %v1293
  %v1390 = vsub.f32 0.0, %v1298
  %v1391 = vsub.f32 0.0, %v1301
  %v1392 = vsub.f32 0.0, %v1306
  %v1393 = vsub.f32 0.0, %v1309
  %v1394 = vsub.f32 0.0, %v1314
  %v1395 = vsub.f32 0.0, %v1317
  %v1396 = vsub.f32 0.0, %v1322
  %v1397 = vsub.f32 0.0, %v1325
  %v1398 = vsub.f32 0.0, %v1330
  %v1399 = vsub.f32 0.0, %v1333
  %v1400 = vmul.f32 %v1336, 1.442695
  %v1401 = vpow.pop %v1400
  %v1402 = vmul.f32 %v1337, 1.442695
  %v1403 = vpow.pop %v1402
  %v1404 = vmul.f32 %v1338, 1.442695
  %v1405 = vpow.pop %v1404
  %v1406 = vmul.f32 %v1339, 1.442695
  %v1407 = vpow.pop %v1406
  %v1408 = vmul.f32 %v1340, 1.442695
  %v1409 = vpow.pop %v1408
  %v1410 = vmul.f32 %v1341, 1.442695
  %v1411 = vpow.pop %v1410
  %v1412 = vmul.f32 %v1342, 1.442695
  %v1413 = vpow.pop %v1412
  %v1414 = vmul.f32 %v1343, 1.442695
  %v1415 = vpow.pop %v1414
  %v1416 = vmul.f32 %v1344, 1.442695
  %v1417 = vpow.pop %v1416
  %v1418 = vmul.f32 %v1345, 1.442695
  %v1419 = vpow.pop %v1418
  %v1420 = vmul.f32 %v1346, 1.442695
  %v1421 = vpow.pop %v1420
  %v1422 = vmul.f32 %v1347, 1.442695
  %v1423 = vpow.pop %v1422
  %v1424 = vmul.f32 %v1348, 1.442695
  %v1425 = vpow.pop %v1424
  %v1426 = vmul.f32 %v1349, 1.442695
  %v1427 = vpow.pop %v1426
  %v1428 = vmul.f32 %v1350, 1.442695
  %v1429 = vpow.pop %v1428
  %v1430 = vmul.f32 %v1351, 1.442695
  %v1431 = vpow.pop %v1430
  %v1432 = vmul.f32 %v1352, 1.442695
  %v1433 = vpow.pop %v1432
  %v1434 = vmul.f32 %v1353, 1.442695
  %v1435 = vpow.pop %v1434
  %v1436 = vmul.f32 %v1354, 1.442695
  %v1437 = vpow.pop %v1436
  %v1438 = vmul.f32 %v1355, 1.442695
  %v1439 = vpow.pop %v1438
  %v1440 = vmul.f32 %v1356, 1.442695
  %v1441 = vpow.pop %v1440
  %v1442 = vmul.f32 %v1357, 1.442695
  %v1443 = vpow.pop %v1442
  %v1444 = vmul.f32 %v1358, 1.442695
  %v1445 = vpow.pop %v1444
  %v1446 = vmul.f32 %v1359, 1.442695
  %v1447 = vpow.pop %v1446
  %v1448 = vmul.f32 %v1360, 1.442695
  %v1449 = vpow.pop %v1448
  %v1450 = vmul.f32 %v1361, 1.442695
  %v1451 = vpow.pop %v1450
  %v1452 = vmul.f32 %v1362, 1.442695
  %v1453 = vpow.pop %v1452
  %v1454 = vmul.f32 %v1363, 1.442695
  %v1455 = vpow.pop %v1454
  %v1456 = vmul.f32 %v1364, 1.442695
  %v1457 = vpow.pop %v1456
  %v1458 = vmul.f32 %v1365, 1.442695
  %v1459 = vpow.pop %v1458
  %v1460 = vmul.f32 %v1366, 1.442695
  %v1461 = vpow.pop %v1460
  %v1462 = vmul.f32 %v1367, 1.442695
  %v1463 = vpow.pop %v1462
  %v1464 = vmul.f32 %v1368, 1.442695
  %v1465 = vpow.pop %v1464
  %v1466 = vmul.f32 %v1369, 1.442695
  %v1467 = vpow.pop %v1466
  %v1468 = vmul.f32 %v1370, 1.442695
  %v1469 = vpow.pop %v1468
  %v1470 = vmul.f32 %v1371, 1.442695
  %v1471 = vpow.pop %v1470
  %v1472 = vmul.f32 %v1372, 1.442695
  %v1473 = vpow.pop %v1472
  %v1474 = vmul.f32 %v1373, 1.442695
  %v1475 = vpow.pop %v1474
  %v1476 = vmul.f32 %v1374, 1.442695
  %v1477 = vpow.pop %v1476
  %v1478 = vmul.f32 %v1375, 1.442695
  %v1479 = vpow.pop %v1478
  %v1480 = vmul.f32 %v1376, 1.442695
  %v1481 = vpow.pop %v1480
  %v1482 = vmul.f32 %v1377, 1.442695
  %v1483 = vpow.pop %v1482
  %v1484 = vmul.f32 %v1378, 1.442695
  %v1485 = vpow.pop %v1484
  %v1486 = vmul.f32 %v1379, 1.442695
  %v1487 = vpow.pop %v1486
  %v1488 = vmul.f32 %v1380, 1.442695
  %v1489 = vpow.pop %v1488
  %v1490 = vmul.f32 %v1381, 1.442695
  %v1491 = vpow.pop %v1490
  %v1492 = vmul.f32 %v1382, 1.442695
  %v1493 = vpow.pop %v1492
  %v1494 = vmul.f32 %v1383, 1.442695
  %v1495 = vpow.pop %v1494
  %v1496 = vmul.f32 %v1384, 1.442695
  %v1497 = vpow.pop %v1496
  %v1498 = vmul.f32 %v1385, 1.442695
  %v1499 = vpow.pop %v1498
  %v1500 = vmul.f32 %v1386, 1.442695
  %v1501 = vpow.pop %v1500
  %v1502 = vmul.f32 %v1387, 1.442695
  %v1503 = vpow.pop %v1502
  %v1504 = vmul.f32 %v1388, 1.442695
  %v1505 = vpow.pop %v1504
  %v1506 = vmul.f32 %v1389, 1.442695
  %v1507 = vpow.pop %v1506
  %v1508 = vmul.f32 %v1390, 1.442695
  %v1509 = vpow.pop %v1508
  %v1510 = vmul.f32 %v1391, 1.442695
  %v1511 = vpow.pop %v1510
  %v1512 = vmul.f32 %v1392, 1.442695
  %v1513 = vpow.pop %v1512
  %v1514 = vmul.f32 %v1393, 1.442695
  %v1515 = vpow.pop %v1514
  %v1516 = vmul.f32 %v1394, 1.442695
  %v1517 = vpow.pop %v1516
  %v1518 = vmul.f32 %v1395, 1.442695
  %v1519 = vpow.pop %v1518
  %v1520 = vmul.f32 %v1396, 1.442695
  %v1521 = vpow.pop %v1520
  %v1522 = vmul.f32 %v1397, 1.442695
  %v1523 = vpow.pop %v1522
  %v1524 = vmul.f32 %v1398, 1.442695
  %v1525 = vpow.pop %v1524
  %v1526 = vmul.f32 %v1399, 1.442695
  %v1527 = vpow.pop %v1526
  %v1528 = vadd.f32 %v1401, 1.0
  %v1529 = vadd.f32 %v1403, 1.0
  %v1530 = vadd.f32 %v1405, 1.0
  %v1531 = vadd.f32 %v1407, 1.0
  %v1532 = vadd.f32 %v1409, 1.0
  %v1533 = vadd.f32 %v1411, 1.0
  %v1534 = vadd.f32 %v1413, 1.0
  %v1535 = vadd.f32 %v1415, 1.0
  %v1536 = vadd.f32 %v1417, 1.0
  %v1537 = vadd.f32 %v1419, 1.0
  %v1538 = vadd.f32 %v1421, 1.0
  %v1539 = vadd.f32 %v1423, 1.0
  %v1540 = vadd.f32 %v1425, 1.0
  %v1541 = vadd.f32 %v1427, 1.0
  %v1542 = vadd.f32 %v1429, 1.0
  %v1543 = vadd.f32 %v1431, 1.0
  %v1544 = vadd.f32 %v1433, 1.0
  %v1545 = vadd.f32 %v1435, 1.0
  %v1546 = vadd.f32 %v1437, 1.0
  %v1547 = vadd.f32 %v1439, 1.0
  %v1548 = vadd.f32 %v1441, 1.0
  %v1549 = vadd.f32 %v1443, 1.0
  %v1550 = vadd.f32 %v1445, 1.0
  %v1551 = vadd.f32 %v1447, 1.0
  %v1552 = vadd.f32 %v1449, 1.0
  %v1553 = vadd.f32 %v1451, 1.0
  %v1554 = vadd.f32 %v1453, 1.0
  %v1555 = vadd.f32 %v1455, 1.0
  %v1556 = vadd.f32 %v1457, 1.0
  %v1557 = vadd.f32 %v1459, 1.0
  %v1558 = vadd.f32 %v1461, 1.0
  %v1559 = vadd.f32 %v1463, 1.0
  %v1560 = vadd.f32 %v1465, 1.0
  %v1561 = vadd.f32 %v1467, 1.0
  %v1562 = vadd.f32 %v1469, 1.0
  %v1563 = vadd.f32 %v1471, 1.0
  %v1564 = vadd.f32 %v1473, 1.0
  %v1565 = vadd.f32 %v1475, 1.0
  %v1566 = vadd.f32 %v1477, 1.0
  %v1567 = vadd.f32 %v1479, 1.0
  %v1568 = vadd.f32 %v1481, 1.0
  %v1569 = vadd.f32 %v1483, 1.0
  %v1570 = vadd.f32 %v1485, 1.0
  %v1571 = vadd.f32 %v1487, 1.0
  %v1572 = vadd.f32 %v1489, 1.0
  %v1573 = vadd.f32 %v1491, 1.0
  %v1574 = vadd.f32 %v1493, 1.0
  %v1575 = vadd.f32 %v1495, 1.0
  %v1576 = vadd.f32 %v1497, 1.0
  %v1577 = vadd.f32 %v1499, 1.0
  %v1578 = vadd.f32 %v1501, 1.0
  %v1579 = vadd.f32 %v1503, 1.0
  %v1580 = vadd.f32 %v1505, 1.0
  %v1581 = vadd.f32 %v1507, 1.0
  %v1582 = vadd.f32 %v1509, 1.0
  %v1583 = vadd.f32 %v1511, 1.0
  %v1584 = vadd.f32 %v1513, 1.0
  %v1585 = vadd.f32 %v1515, 1.0
  %v1586 = vadd.f32 %v1517, 1.0
  %v1587 = vadd.f32 %v1519, 1.0
  %v1588 = vadd.f32 %v1521, 1.0
  %v1589 = vadd.f32 %v1523, 1.0
  %v1590 = vadd.f32 %v1525, 1.0
  %v1591 = vadd.f32 %v1527, 1.0
  %v1592 = vrcp.pop %v1528
  %v1593 = vrcp.pop %v1529
  %v1594 = vrcp.pop %v1530
  %v1595 = vrcp.pop %v1531
  %v1596 = vrcp.pop %v1532
  %v1597 = vrcp.pop %v1533
  %v1598 = vrcp.pop %v1534
  %v1599 = vrcp.pop %v1535
  %v1600 = vrcp.pop %v1536
  %v1601 = vrcp.pop %v1537
  %v1602 = vrcp.pop %v1538
  %v1603 = vrcp.pop %v1539
  %v1604 = vrcp.pop %v1540
  %v1605 = vrcp.pop %v1541
  %v1606 = vrcp.pop %v1542
  %v1607 = vrcp.pop %v1543
  %v1608 = vrcp.pop %v1544
  %v1609 = vrcp.pop %v1545
  %v1610 = vrcp.pop %v1546
  %v1611 = vrcp.pop %v1547
  %v1612 = vrcp.pop %v1548
  %v1613 = vrcp.pop %v1549
  %v1614 = vrcp.pop %v1550
  %v1615 = vrcp.pop %v1551
  %v1616 = vrcp.pop %v1552
  %v1617 = vrcp.pop %v1553
  %v1618 = vrcp.pop %v1554
  %v1619 = vrcp.pop %v1555
  %v1620 = vrcp.pop %v1556
  %v1621 = vrcp.pop %v1557
  %v1622 = vrcp.pop %v1558
  %v1623 = vrcp.pop %v1559
  %v1624 = vrcp.pop %v1560
  %v1625 = vrcp.pop %v1561
  %v1626 = vrcp.pop %v1562
  %v1627 = vrcp.pop %v1563
  %v1628 = vrcp.pop %v1564
  %v1629 = vrcp.pop %v1565
  %v1630 = vrcp.pop %v1566
  %v1631 = vrcp.pop %v1567
  %v1632 = vrcp.pop %v1568
  %v1633 = vrcp.pop %v1569
  %v1634 = vrcp.pop %v1570
  %v1635 = vrcp.pop %v1571
  %v1636 = vrcp.pop %v1572
  %v1637 = vrcp.pop %v1573
  %v1638 = vrcp.pop %v1574
  %v1639 = vrcp.pop %v1575
  %v1640 = vrcp.pop %v1576
  %v1641 = vrcp.pop %v1577
  %v1642 = vrcp.pop %v1578
  %v1643 = vrcp.pop %v1579
  %v1644 = vrcp.pop %v1580
  %v1645 = vrcp.pop %v1581
  %v1646 = vrcp.pop %v1582
  %v1647 = vrcp.pop %v1583
  %v1648 = vrcp.pop %v1584
  %v1649 = vrcp.pop %v1585
  %v1650 = vrcp.pop %v1586
  %v1651 = vrcp.pop %v1587
  %v1652 = vrcp.pop %v1588
  %v1653 = vrcp.pop %v1589
  %v1654 = vrcp.pop %v1590
  %v1655 = vrcp.pop %v1591
  %v1656 = vmul.f32 %v1082, %v1592
  %v1657 = vmul.f32 %v1085, %v1593
  %v1658 = vmul.f32 %v1090, %v1594
  %v1659 = vmul.f32 %v1093, %v1595
  %v1660 = vmul.f32 %v1098, %v1596
  %v1661 = vmul.f32 %v1101, %v1597
  %v1662 = vmul.f32 %v1106, %v1598
  %v1663 = vmul.f32 %v1109, %v1599
  %v1664 = vmul.f32 %v1114, %v1600
  %v1665 = vmul.f32 %v1117, %v1601
  %v1666 = vmul.f32 %v1122, %v1602
  %v1667 = vmul.f32 %v1125, %v1603
  %v1668 = vmul.f32 %v1130, %v1604
  %v1669 = vmul.f32 %v1133, %v1605
  %v1670 = vmul.f32 %v1138, %v1606
  %v1671 = vmul.f32 %v1141, %v1607
  %v1672 = vmul.f32 %v1146, %v1608
  %v1673 = vmul.f32 %v1149, %v1609
  %v1674 = vmul.f32 %v1154, %v1610
  %v1675 = vmul.f32 %v1157, %v1611
  %v1676 = vmul.f32 %v1162, %v1612
  %v1677 = vmul.f32 %v1165, %v1613
  %v1678 = vmul.f32 %v1170, %v1614
  %v1679 = vmul.f32 %v1173, %v1615
  %v1680 = vmul.f32 %v1178, %v1616
  %v1681 = vmul.f32 %v1181, %v1617
  %v1682 = vmul.f32 %v1186, %v1618
  %v1683 = vmul.f32 %v1189, %v1619
  %v1684 = vmul.f32 %v1194, %v1620
  %v1685 = vmul.f32 %v1197, %v1621
  %v1686 = vmul.f32 %v1202, %v1622
  %v1687 = vmul.f32 %v1205, %v1623
  %v1688 = vmul.f32 %v1210, %v1624
  %v1689 = vmul.f32 %v1213, %v1625
  %v1690 = vmul.f32 %v1218, %v1626
  %v1691 = vmul.f32 %v1221, %v1627
  %v1692 = vmul.f32 %v1226, %v1628
  %v1693 = vmul.f32 %v1229, %v1629
  %v1694 = vmul.f32 %v1234, %v1630
  %v1695 = vmul.f32 %v1237, %v1631
  %v1696 = vmul.f32 %v1242, %v1632
  %v1697 = vmul.f32 %v1245, %v1633
  %v1698 = vmul.f32 %v1250, %v1634
  %v1699 = vmul.f32 %v1253, %v1635
  %v1700 = vmul.f32 %v1258, %v1636
  %v1701 = vmul.f32 %v1261, %v1637
  %v1702 = vmul.f32 %v1266, %v1638
  %v1703 = vmul.f32 %v1269, %v1639
  %v1704 = vmul.f32 %v1274, %v1640
  %v1705 = vmul.f32 %v1277, %v1641
  %v1706 = vmul.f32 %v1282, %v1642
  %v1707 = vmul.f32 %v1285, %v1643
  %v1708 = vmul.f32 %v1290, %v1644
  %v1709 = vmul.f32 %v1293, %v1645
  %v1710 = vmul.f32 %v1298, %v1646
  %v1711 = vmul.f32 %v1301, %v1647
  %v1712 = vmul.f32 %v1306, %v1648
  %v1713 = vmul.f32 %v1309, %v1649
  %v1714 = vmul.f32 %v1314, %v1650
  %v1715 = vmul.f32 %v1317, %v1651
  %v1716 = vmul.f32 %v1322, %v1652
  %v1717 = vmul.f32 %v1325, %v1653
  %v1718 = vmul.f32 %v1330, %v1654
  %v1719 = vmul.f32 %v1333, %v1655
  %v1720 = vpack.c.bf16 %v973, %v972
  %v1721 = vpack.c.bf16 %v975, %v974
  %v1722 = vpack.c.bf16 %v977, %v976
  %v1723 = vpack.c.bf16 %v979, %v978
  %v1724 = vpack.c.bf16 %v981, %v980
  %v1725 = vpack.c.bf16 %v983, %v982
  %v1726 = vpack.c.bf16 %v985, %v984
  %v1727 = vpack.c.bf16 %v987, %v986
  %v1728 = vpack.c.bf16 %v989, %v988
  %v1729 = vpack.c.bf16 %v991, %v990
  %v1730 = vpack.c.bf16 %v993, %v992
  %v1731 = vpack.c.bf16 %v995, %v994
  %v1732 = vpack.c.bf16 %v997, %v996
  %v1733 = vpack.c.bf16 %v999, %v998
  %v1734 = vpack.c.bf16 %v1001, %v1000
  %v1735 = vpack.c.bf16 %v1003, %v1002
  %v1736 = vpack.c.bf16 %v1005, %v1004
  %v1737 = vpack.c.bf16 %v1007, %v1006
  %v1738 = vpack.c.bf16 %v1009, %v1008
  %v1739 = vpack.c.bf16 %v1011, %v1010
  %v1740 = vpack.c.bf16 %v1013, %v1012
  %v1741 = vpack.c.bf16 %v1015, %v1014
  %v1742 = vpack.c.bf16 %v1017, %v1016
  %v1743 = vpack.c.bf16 %v1019, %v1018
  %v1744 = vpack.c.bf16 %v1021, %v1020
  %v1745 = vpack.c.bf16 %v1023, %v1022
  %v1746 = vpack.c.bf16 %v1025, %v1024
  %v1747 = vpack.c.bf16 %v1027, %v1026
  %v1748 = vpack.c.bf16 %v1029, %v1028
  %v1749 = vpack.c.bf16 %v1031, %v1030
  %v1750 = vpack.c.bf16 %v1033, %v1032
  %v1751 = vpack.c.bf16 %v1035, %v1034
  %v1784 = vunpack.c.l.b16 %v1720
  %v1785 = vunpack.c.h.b16 %v1720
  %v1786 = vunpack.c.l.b16 %v1721
  %v1787 = vunpack.c.h.b16 %v1721
  %v1788 = vunpack.c.l.b16 %v1722
  %v1789 = vunpack.c.h.b16 %v1722
  %v1790 = vunpack.c.l.b16 %v1723
  %v1791 = vunpack.c.h.b16 %v1723
  %v1792 = vunpack.c.l.b16 %v1724
  %v1793 = vunpack.c.h.b16 %v1724
  %v1794 = vunpack.c.l.b16 %v1725
  %v1795 = vunpack.c.h.b16 %v1725
  %v1796 = vunpack.c.l.b16 %v1726
  %v1797 = vunpack.c.h.b16 %v1726
  %v1798 = vunpack.c.l.b16 %v1727
  %v1799 = vunpack.c.h.b16 %v1727
  %v1800 = vunpack.c.l.b16 %v1728
  %v1801 = vunpack.c.h.b16 %v1728
  %v1802 = vunpack.c.l.b16 %v1729
  %v1803 = vunpack.c.h.b16 %v1729
  %v1804 = vunpack.c.l.b16 %v1730
  %v1805 = vunpack.c.h.b16 %v1730
  %v1806 = vunpack.c.l.b16 %v1731
  %v1807 = vunpack.c.h.b16 %v1731
  %v1808 = vunpack.c.l.b16 %v1732
  %v1809 = vunpack.c.h.b16 %v1732
  %v1810 = vunpack.c.l.b16 %v1733
  %v1811 = vunpack.c.h.b16 %v1733
  %v1812 = vunpack.c.l.b16 %v1734
  %v1813 = vunpack.c.h.b16 %v1734
  %v1814 = vunpack.c.l.b16 %v1735
  %v1815 = vunpack.c.h.b16 %v1735
  %v1816 = vunpack.c.l.b16 %v1736
  %v1817 = vunpack.c.h.b16 %v1736
  %v1818 = vunpack.c.l.b16 %v1737
  %v1819 = vunpack.c.h.b16 %v1737
  %v1820 = vunpack.c.l.b16 %v1738
  %v1821 = vunpack.c.h.b16 %v1738
  %v1822 = vunpack.c.l.b16 %v1739
  %v1823 = vunpack.c.h.b16 %v1739
  %v1824 = vunpack.c.l.b16 %v1740
  %v1825 = vunpack.c.h.b16 %v1740
  %v1826 = vunpack.c.l.b16 %v1741
  %v1827 = vunpack.c.h.b16 %v1741
  %v1828 = vunpack.c.l.b16 %v1742
  %v1829 = vunpack.c.h.b16 %v1742
  %v1830 = vunpack.c.l.b16 %v1743
  %v1831 = vunpack.c.h.b16 %v1743
  %v1832 = vunpack.c.l.b16 %v1744
  %v1833 = vunpack.c.h.b16 %v1744
  %v1834 = vunpack.c.l.b16 %v1745
  %v1835 = vunpack.c.h.b16 %v1745
  %v1836 = vunpack.c.l.b16 %v1746
  %v1837 = vunpack.c.h.b16 %v1746
  %v1838 = vunpack.c.l.b16 %v1747
  %v1839 = vunpack.c.h.b16 %v1747
  %v1840 = vunpack.c.l.b16 %v1748
  %v1841 = vunpack.c.h.b16 %v1748
  %v1842 = vunpack.c.l.b16 %v1749
  %v1843 = vunpack.c.h.b16 %v1749
  %v1844 = vunpack.c.l.b16 %v1750
  %v1845 = vunpack.c.h.b16 %v1750
  %v1846 = vunpack.c.l.b16 %v1751
  %v1847 = vunpack.c.h.b16 %v1751
  %v1848 = vpack.c.b16 %v1784, %v1784
  %v1849 = vpack.c.b16 %v1785, %v1785
  %v1850 = vpack.c.b16 %v1786, %v1786
  %v1851 = vpack.c.b16 %v1787, %v1787
  %v1852 = vpack.c.b16 %v1788, %v1788
  %v1853 = vpack.c.b16 %v1789, %v1789
  %v1854 = vpack.c.b16 %v1790, %v1790
  %v1855 = vpack.c.b16 %v1791, %v1791
  %v1856 = vpack.c.b16 %v1792, %v1792
  %v1857 = vpack.c.b16 %v1793, %v1793
  %v1858 = vpack.c.b16 %v1794, %v1794
  %v1859 = vpack.c.b16 %v1795, %v1795
  %v1860 = vpack.c.b16 %v1796, %v1796
  %v1861 = vpack.c.b16 %v1797, %v1797
  %v1862 = vpack.c.b16 %v1798, %v1798
  %v1863 = vpack.c.b16 %v1799, %v1799
  %v1864 = vpack.c.b16 %v1800, %v1800
  %v1865 = vpack.c.b16 %v1801, %v1801
  %v1866 = vpack.c.b16 %v1802, %v1802
  %v1867 = vpack.c.b16 %v1803, %v1803
  %v1868 = vpack.c.b16 %v1804, %v1804
  %v1869 = vpack.c.b16 %v1805, %v1805
  %v1870 = vpack.c.b16 %v1806, %v1806
  %v1871 = vpack.c.b16 %v1807, %v1807
  %v1872 = vpack.c.b16 %v1808, %v1808
  %v1873 = vpack.c.b16 %v1809, %v1809
  %v1874 = vpack.c.b16 %v1810, %v1810
  %v1875 = vpack.c.b16 %v1811, %v1811
  %v1876 = vpack.c.b16 %v1812, %v1812
  %v1877 = vpack.c.b16 %v1813, %v1813
  %v1878 = vpack.c.b16 %v1814, %v1814
  %v1879 = vpack.c.b16 %v1815, %v1815
  %v1880 = vpack.c.b16 %v1816, %v1816
  %v1881 = vpack.c.b16 %v1817, %v1817
  %v1882 = vpack.c.b16 %v1818, %v1818
  %v1883 = vpack.c.b16 %v1819, %v1819
  %v1884 = vpack.c.b16 %v1820, %v1820
  %v1885 = vpack.c.b16 %v1821, %v1821
  %v1886 = vpack.c.b16 %v1822, %v1822
  %v1887 = vpack.c.b16 %v1823, %v1823
  %v1888 = vpack.c.b16 %v1824, %v1824
  %v1889 = vpack.c.b16 %v1825, %v1825
  %v1890 = vpack.c.b16 %v1826, %v1826
  %v1891 = vpack.c.b16 %v1827, %v1827
  %v1892 = vpack.c.b16 %v1828, %v1828
  %v1893 = vpack.c.b16 %v1829, %v1829
  %v1894 = vpack.c.b16 %v1830, %v1830
  %v1895 = vpack.c.b16 %v1831, %v1831
  %v1896 = vpack.c.b16 %v1832, %v1832
  %v1897 = vpack.c.b16 %v1833, %v1833
  %v1898 = vpack.c.b16 %v1834, %v1834
  %v1899 = vpack.c.b16 %v1835, %v1835
  %v1900 = vpack.c.b16 %v1836, %v1836
  %v1901 = vpack.c.b16 %v1837, %v1837
  %v1902 = vpack.c.b16 %v1838, %v1838
  %v1903 = vpack.c.b16 %v1839, %v1839
  %v1904 = vpack.c.b16 %v1840, %v1840
  %v1905 = vpack.c.b16 %v1841, %v1841
  %v1906 = vpack.c.b16 %v1842, %v1842
  %v1907 = vpack.c.b16 %v1843, %v1843
  %v1908 = vpack.c.b16 %v1844, %v1844
  %v1909 = vpack.c.b16 %v1845, %v1845
  %v1910 = vpack.c.b16 %v1846, %v1846
  %v1911 = vpack.c.b16 %v1847, %v1847
  %vm1976 = vcmask 11264
  %1977 = vst.msk [vmem:[%s7] sm:$0xf] %vm1976, %v1848
  %1978 = vst.msk [vmem:[%s7 + $0x4] sm:$0xf] %vm1976, %v1849
  %1979 = vst.msk [vmem:[%s7 + $0x8] sm:$0xf] %vm1976, %v1850
  %1980 = vst.msk [vmem:[%s7 + $0xc] sm:$0xf] %vm1976, %v1851
  %1981 = vst.msk [vmem:[%s7 + $0x10] sm:$0xf] %vm1976, %v1852
  %1982 = vst.msk [vmem:[%s7 + $0x14] sm:$0xf] %vm1976, %v1853
  %1983 = vst.msk [vmem:[%s7 + $0x18] sm:$0xf] %vm1976, %v1854
  %1984 = vst.msk [vmem:[%s7 + $0x1c] sm:$0xf] %vm1976, %v1855
  %1985 = vst.msk [vmem:[%s7 + $0x20] sm:$0xf] %vm1976, %v1856
  %1986 = vst.msk [vmem:[%s7 + $0x24] sm:$0xf] %vm1976, %v1857
  %1987 = vst.msk [vmem:[%s7 + $0x28] sm:$0xf] %vm1976, %v1858
  %1988 = vst.msk [vmem:[%s7 + $0x2c] sm:$0xf] %vm1976, %v1859
  %1989 = vst.msk [vmem:[%s7 + $0x30] sm:$0xf] %vm1976, %v1860
  %1990 = vst.msk [vmem:[%s7 + $0x34] sm:$0xf] %vm1976, %v1861
  %1991 = vst.msk [vmem:[%s7 + $0x38] sm:$0xf] %vm1976, %v1862
  %1992 = vst.msk [vmem:[%s7 + $0x3c] sm:$0xf] %vm1976, %v1863
  %1993 = vst.msk [vmem:[%s7 + $0x40] sm:$0xf] %vm1976, %v1864
  %1994 = vst.msk [vmem:[%s7 + $0x44] sm:$0xf] %vm1976, %v1865
  %1995 = vst.msk [vmem:[%s7 + $0x48] sm:$0xf] %vm1976, %v1866
  %1996 = vst.msk [vmem:[%s7 + $0x4c] sm:$0xf] %vm1976, %v1867
  %1997 = vst.msk [vmem:[%s7 + $0x50] sm:$0xf] %vm1976, %v1868
  %1998 = vst.msk [vmem:[%s7 + $0x54] sm:$0xf] %vm1976, %v1869
  %1999 = vst.msk [vmem:[%s7 + $0x58] sm:$0xf] %vm1976, %v1870
  %2000 = vst.msk [vmem:[%s7 + $0x5c] sm:$0xf] %vm1976, %v1871
  %2001 = vst.msk [vmem:[%s7 + $0x60] sm:$0xf] %vm1976, %v1872
  %2002 = vst.msk [vmem:[%s7 + $0x64] sm:$0xf] %vm1976, %v1873
  %2003 = vst.msk [vmem:[%s7 + $0x68] sm:$0xf] %vm1976, %v1874
  %2004 = vst.msk [vmem:[%s7 + $0x6c] sm:$0xf] %vm1976, %v1875
  %2005 = vst.msk [vmem:[%s7 + $0x70] sm:$0xf] %vm1976, %v1876
  %2006 = vst.msk [vmem:[%s7 + $0x74] sm:$0xf] %vm1976, %v1877
  %2007 = vst.msk [vmem:[%s7 + $0x78] sm:$0xf] %vm1976, %v1878
  %2008 = vst.msk [vmem:[%s7 + $0x7c] sm:$0xf] %vm1976, %v1879
  %2009 = vst.msk [vmem:[%s7 + $0x80] sm:$0xf] %vm1976, %v1880
  %2010 = vst.msk [vmem:[%s7 + $0x84] sm:$0xf] %vm1976, %v1881
  %2011 = vst.msk [vmem:[%s7 + $0x88] sm:$0xf] %vm1976, %v1882
  %2012 = vst.msk [vmem:[%s7 + $0x8c] sm:$0xf] %vm1976, %v1883
  %2013 = vst.msk [vmem:[%s7 + $0x90] sm:$0xf] %vm1976, %v1884
  %2014 = vst.msk [vmem:[%s7 + $0x94] sm:$0xf] %vm1976, %v1885
  %2015 = vst.msk [vmem:[%s7 + $0x98] sm:$0xf] %vm1976, %v1886
  %2016 = vst.msk [vmem:[%s7 + $0x9c] sm:$0xf] %vm1976, %v1887
  %2017 = vst.msk [vmem:[%s7 + $0xa0] sm:$0xf] %vm1976, %v1888
  %2018 = vst.msk [vmem:[%s7 + $0xa4] sm:$0xf] %vm1976, %v1889
  %2019 = vst.msk [vmem:[%s7 + $0xa8] sm:$0xf] %vm1976, %v1890
  %2020 = vst.msk [vmem:[%s7 + $0xac] sm:$0xf] %vm1976, %v1891
  %2021 = vst.msk [vmem:[%s7 + $0xb0] sm:$0xf] %vm1976, %v1892
  %2022 = vst.msk [vmem:[%s7 + $0xb4] sm:$0xf] %vm1976, %v1893
  %2023 = vst.msk [vmem:[%s7 + $0xb8] sm:$0xf] %vm1976, %v1894
  %2024 = vst.msk [vmem:[%s7 + $0xbc] sm:$0xf] %vm1976, %v1895
  %2025 = vst.msk [vmem:[%s7 + $0xc0] sm:$0xf] %vm1976, %v1896
  %2026 = vst.msk [vmem:[%s7 + $0xc4] sm:$0xf] %vm1976, %v1897
  %2027 = vst.msk [vmem:[%s7 + $0xc8] sm:$0xf] %vm1976, %v1898
  %2028 = vst.msk [vmem:[%s7 + $0xcc] sm:$0xf] %vm1976, %v1899
  %2029 = vst.msk [vmem:[%s7 + $0xd0] sm:$0xf] %vm1976, %v1900
  %2030 = vst.msk [vmem:[%s7 + $0xd4] sm:$0xf] %vm1976, %v1901
  %2031 = vst.msk [vmem:[%s7 + $0xd8] sm:$0xf] %vm1976, %v1902
  %2032 = vst.msk [vmem:[%s7 + $0xdc] sm:$0xf] %vm1976, %v1903
  %2033 = vst.msk [vmem:[%s7 + $0xe0] sm:$0xf] %vm1976, %v1904
  %2034 = vst.msk [vmem:[%s7 + $0xe4] sm:$0xf] %vm1976, %v1905
  %2035 = vst.msk [vmem:[%s7 + $0xe8] sm:$0xf] %vm1976, %v1906
  %2036 = vst.msk [vmem:[%s7 + $0xec] sm:$0xf] %vm1976, %v1907
  %2037 = vst.msk [vmem:[%s7 + $0xf0] sm:$0xf] %vm1976, %v1908
  %2038 = vst.msk [vmem:[%s7 + $0xf4] sm:$0xf] %vm1976, %v1909
  %2039 = vst.msk [vmem:[%s7 + $0xf8] sm:$0xf] %vm1976, %v1910
  %2040 = vst.msk [vmem:[%s7 + $0xfc] sm:$0xf] %vm1976, %v1911
  %v2041 = vpack.c.bf16 %v1657, %v1656
  %v2042 = vpack.c.bf16 %v1659, %v1658
  %v2043 = vpack.c.bf16 %v1661, %v1660
  %v2044 = vpack.c.bf16 %v1663, %v1662
  %v2045 = vpack.c.bf16 %v1665, %v1664
  %v2046 = vpack.c.bf16 %v1667, %v1666
  %v2047 = vpack.c.bf16 %v1669, %v1668
  %v2048 = vpack.c.bf16 %v1671, %v1670
  %v2049 = vpack.c.bf16 %v1673, %v1672
  %v2050 = vpack.c.bf16 %v1675, %v1674
  %v2051 = vpack.c.bf16 %v1677, %v1676
  %v2052 = vpack.c.bf16 %v1679, %v1678
  %v2053 = vpack.c.bf16 %v1681, %v1680
  %v2054 = vpack.c.bf16 %v1683, %v1682
  %v2055 = vpack.c.bf16 %v1685, %v1684
  %v2056 = vpack.c.bf16 %v1687, %v1686
  %v2057 = vpack.c.bf16 %v1689, %v1688
  %v2058 = vpack.c.bf16 %v1691, %v1690
  %v2059 = vpack.c.bf16 %v1693, %v1692
  %v2060 = vpack.c.bf16 %v1695, %v1694
  %v2061 = vpack.c.bf16 %v1697, %v1696
  %v2062 = vpack.c.bf16 %v1699, %v1698
  %v2063 = vpack.c.bf16 %v1701, %v1700
  %v2064 = vpack.c.bf16 %v1703, %v1702
  %v2065 = vpack.c.bf16 %v1705, %v1704
  %v2066 = vpack.c.bf16 %v1707, %v1706
  %v2067 = vpack.c.bf16 %v1709, %v1708
  %v2068 = vpack.c.bf16 %v1711, %v1710
  %v2069 = vpack.c.bf16 %v1713, %v1712
  %v2070 = vpack.c.bf16 %v1715, %v1714
  %v2071 = vpack.c.bf16 %v1717, %v1716
  %v2072 = vpack.c.bf16 %v1719, %v1718
  %v2105 = vunpack.c.l.b16 %v2041
  %v2106 = vunpack.c.h.b16 %v2041
  %v2107 = vunpack.c.l.b16 %v2042
  %v2108 = vunpack.c.h.b16 %v2042
  %v2109 = vunpack.c.l.b16 %v2043
  %v2110 = vunpack.c.h.b16 %v2043
  %v2111 = vunpack.c.l.b16 %v2044
  %v2112 = vunpack.c.h.b16 %v2044
  %v2113 = vunpack.c.l.b16 %v2045
  %v2114 = vunpack.c.h.b16 %v2045
  %v2115 = vunpack.c.l.b16 %v2046
  %v2116 = vunpack.c.h.b16 %v2046
  %v2117 = vunpack.c.l.b16 %v2047
  %v2118 = vunpack.c.h.b16 %v2047
  %v2119 = vunpack.c.l.b16 %v2048
  %v2120 = vunpack.c.h.b16 %v2048
  %v2121 = vunpack.c.l.b16 %v2049
  %v2122 = vunpack.c.h.b16 %v2049
  %v2123 = vunpack.c.l.b16 %v2050
  %v2124 = vunpack.c.h.b16 %v2050
  %v2125 = vunpack.c.l.b16 %v2051
  %v2126 = vunpack.c.h.b16 %v2051
  %v2127 = vunpack.c.l.b16 %v2052
  %v2128 = vunpack.c.h.b16 %v2052
  %v2129 = vunpack.c.l.b16 %v2053
  %v2130 = vunpack.c.h.b16 %v2053
  %v2131 = vunpack.c.l.b16 %v2054
  %v2132 = vunpack.c.h.b16 %v2054
  %v2133 = vunpack.c.l.b16 %v2055
  %v2134 = vunpack.c.h.b16 %v2055
  %v2135 = vunpack.c.l.b16 %v2056
  %v2136 = vunpack.c.h.b16 %v2056
  %v2137 = vunpack.c.l.b16 %v2057
  %v2138 = vunpack.c.h.b16 %v2057
  %v2139 = vunpack.c.l.b16 %v2058
  %v2140 = vunpack.c.h.b16 %v2058
  %v2141 = vunpack.c.l.b16 %v2059
  %v2142 = vunpack.c.h.b16 %v2059
  %v2143 = vunpack.c.l.b16 %v2060
  %v2144 = vunpack.c.h.b16 %v2060
  %v2145 = vunpack.c.l.b16 %v2061
  %v2146 = vunpack.c.h.b16 %v2061
  %v2147 = vunpack.c.l.b16 %v2062
  %v2148 = vunpack.c.h.b16 %v2062
  %v2149 = vunpack.c.l.b16 %v2063
  %v2150 = vunpack.c.h.b16 %v2063
  %v2151 = vunpack.c.l.b16 %v2064
  %v2152 = vunpack.c.h.b16 %v2064
  %v2153 = vunpack.c.l.b16 %v2065
  %v2154 = vunpack.c.h.b16 %v2065
  %v2155 = vunpack.c.l.b16 %v2066
  %v2156 = vunpack.c.h.b16 %v2066
  %v2157 = vunpack.c.l.b16 %v2067
  %v2158 = vunpack.c.h.b16 %v2067
  %v2159 = vunpack.c.l.b16 %v2068
  %v2160 = vunpack.c.h.b16 %v2068
  %v2161 = vunpack.c.l.b16 %v2069
  %v2162 = vunpack.c.h.b16 %v2069
  %v2163 = vunpack.c.l.b16 %v2070
  %v2164 = vunpack.c.h.b16 %v2070
  %v2165 = vunpack.c.l.b16 %v2071
  %v2166 = vunpack.c.h.b16 %v2071
  %v2167 = vunpack.c.l.b16 %v2072
  %v2168 = vunpack.c.h.b16 %v2072
  %v2169 = vpack.c.b16 %v2105, %v2105
  %v2170 = vpack.c.b16 %v2106, %v2106
  %v2171 = vpack.c.b16 %v2107, %v2107
  %v2172 = vpack.c.b16 %v2108, %v2108
  %v2173 = vpack.c.b16 %v2109, %v2109
  %v2174 = vpack.c.b16 %v2110, %v2110
  %v2175 = vpack.c.b16 %v2111, %v2111
  %v2176 = vpack.c.b16 %v2112, %v2112
  %v2177 = vpack.c.b16 %v2113, %v2113
  %v2178 = vpack.c.b16 %v2114, %v2114
  %v2179 = vpack.c.b16 %v2115, %v2115
  %v2180 = vpack.c.b16 %v2116, %v2116
  %v2181 = vpack.c.b16 %v2117, %v2117
  %v2182 = vpack.c.b16 %v2118, %v2118
  %v2183 = vpack.c.b16 %v2119, %v2119
  %v2184 = vpack.c.b16 %v2120, %v2120
  %v2185 = vpack.c.b16 %v2121, %v2121
  %v2186 = vpack.c.b16 %v2122, %v2122
  %v2187 = vpack.c.b16 %v2123, %v2123
  %v2188 = vpack.c.b16 %v2124, %v2124
  %v2189 = vpack.c.b16 %v2125, %v2125
  %v2190 = vpack.c.b16 %v2126, %v2126
  %v2191 = vpack.c.b16 %v2127, %v2127
  %v2192 = vpack.c.b16 %v2128, %v2128
  %v2193 = vpack.c.b16 %v2129, %v2129
  %v2194 = vpack.c.b16 %v2130, %v2130
  %v2195 = vpack.c.b16 %v2131, %v2131
  %v2196 = vpack.c.b16 %v2132, %v2132
  %v2197 = vpack.c.b16 %v2133, %v2133
  %v2198 = vpack.c.b16 %v2134, %v2134
  %v2199 = vpack.c.b16 %v2135, %v2135
  %v2200 = vpack.c.b16 %v2136, %v2136
  %v2201 = vpack.c.b16 %v2137, %v2137
  %v2202 = vpack.c.b16 %v2138, %v2138
  %v2203 = vpack.c.b16 %v2139, %v2139
  %v2204 = vpack.c.b16 %v2140, %v2140
  %v2205 = vpack.c.b16 %v2141, %v2141
  %v2206 = vpack.c.b16 %v2142, %v2142
  %v2207 = vpack.c.b16 %v2143, %v2143
  %v2208 = vpack.c.b16 %v2144, %v2144
  %v2209 = vpack.c.b16 %v2145, %v2145
  %v2210 = vpack.c.b16 %v2146, %v2146
  %v2211 = vpack.c.b16 %v2147, %v2147
  %v2212 = vpack.c.b16 %v2148, %v2148
  %v2213 = vpack.c.b16 %v2149, %v2149
  %v2214 = vpack.c.b16 %v2150, %v2150
  %v2215 = vpack.c.b16 %v2151, %v2151
  %v2216 = vpack.c.b16 %v2152, %v2152
  %v2217 = vpack.c.b16 %v2153, %v2153
  %v2218 = vpack.c.b16 %v2154, %v2154
  %v2219 = vpack.c.b16 %v2155, %v2155
  %v2220 = vpack.c.b16 %v2156, %v2156
  %v2221 = vpack.c.b16 %v2157, %v2157
  %v2222 = vpack.c.b16 %v2158, %v2158
  %v2223 = vpack.c.b16 %v2159, %v2159
  %v2224 = vpack.c.b16 %v2160, %v2160
  %v2225 = vpack.c.b16 %v2161, %v2161
  %v2226 = vpack.c.b16 %v2162, %v2162
  %v2227 = vpack.c.b16 %v2163, %v2163
  %v2228 = vpack.c.b16 %v2164, %v2164
  %v2229 = vpack.c.b16 %v2165, %v2165
  %v2230 = vpack.c.b16 %v2166, %v2166
  %v2231 = vpack.c.b16 %v2167, %v2167
  %v2232 = vpack.c.b16 %v2168, %v2168
  %2297 = vst.msk [vmem:[%s8] sm:$0xf] %vm1976, %v2169
  %2298 = vst.msk [vmem:[%s8 + $0x4] sm:$0xf] %vm1976, %v2170
  %2299 = vst.msk [vmem:[%s8 + $0x8] sm:$0xf] %vm1976, %v2171
  %2300 = vst.msk [vmem:[%s8 + $0xc] sm:$0xf] %vm1976, %v2172
  %2301 = vst.msk [vmem:[%s8 + $0x10] sm:$0xf] %vm1976, %v2173
  %2302 = vst.msk [vmem:[%s8 + $0x14] sm:$0xf] %vm1976, %v2174
  %2303 = vst.msk [vmem:[%s8 + $0x18] sm:$0xf] %vm1976, %v2175
  %2304 = vst.msk [vmem:[%s8 + $0x1c] sm:$0xf] %vm1976, %v2176
  %2305 = vst.msk [vmem:[%s8 + $0x20] sm:$0xf] %vm1976, %v2177
  %2306 = vst.msk [vmem:[%s8 + $0x24] sm:$0xf] %vm1976, %v2178
  %2307 = vst.msk [vmem:[%s8 + $0x28] sm:$0xf] %vm1976, %v2179
  %2308 = vst.msk [vmem:[%s8 + $0x2c] sm:$0xf] %vm1976, %v2180
  %2309 = vst.msk [vmem:[%s8 + $0x30] sm:$0xf] %vm1976, %v2181
  %2310 = vst.msk [vmem:[%s8 + $0x34] sm:$0xf] %vm1976, %v2182
  %2311 = vst.msk [vmem:[%s8 + $0x38] sm:$0xf] %vm1976, %v2183
  %2312 = vst.msk [vmem:[%s8 + $0x3c] sm:$0xf] %vm1976, %v2184
  %2313 = vst.msk [vmem:[%s8 + $0x40] sm:$0xf] %vm1976, %v2185
  %2314 = vst.msk [vmem:[%s8 + $0x44] sm:$0xf] %vm1976, %v2186
  %2315 = vst.msk [vmem:[%s8 + $0x48] sm:$0xf] %vm1976, %v2187
  %2316 = vst.msk [vmem:[%s8 + $0x4c] sm:$0xf] %vm1976, %v2188
  %2317 = vst.msk [vmem:[%s8 + $0x50] sm:$0xf] %vm1976, %v2189
  %2318 = vst.msk [vmem:[%s8 + $0x54] sm:$0xf] %vm1976, %v2190
  %2319 = vst.msk [vmem:[%s8 + $0x58] sm:$0xf] %vm1976, %v2191
  %2320 = vst.msk [vmem:[%s8 + $0x5c] sm:$0xf] %vm1976, %v2192
  %2321 = vst.msk [vmem:[%s8 + $0x60] sm:$0xf] %vm1976, %v2193
  %2322 = vst.msk [vmem:[%s8 + $0x64] sm:$0xf] %vm1976, %v2194
  %2323 = vst.msk [vmem:[%s8 + $0x68] sm:$0xf] %vm1976, %v2195
  %2324 = vst.msk [vmem:[%s8 + $0x6c] sm:$0xf] %vm1976, %v2196
  %2325 = vst.msk [vmem:[%s8 + $0x70] sm:$0xf] %vm1976, %v2197
  %2326 = vst.msk [vmem:[%s8 + $0x74] sm:$0xf] %vm1976, %v2198
  %2327 = vst.msk [vmem:[%s8 + $0x78] sm:$0xf] %vm1976, %v2199
  %2328 = vst.msk [vmem:[%s8 + $0x7c] sm:$0xf] %vm1976, %v2200
  %2329 = vst.msk [vmem:[%s8 + $0x80] sm:$0xf] %vm1976, %v2201
  %2330 = vst.msk [vmem:[%s8 + $0x84] sm:$0xf] %vm1976, %v2202
  %2331 = vst.msk [vmem:[%s8 + $0x88] sm:$0xf] %vm1976, %v2203
  %2332 = vst.msk [vmem:[%s8 + $0x8c] sm:$0xf] %vm1976, %v2204
  %2333 = vst.msk [vmem:[%s8 + $0x90] sm:$0xf] %vm1976, %v2205
  %2334 = vst.msk [vmem:[%s8 + $0x94] sm:$0xf] %vm1976, %v2206
  %2335 = vst.msk [vmem:[%s8 + $0x98] sm:$0xf] %vm1976, %v2207
  %2336 = vst.msk [vmem:[%s8 + $0x9c] sm:$0xf] %vm1976, %v2208
  %2337 = vst.msk [vmem:[%s8 + $0xa0] sm:$0xf] %vm1976, %v2209
  %2338 = vst.msk [vmem:[%s8 + $0xa4] sm:$0xf] %vm1976, %v2210
  %2339 = vst.msk [vmem:[%s8 + $0xa8] sm:$0xf] %vm1976, %v2211
  %2340 = vst.msk [vmem:[%s8 + $0xac] sm:$0xf] %vm1976, %v2212
  %2341 = vst.msk [vmem:[%s8 + $0xb0] sm:$0xf] %vm1976, %v2213
  %2342 = vst.msk [vmem:[%s8 + $0xb4] sm:$0xf] %vm1976, %v2214
  %2343 = vst.msk [vmem:[%s8 + $0xb8] sm:$0xf] %vm1976, %v2215
  %2344 = vst.msk [vmem:[%s8 + $0xbc] sm:$0xf] %vm1976, %v2216
  %2345 = vst.msk [vmem:[%s8 + $0xc0] sm:$0xf] %vm1976, %v2217
  %2346 = vst.msk [vmem:[%s8 + $0xc4] sm:$0xf] %vm1976, %v2218
  %2347 = vst.msk [vmem:[%s8 + $0xc8] sm:$0xf] %vm1976, %v2219
  %2348 = vst.msk [vmem:[%s8 + $0xcc] sm:$0xf] %vm1976, %v2220
  %2349 = vst.msk [vmem:[%s8 + $0xd0] sm:$0xf] %vm1976, %v2221
  %2350 = vst.msk [vmem:[%s8 + $0xd4] sm:$0xf] %vm1976, %v2222
  %2351 = vst.msk [vmem:[%s8 + $0xd8] sm:$0xf] %vm1976, %v2223
  %2352 = vst.msk [vmem:[%s8 + $0xdc] sm:$0xf] %vm1976, %v2224
  %2353 = vst.msk [vmem:[%s8 + $0xe0] sm:$0xf] %vm1976, %v2225
  %2354 = vst.msk [vmem:[%s8 + $0xe4] sm:$0xf] %vm1976, %v2226
  %2355 = vst.msk [vmem:[%s8 + $0xe8] sm:$0xf] %vm1976, %v2227
  %2356 = vst.msk [vmem:[%s8 + $0xec] sm:$0xf] %vm1976, %v2228
  %2357 = vst.msk [vmem:[%s8 + $0xf0] sm:$0xf] %vm1976, %v2229
  %2358 = vst.msk [vmem:[%s8 + $0xf4] sm:$0xf] %vm1976, %v2230
  %2359 = vst.msk [vmem:[%s8 + $0xf8] sm:$0xf] %vm1976, %v2231
  %2360 = vst.msk [vmem:[%s8 + $0xfc] sm:$0xf] %vm1976, %v2232
  %v2361 = vld [vmem:[%s5] sm:$0x1]
  %v2362 = vld [vmem:[%s6] sm:$0x1]
  %v2364 = vlaneseq
  %v2365 = vshrl.u32 %v2364, 7
  %v2366 = vsub.s32 0, %v2365
  %v2367 = vrot.slane %v2362, %v2366
  %vm2369 = vcmask 15360
  %v2371 = vsel %vm2369, %v1720, 0
  %v2374 = vsel %vm2369, %v1721, 0
  %v2377 = vsel %vm2369, %v1722, 0
  %v2380 = vsel %vm2369, %v1723, 0
  %v2383 = vsel %vm2369, %v1724, 0
  %v2386 = vsel %vm2369, %v1725, 0
  %v2389 = vsel %vm2369, %v1726, 0
  %v2392 = vsel %vm2369, %v1727, 0
  %v2395 = vsel %vm2369, %v1728, 0
  %v2398 = vsel %vm2369, %v1729, 0
  %v2401 = vsel %vm2369, %v1730, 0
  %v2404 = vsel %vm2369, %v1731, 0
  %v2407 = vsel %vm2369, %v1732, 0
  %v2410 = vsel %vm2369, %v1733, 0
  %v2413 = vsel %vm2369, %v1734, 0
  %v2416 = vsel %vm2369, %v1735, 0
  %v2419 = vsel %vm2369, %v1736, 0
  %v2422 = vsel %vm2369, %v1737, 0
  %v2425 = vsel %vm2369, %v1738, 0
  %v2428 = vsel %vm2369, %v1739, 0
  %v2431 = vsel %vm2369, %v1740, 0
  %v2434 = vsel %vm2369, %v1741, 0
  %v2437 = vsel %vm2369, %v1742, 0
  %v2440 = vsel %vm2369, %v1743, 0
  %v2443 = vsel %vm2369, %v1744, 0
  %v2446 = vsel %vm2369, %v1745, 0
  %v2449 = vsel %vm2369, %v1746, 0
  %v2452 = vsel %vm2369, %v1747, 0
  %v2455 = vsel %vm2369, %v1748, 0
  %v2458 = vsel %vm2369, %v1749, 0
  %v2461 = vsel %vm2369, %v1750, 0
  %v2464 = vsel %vm2369, %v1751, 0
  %vm2466 = vcmask 1040384
  %v2468 = vsel %vm2466, %v2361, 0
  %2470 = vmatprep.subr.bf16.mxu0 0
  %2471 = vmatpush1.bf16.msra.mxu0 %v2468
  %2472 = vmatprep.subr.bf16.mxu0 0
  %2473 = vmatpush1.bf16.msra.mxu0 0
  %2474 = vmatprep.subr.bf16.mxu0 0
  %2475 = vmatpush1.bf16.msra.mxu0 0
  %2476 = vmatprep.subr.bf16.mxu0 0
  %2477 = vmatpush1.bf16.msra.mxu0 0
  %2478 = vmatprep.subr.bf16.mxu0 0
  %2479 = vmatpush1.bf16.msra.mxu0 0
  %2480 = vmatprep.subr.bf16.mxu0 0
  %2481 = vmatpush1.bf16.msra.mxu0 0
  %2482 = vmatprep.subr.bf16.mxu0 0
  %2483 = vmatpush1.bf16.msra.mxu0 0
  %2484 = vmatprep.subr.bf16.mxu0 0
  %2485 = vmatpush1.bf16.msra.mxu0 0
  %2486 = vmatprep.subr.bf16.mxu0 0
  %2487 = vmatpush1.bf16.msra.mxu0 0
  %2488 = vmatprep.subr.bf16.mxu0 0
  %2489 = vmatpush1.bf16.msra.mxu0 0
  %2490 = vmatprep.subr.bf16.mxu0 0
  %2491 = vmatpush1.bf16.msra.mxu0 0
  %2492 = vmatprep.subr.bf16.mxu0 0
  %2493 = vmatpush1.bf16.msra.mxu0 0
  %2494 = vmatprep.subr.bf16.mxu0 0
  %2495 = vmatpush1.bf16.msra.mxu0 0
  %2496 = vmatprep.subr.bf16.mxu0 0
  %2497 = vmatpush1.bf16.msra.mxu0 0
  %2498 = vmatprep.subr.bf16.mxu0 0
  %2499 = vmatpush1.bf16.msra.mxu0 0
  %2500 = vmatprep.subr.bf16.mxu0 0
  %2501 = vmatpush1.bf16.msra.mxu0 0
  %2502 = vmatprep.mubr.bf16.mxu0 0
  %2503 = vmatmul.mubr.bf16.gmra.mrb[0].mxu0 %v2371
  %v2504 = vpop.f32.mrb[0].mxu0
  %v2505 = vadd.f32 %v2367, %v2504
  %v2506 = vpop.f32.mrb[0].mxu0
  %v2507 = vpop.f32.mrb[0].mxu0
  %v2508 = vadd.f32 %v2367, %v2507
  %v2509 = vpop.f32.mrb[0].mxu0
  %2510 = vmatprep.mubr.bf16.mxu0 0
  %2511 = vmatmul.mubr.bf16.gmra.mrb[0].mxu0 %v2374
  %v2512 = vpop.f32.mrb[0].mxu0
  %v2513 = vadd.f32 %v2367, %v2512
  %v2514 = vpop.f32.mrb[0].mxu0
  %v2515 = vpop.f32.mrb[0].mxu0
  %v2516 = vadd.f32 %v2367, %v2515
  %v2517 = vpop.f32.mrb[0].mxu0
  %2518 = vmatprep.mubr.bf16.mxu0 0
  %2519 = vmatmul.mubr.bf16.gmra.mrb[0].mxu0 %v2377
  %v2520 = vpop.f32.mrb[0].mxu0
  %v2521 = vadd.f32 %v2367, %v2520
  %v2522 = vpop.f32.mrb[0].mxu0
  %v2523 = vpop.f32.mrb[0].mxu0
  %v2524 = vadd.f32 %v2367, %v2523
  %v2525 = vpop.f32.mrb[0].mxu0
  %2526 = vmatprep.mubr.bf16.mxu0 0
  %2527 = vmatmul.mubr.bf16.gmra.mrb[0].mxu0 %v2380
  %v2528 = vpop.f32.mrb[0].mxu0
  %v2529 = vadd.f32 %v2367, %v2528
  %v2530 = vpop.f32.mrb[0].mxu0
  %v2531 = vpop.f32.mrb[0].mxu0
  %v2532 = vadd.f32 %v2367, %v2531
  %v2533 = vpop.f32.mrb[0].mxu0
  %2534 = vmatprep.mubr.bf16.mxu0 0
  %2535 = vmatmul.mubr.bf16.gmra.mrb[0].mxu0 %v2383
  %v2536 = vpop.f32.mrb[0].mxu0
  %v2537 = vadd.f32 %v2367, %v2536
  %v2538 = vpop.f32.mrb[0].mxu0
  %v2539 = vpop.f32.mrb[0].mxu0
  %v2540 = vadd.f32 %v2367, %v2539
  %v2541 = vpop.f32.mrb[0].mxu0
  %2542 = vmatprep.mubr.bf16.mxu0 0
  %2543 = vmatmul.mubr.bf16.gmra.mrb[0].mxu0 %v2386
  %v2544 = vpop.f32.mrb[0].mxu0
  %v2545 = vadd.f32 %v2367, %v2544
  %v2546 = vpop.f32.mrb[0].mxu0
  %v2547 = vpop.f32.mrb[0].mxu0
  %v2548 = vadd.f32 %v2367, %v2547
  %v2549 = vpop.f32.mrb[0].mxu0
  %2550 = vmatprep.mubr.bf16.mxu0 0
  %2551 = vmatmul.mubr.bf16.gmra.mrb[0].mxu0 %v2389
  %v2552 = vpop.f32.mrb[0].mxu0
  %v2553 = vadd.f32 %v2367, %v2552
  %v2554 = vpop.f32.mrb[0].mxu0
  %v2555 = vpop.f32.mrb[0].mxu0
  %v2556 = vadd.f32 %v2367, %v2555
  %v2557 = vpop.f32.mrb[0].mxu0
  %2558 = vmatprep.mubr.bf16.mxu0 0
  %2559 = vmatmul.mubr.bf16.gmra.mrb[0].mxu0 %v2392
  %v2560 = vpop.f32.mrb[0].mxu0
  %v2561 = vadd.f32 %v2367, %v2560
  %v2562 = vpop.f32.mrb[0].mxu0
  %v2563 = vpop.f32.mrb[0].mxu0
  %v2564 = vadd.f32 %v2367, %v2563
  %v2565 = vpop.f32.mrb[0].mxu0
  %2566 = vmatprep.mubr.bf16.mxu0 0
  %2567 = vmatmul.mubr.bf16.gmra.mrb[0].mxu0 %v2395
  %v2568 = vpop.f32.mrb[0].mxu0
  %v2569 = vadd.f32 %v2367, %v2568
  %v2570 = vpop.f32.mrb[0].mxu0
  %v2571 = vpop.f32.mrb[0].mxu0
  %v2572 = vadd.f32 %v2367, %v2571
  %v2573 = vpop.f32.mrb[0].mxu0
  %2574 = vmatprep.mubr.bf16.mxu0 0
  %2575 = vmatmul.mubr.bf16.gmra.mrb[0].mxu0 %v2398
  %v2576 = vpop.f32.mrb[0].mxu0
  %v2577 = vadd.f32 %v2367, %v2576
  %v2578 = vpop.f32.mrb[0].mxu0
  %v2579 = vpop.f32.mrb[0].mxu0
  %v2580 = vadd.f32 %v2367, %v2579
  %v2581 = vpop.f32.mrb[0].mxu0
  %2582 = vmatprep.mubr.bf16.mxu0 0
  %2583 = vmatmul.mubr.bf16.gmra.mrb[0].mxu0 %v2401
  %v2584 = vpop.f32.mrb[0].mxu0
  %v2585 = vadd.f32 %v2367, %v2584
  %v2586 = vpop.f32.mrb[0].mxu0
  %v2587 = vpop.f32.mrb[0].mxu0
  %v2588 = vadd.f32 %v2367, %v2587
  %v2589 = vpop.f32.mrb[0].mxu0
  %2590 = vmatprep.mubr.bf16.mxu0 0
  %2591 = vmatmul.mubr.bf16.gmra.mrb[0].mxu0 %v2404
  %v2592 = vpop.f32.mrb[0].mxu0
  %v2593 = vadd.f32 %v2367, %v2592
  %v2594 = vpop.f32.mrb[0].mxu0
  %v2595 = vpop.f32.mrb[0].mxu0
  %v2596 = vadd.f32 %v2367, %v2595
  %v2597 = vpop.f32.mrb[0].mxu0
  %2598 = vmatprep.mubr.bf16.mxu0 0
  %2599 = vmatmul.mubr.bf16.gmra.mrb[0].mxu0 %v2407
  %v2600 = vpop.f32.mrb[0].mxu0
  %v2601 = vadd.f32 %v2367, %v2600
  %v2602 = vpop.f32.mrb[0].mxu0
  %v2603 = vpop.f32.mrb[0].mxu0
  %v2604 = vadd.f32 %v2367, %v2603
  %v2605 = vpop.f32.mrb[0].mxu0
  %2606 = vmatprep.mubr.bf16.mxu0 0
  %2607 = vmatmul.mubr.bf16.gmra.mrb[0].mxu0 %v2410
  %v2608 = vpop.f32.mrb[0].mxu0
  %v2609 = vadd.f32 %v2367, %v2608
  %v2610 = vpop.f32.mrb[0].mxu0
  %v2611 = vpop.f32.mrb[0].mxu0
  %v2612 = vadd.f32 %v2367, %v2611
  %v2613 = vpop.f32.mrb[0].mxu0
  %2614 = vmatprep.mubr.bf16.mxu0 0
  %2615 = vmatmul.mubr.bf16.gmra.mrb[0].mxu0 %v2413
  %v2616 = vpop.f32.mrb[0].mxu0
  %v2617 = vadd.f32 %v2367, %v2616
  %v2618 = vpop.f32.mrb[0].mxu0
  %v2619 = vpop.f32.mrb[0].mxu0
  %v2620 = vadd.f32 %v2367, %v2619
  %v2621 = vpop.f32.mrb[0].mxu0
  %2622 = vmatprep.mubr.bf16.mxu0 0
  %2623 = vmatmul.mubr.bf16.gmra.mrb[0].mxu0 %v2416
  %v2624 = vpop.f32.mrb[0].mxu0
  %v2625 = vadd.f32 %v2367, %v2624
  %v2626 = vpop.f32.mrb[0].mxu0
  %v2627 = vpop.f32.mrb[0].mxu0
  %v2628 = vadd.f32 %v2367, %v2627
  %v2629 = vpop.f32.mrb[0].mxu0
  %2630 = vmatprep.mubr.bf16.mxu0 0
  %2631 = vmatmul.mubr.bf16.gmra.mrb[0].mxu0 %v2419
  %v2632 = vpop.f32.mrb[0].mxu0
  %v2633 = vadd.f32 %v2367, %v2632
  %v2634 = vpop.f32.mrb[0].mxu0
  %v2635 = vpop.f32.mrb[0].mxu0
  %v2636 = vadd.f32 %v2367, %v2635
  %v2637 = vpop.f32.mrb[0].mxu0
  %2638 = vmatprep.mubr.bf16.mxu0 0
  %2639 = vmatmul.mubr.bf16.gmra.mrb[0].mxu0 %v2422
  %v2640 = vpop.f32.mrb[0].mxu0
  %v2641 = vadd.f32 %v2367, %v2640
  %v2642 = vpop.f32.mrb[0].mxu0
  %v2643 = vpop.f32.mrb[0].mxu0
  %v2644 = vadd.f32 %v2367, %v2643
  %v2645 = vpop.f32.mrb[0].mxu0
  %2646 = vmatprep.mubr.bf16.mxu0 0
  %2647 = vmatmul.mubr.bf16.gmra.mrb[0].mxu0 %v2425
  %v2648 = vpop.f32.mrb[0].mxu0
  %v2649 = vadd.f32 %v2367, %v2648
  %v2650 = vpop.f32.mrb[0].mxu0
  %v2651 = vpop.f32.mrb[0].mxu0
  %v2652 = vadd.f32 %v2367, %v2651
  %v2653 = vpop.f32.mrb[0].mxu0
  %2654 = vmatprep.mubr.bf16.mxu0 0
  %2655 = vmatmul.mubr.bf16.gmra.mrb[0].mxu0 %v2428
  %v2656 = vpop.f32.mrb[0].mxu0
  %v2657 = vadd.f32 %v2367, %v2656
  %v2658 = vpop.f32.mrb[0].mxu0
  %v2659 = vpop.f32.mrb[0].mxu0
  %v2660 = vadd.f32 %v2367, %v2659
  %v2661 = vpop.f32.mrb[0].mxu0
  %2662 = vmatprep.mubr.bf16.mxu0 0
  %2663 = vmatmul.mubr.bf16.gmra.mrb[0].mxu0 %v2431
  %v2664 = vpop.f32.mrb[0].mxu0
  %v2665 = vadd.f32 %v2367, %v2664
  %v2666 = vpop.f32.mrb[0].mxu0
  %v2667 = vpop.f32.mrb[0].mxu0
  %v2668 = vadd.f32 %v2367, %v2667
  %v2669 = vpop.f32.mrb[0].mxu0
  %2670 = vmatprep.mubr.bf16.mxu0 0
  %2671 = vmatmul.mubr.bf16.gmra.mrb[0].mxu0 %v2434
  %v2672 = vpop.f32.mrb[0].mxu0
  %v2673 = vadd.f32 %v2367, %v2672
  %v2674 = vpop.f32.mrb[0].mxu0
  %v2675 = vpop.f32.mrb[0].mxu0
  %v2676 = vadd.f32 %v2367, %v2675
  %v2677 = vpop.f32.mrb[0].mxu0
  %2678 = vmatprep.mubr.bf16.mxu0 0
  %2679 = vmatmul.mubr.bf16.gmra.mrb[0].mxu0 %v2437
  %v2680 = vpop.f32.mrb[0].mxu0
  %v2681 = vadd.f32 %v2367, %v2680
  %v2682 = vpop.f32.mrb[0].mxu0
  %v2683 = vpop.f32.mrb[0].mxu0
  %v2684 = vadd.f32 %v2367, %v2683
  %v2685 = vpop.f32.mrb[0].mxu0
  %2686 = vmatprep.mubr.bf16.mxu0 0
  %2687 = vmatmul.mubr.bf16.gmra.mrb[0].mxu0 %v2440
  %v2688 = vpop.f32.mrb[0].mxu0
  %v2689 = vadd.f32 %v2367, %v2688
  %v2690 = vpop.f32.mrb[0].mxu0
  %v2691 = vpop.f32.mrb[0].mxu0
  %v2692 = vadd.f32 %v2367, %v2691
  %v2693 = vpop.f32.mrb[0].mxu0
  %2694 = vmatprep.mubr.bf16.mxu0 0
  %2695 = vmatmul.mubr.bf16.gmra.mrb[0].mxu0 %v2443
  %v2696 = vpop.f32.mrb[0].mxu0
  %v2697 = vadd.f32 %v2367, %v2696
  %v2698 = vpop.f32.mrb[0].mxu0
  %v2699 = vpop.f32.mrb[0].mxu0
  %v2700 = vadd.f32 %v2367, %v2699
  %v2701 = vpop.f32.mrb[0].mxu0
  %2702 = vmatprep.mubr.bf16.mxu0 0
  %2703 = vmatmul.mubr.bf16.gmra.mrb[0].mxu0 %v2446
  %v2704 = vpop.f32.mrb[0].mxu0
  %v2705 = vadd.f32 %v2367, %v2704
  %v2706 = vpop.f32.mrb[0].mxu0
  %v2707 = vpop.f32.mrb[0].mxu0
  %v2708 = vadd.f32 %v2367, %v2707
  %v2709 = vpop.f32.mrb[0].mxu0
  %2710 = vmatprep.mubr.bf16.mxu0 0
  %2711 = vmatmul.mubr.bf16.gmra.mrb[0].mxu0 %v2449
  %v2712 = vpop.f32.mrb[0].mxu0
  %v2713 = vadd.f32 %v2367, %v2712
  %v2714 = vpop.f32.mrb[0].mxu0
  %v2715 = vpop.f32.mrb[0].mxu0
  %v2716 = vadd.f32 %v2367, %v2715
  %v2717 = vpop.f32.mrb[0].mxu0
  %2718 = vmatprep.mubr.bf16.mxu0 0
  %2719 = vmatmul.mubr.bf16.gmra.mrb[0].mxu0 %v2452
  %v2720 = vpop.f32.mrb[0].mxu0
  %v2721 = vadd.f32 %v2367, %v2720
  %v2722 = vpop.f32.mrb[0].mxu0
  %v2723 = vpop.f32.mrb[0].mxu0
  %v2724 = vadd.f32 %v2367, %v2723
  %v2725 = vpop.f32.mrb[0].mxu0
  %2726 = vmatprep.mubr.bf16.mxu0 0
  %2727 = vmatmul.mubr.bf16.gmra.mrb[0].mxu0 %v2455
  %v2728 = vpop.f32.mrb[0].mxu0
  %v2729 = vadd.f32 %v2367, %v2728
  %v2730 = vpop.f32.mrb[0].mxu0
  %v2731 = vpop.f32.mrb[0].mxu0
  %v2732 = vadd.f32 %v2367, %v2731
  %v2733 = vpop.f32.mrb[0].mxu0
  %2734 = vmatprep.mubr.bf16.mxu0 0
  %2735 = vmatmul.mubr.bf16.gmra.mrb[0].mxu0 %v2458
  %v2736 = vpop.f32.mrb[0].mxu0
  %v2737 = vadd.f32 %v2367, %v2736
  %v2738 = vpop.f32.mrb[0].mxu0
  %v2739 = vpop.f32.mrb[0].mxu0
  %v2740 = vadd.f32 %v2367, %v2739
  %v2741 = vpop.f32.mrb[0].mxu0
  %2742 = vmatprep.mubr.bf16.mxu0 0
  %2743 = vmatmul.mubr.bf16.gmra.mrb[0].mxu0 %v2461
  %v2744 = vpop.f32.mrb[0].mxu0
  %v2745 = vadd.f32 %v2367, %v2744
  %v2746 = vpop.f32.mrb[0].mxu0
  %v2747 = vpop.f32.mrb[0].mxu0
  %v2748 = vadd.f32 %v2367, %v2747
  %v2749 = vpop.f32.mrb[0].mxu0
  %2750 = vmatprep.mubr.bf16.mxu0 0
  %2751 = vmatmul.mubr.bf16.gmra.mrb[0].mxu0 %v2464
  %v2752 = vpop.f32.mrb[0].mxu0
  %v2753 = vadd.f32 %v2367, %v2752
  %v2754 = vpop.f32.mrb[0].mxu0
  %v2755 = vpop.f32.mrb[0].mxu0
  %v2756 = vadd.f32 %v2367, %v2755
  %v2757 = vpop.f32.mrb[0].mxu0
  %2758 = vdwg.mxu0
  %v2759 = vsub.f32 0.0, %v2505
  %v2760 = vsub.f32 0.0, %v2508
  %v2761 = vsub.f32 0.0, %v2513
  %v2762 = vsub.f32 0.0, %v2516
  %v2763 = vsub.f32 0.0, %v2521
  %v2764 = vsub.f32 0.0, %v2524
  %v2765 = vsub.f32 0.0, %v2529
  %v2766 = vsub.f32 0.0, %v2532
  %v2767 = vsub.f32 0.0, %v2537
  %v2768 = vsub.f32 0.0, %v2540
  %v2769 = vsub.f32 0.0, %v2545
  %v2770 = vsub.f32 0.0, %v2548
  %v2771 = vsub.f32 0.0, %v2553
  %v2772 = vsub.f32 0.0, %v2556
  %v2773 = vsub.f32 0.0, %v2561
  %v2774 = vsub.f32 0.0, %v2564
  %v2775 = vsub.f32 0.0, %v2569
  %v2776 = vsub.f32 0.0, %v2572
  %v2777 = vsub.f32 0.0, %v2577
  %v2778 = vsub.f32 0.0, %v2580
  %v2779 = vsub.f32 0.0, %v2585
  %v2780 = vsub.f32 0.0, %v2588
  %v2781 = vsub.f32 0.0, %v2593
  %v2782 = vsub.f32 0.0, %v2596
  %v2783 = vsub.f32 0.0, %v2601
  %v2784 = vsub.f32 0.0, %v2604
  %v2785 = vsub.f32 0.0, %v2609
  %v2786 = vsub.f32 0.0, %v2612
  %v2787 = vsub.f32 0.0, %v2617
  %v2788 = vsub.f32 0.0, %v2620
  %v2789 = vsub.f32 0.0, %v2625
  %v2790 = vsub.f32 0.0, %v2628
  %v2791 = vsub.f32 0.0, %v2633
  %v2792 = vsub.f32 0.0, %v2636
  %v2793 = vsub.f32 0.0, %v2641
  %v2794 = vsub.f32 0.0, %v2644
  %v2795 = vsub.f32 0.0, %v2649
  %v2796 = vsub.f32 0.0, %v2652
  %v2797 = vsub.f32 0.0, %v2657
  %v2798 = vsub.f32 0.0, %v2660
  %v2799 = vsub.f32 0.0, %v2665
  %v2800 = vsub.f32 0.0, %v2668
  %v2801 = vsub.f32 0.0, %v2673
  %v2802 = vsub.f32 0.0, %v2676
  %v2803 = vsub.f32 0.0, %v2681
  %v2804 = vsub.f32 0.0, %v2684
  %v2805 = vsub.f32 0.0, %v2689
  %v2806 = vsub.f32 0.0, %v2692
  %v2807 = vsub.f32 0.0, %v2697
  %v2808 = vsub.f32 0.0, %v2700
  %v2809 = vsub.f32 0.0, %v2705
  %v2810 = vsub.f32 0.0, %v2708
  %v2811 = vsub.f32 0.0, %v2713
  %v2812 = vsub.f32 0.0, %v2716
  %v2813 = vsub.f32 0.0, %v2721
  %v2814 = vsub.f32 0.0, %v2724
  %v2815 = vsub.f32 0.0, %v2729
  %v2816 = vsub.f32 0.0, %v2732
  %v2817 = vsub.f32 0.0, %v2737
  %v2818 = vsub.f32 0.0, %v2740
  %v2819 = vsub.f32 0.0, %v2745
  %v2820 = vsub.f32 0.0, %v2748
  %v2821 = vsub.f32 0.0, %v2753
  %v2822 = vsub.f32 0.0, %v2756
  %v2823 = vmul.f32 %v2759, 1.442695
  %v2824 = vpow.pop %v2823
  %v2825 = vmul.f32 %v2760, 1.442695
  %v2826 = vpow.pop %v2825
  %v2827 = vmul.f32 %v2761, 1.442695
  %v2828 = vpow.pop %v2827
  %v2829 = vmul.f32 %v2762, 1.442695
  %v2830 = vpow.pop %v2829
  %v2831 = vmul.f32 %v2763, 1.442695
  %v2832 = vpow.pop %v2831
  %v2833 = vmul.f32 %v2764, 1.442695
  %v2834 = vpow.pop %v2833
  %v2835 = vmul.f32 %v2765, 1.442695
  %v2836 = vpow.pop %v2835
  %v2837 = vmul.f32 %v2766, 1.442695
  %v2838 = vpow.pop %v2837
  %v2839 = vmul.f32 %v2767, 1.442695
  %v2840 = vpow.pop %v2839
  %v2841 = vmul.f32 %v2768, 1.442695
  %v2842 = vpow.pop %v2841
  %v2843 = vmul.f32 %v2769, 1.442695
  %v2844 = vpow.pop %v2843
  %v2845 = vmul.f32 %v2770, 1.442695
  %v2846 = vpow.pop %v2845
  %v2847 = vmul.f32 %v2771, 1.442695
  %v2848 = vpow.pop %v2847
  %v2849 = vmul.f32 %v2772, 1.442695
  %v2850 = vpow.pop %v2849
  %v2851 = vmul.f32 %v2773, 1.442695
  %v2852 = vpow.pop %v2851
  %v2853 = vmul.f32 %v2774, 1.442695
  %v2854 = vpow.pop %v2853
  %v2855 = vmul.f32 %v2775, 1.442695
  %v2856 = vpow.pop %v2855
  %v2857 = vmul.f32 %v2776, 1.442695
  %v2858 = vpow.pop %v2857
  %v2859 = vmul.f32 %v2777, 1.442695
  %v2860 = vpow.pop %v2859
  %v2861 = vmul.f32 %v2778, 1.442695
  %v2862 = vpow.pop %v2861
  %v2863 = vmul.f32 %v2779, 1.442695
  %v2864 = vpow.pop %v2863
  %v2865 = vmul.f32 %v2780, 1.442695
  %v2866 = vpow.pop %v2865
  %v2867 = vmul.f32 %v2781, 1.442695
  %v2868 = vpow.pop %v2867
  %v2869 = vmul.f32 %v2782, 1.442695
  %v2870 = vpow.pop %v2869
  %v2871 = vmul.f32 %v2783, 1.442695
  %v2872 = vpow.pop %v2871
  %v2873 = vmul.f32 %v2784, 1.442695
  %v2874 = vpow.pop %v2873
  %v2875 = vmul.f32 %v2785, 1.442695
  %v2876 = vpow.pop %v2875
  %v2877 = vmul.f32 %v2786, 1.442695
  %v2878 = vpow.pop %v2877
  %v2879 = vmul.f32 %v2787, 1.442695
  %v2880 = vpow.pop %v2879
  %v2881 = vmul.f32 %v2788, 1.442695
  %v2882 = vpow.pop %v2881
  %v2883 = vmul.f32 %v2789, 1.442695
  %v2884 = vpow.pop %v2883
  %v2885 = vmul.f32 %v2790, 1.442695
  %v2886 = vpow.pop %v2885
  %v2887 = vmul.f32 %v2791, 1.442695
  %v2888 = vpow.pop %v2887
  %v2889 = vmul.f32 %v2792, 1.442695
  %v2890 = vpow.pop %v2889
  %v2891 = vmul.f32 %v2793, 1.442695
  %v2892 = vpow.pop %v2891
  %v2893 = vmul.f32 %v2794, 1.442695
  %v2894 = vpow.pop %v2893
  %v2895 = vmul.f32 %v2795, 1.442695
  %v2896 = vpow.pop %v2895
  %v2897 = vmul.f32 %v2796, 1.442695
  %v2898 = vpow.pop %v2897
  %v2899 = vmul.f32 %v2797, 1.442695
  %v2900 = vpow.pop %v2899
  %v2901 = vmul.f32 %v2798, 1.442695
  %v2902 = vpow.pop %v2901
  %v2903 = vmul.f32 %v2799, 1.442695
  %v2904 = vpow.pop %v2903
  %v2905 = vmul.f32 %v2800, 1.442695
  %v2906 = vpow.pop %v2905
  %v2907 = vmul.f32 %v2801, 1.442695
  %v2908 = vpow.pop %v2907
  %v2909 = vmul.f32 %v2802, 1.442695
  %v2910 = vpow.pop %v2909
  %v2911 = vmul.f32 %v2803, 1.442695
  %v2912 = vpow.pop %v2911
  %v2913 = vmul.f32 %v2804, 1.442695
  %v2914 = vpow.pop %v2913
  %v2915 = vmul.f32 %v2805, 1.442695
  %v2916 = vpow.pop %v2915
  %v2917 = vmul.f32 %v2806, 1.442695
  %v2918 = vpow.pop %v2917
  %v2919 = vmul.f32 %v2807, 1.442695
  %v2920 = vpow.pop %v2919
  %v2921 = vmul.f32 %v2808, 1.442695
  %v2922 = vpow.pop %v2921
  %v2923 = vmul.f32 %v2809, 1.442695
  %v2924 = vpow.pop %v2923
  %v2925 = vmul.f32 %v2810, 1.442695
  %v2926 = vpow.pop %v2925
  %v2927 = vmul.f32 %v2811, 1.442695
  %v2928 = vpow.pop %v2927
  %v2929 = vmul.f32 %v2812, 1.442695
  %v2930 = vpow.pop %v2929
  %v2931 = vmul.f32 %v2813, 1.442695
  %v2932 = vpow.pop %v2931
  %v2933 = vmul.f32 %v2814, 1.442695
  %v2934 = vpow.pop %v2933
  %v2935 = vmul.f32 %v2815, 1.442695
  %v2936 = vpow.pop %v2935
  %v2937 = vmul.f32 %v2816, 1.442695
  %v2938 = vpow.pop %v2937
  %v2939 = vmul.f32 %v2817, 1.442695
  %v2940 = vpow.pop %v2939
  %v2941 = vmul.f32 %v2818, 1.442695
  %v2942 = vpow.pop %v2941
  %v2943 = vmul.f32 %v2819, 1.442695
  %v2944 = vpow.pop %v2943
  %v2945 = vmul.f32 %v2820, 1.442695
  %v2946 = vpow.pop %v2945
  %v2947 = vmul.f32 %v2821, 1.442695
  %v2948 = vpow.pop %v2947
  %v2949 = vmul.f32 %v2822, 1.442695
  %v2950 = vpow.pop %v2949
  %v2951 = vadd.f32 %v2824, 1.0
  %v2952 = vadd.f32 %v2826, 1.0
  %v2953 = vadd.f32 %v2828, 1.0
  %v2954 = vadd.f32 %v2830, 1.0
  %v2955 = vadd.f32 %v2832, 1.0
  %v2956 = vadd.f32 %v2834, 1.0
  %v2957 = vadd.f32 %v2836, 1.0
  %v2958 = vadd.f32 %v2838, 1.0
  %v2959 = vadd.f32 %v2840, 1.0
  %v2960 = vadd.f32 %v2842, 1.0
  %v2961 = vadd.f32 %v2844, 1.0
  %v2962 = vadd.f32 %v2846, 1.0
  %v2963 = vadd.f32 %v2848, 1.0
  %v2964 = vadd.f32 %v2850, 1.0
  %v2965 = vadd.f32 %v2852, 1.0
  %v2966 = vadd.f32 %v2854, 1.0
  %v2967 = vadd.f32 %v2856, 1.0
  %v2968 = vadd.f32 %v2858, 1.0
  %v2969 = vadd.f32 %v2860, 1.0
  %v2970 = vadd.f32 %v2862, 1.0
  %v2971 = vadd.f32 %v2864, 1.0
  %v2972 = vadd.f32 %v2866, 1.0
  %v2973 = vadd.f32 %v2868, 1.0
  %v2974 = vadd.f32 %v2870, 1.0
  %v2975 = vadd.f32 %v2872, 1.0
  %v2976 = vadd.f32 %v2874, 1.0
  %v2977 = vadd.f32 %v2876, 1.0
  %v2978 = vadd.f32 %v2878, 1.0
  %v2979 = vadd.f32 %v2880, 1.0
  %v2980 = vadd.f32 %v2882, 1.0
  %v2981 = vadd.f32 %v2884, 1.0
  %v2982 = vadd.f32 %v2886, 1.0
  %v2983 = vadd.f32 %v2888, 1.0
  %v2984 = vadd.f32 %v2890, 1.0
  %v2985 = vadd.f32 %v2892, 1.0
  %v2986 = vadd.f32 %v2894, 1.0
  %v2987 = vadd.f32 %v2896, 1.0
  %v2988 = vadd.f32 %v2898, 1.0
  %v2989 = vadd.f32 %v2900, 1.0
  %v2990 = vadd.f32 %v2902, 1.0
  %v2991 = vadd.f32 %v2904, 1.0
  %v2992 = vadd.f32 %v2906, 1.0
  %v2993 = vadd.f32 %v2908, 1.0
  %v2994 = vadd.f32 %v2910, 1.0
  %v2995 = vadd.f32 %v2912, 1.0
  %v2996 = vadd.f32 %v2914, 1.0
  %v2997 = vadd.f32 %v2916, 1.0
  %v2998 = vadd.f32 %v2918, 1.0
  %v2999 = vadd.f32 %v2920, 1.0
  %v3000 = vadd.f32 %v2922, 1.0
  %v3001 = vadd.f32 %v2924, 1.0
  %v3002 = vadd.f32 %v2926, 1.0
  %v3003 = vadd.f32 %v2928, 1.0
  %v3004 = vadd.f32 %v2930, 1.0
  %v3005 = vadd.f32 %v2932, 1.0
  %v3006 = vadd.f32 %v2934, 1.0
  %v3007 = vadd.f32 %v2936, 1.0
  %v3008 = vadd.f32 %v2938, 1.0
  %v3009 = vadd.f32 %v2940, 1.0
  %v3010 = vadd.f32 %v2942, 1.0
  %v3011 = vadd.f32 %v2944, 1.0
  %v3012 = vadd.f32 %v2946, 1.0
  %v3013 = vadd.f32 %v2948, 1.0
  %v3014 = vadd.f32 %v2950, 1.0
  %v3015 = vrcp.pop %v2951
  %v3016 = vrcp.pop %v2952
  %v3017 = vrcp.pop %v2953
  %v3018 = vrcp.pop %v2954
  %v3019 = vrcp.pop %v2955
  %v3020 = vrcp.pop %v2956
  %v3021 = vrcp.pop %v2957
  %v3022 = vrcp.pop %v2958
  %v3023 = vrcp.pop %v2959
  %v3024 = vrcp.pop %v2960
  %v3025 = vrcp.pop %v2961
  %v3026 = vrcp.pop %v2962
  %v3027 = vrcp.pop %v2963
  %v3028 = vrcp.pop %v2964
  %v3029 = vrcp.pop %v2965
  %v3030 = vrcp.pop %v2966
  %v3031 = vrcp.pop %v2967
  %v3032 = vrcp.pop %v2968
  %v3033 = vrcp.pop %v2969
  %v3034 = vrcp.pop %v2970
  %v3035 = vrcp.pop %v2971
  %v3036 = vrcp.pop %v2972
  %v3037 = vrcp.pop %v2973
  %v3038 = vrcp.pop %v2974
  %v3039 = vrcp.pop %v2975
  %v3040 = vrcp.pop %v2976
  %v3041 = vrcp.pop %v2977
  %v3042 = vrcp.pop %v2978
  %v3043 = vrcp.pop %v2979
  %v3044 = vrcp.pop %v2980
  %v3045 = vrcp.pop %v2981
  %v3046 = vrcp.pop %v2982
  %v3047 = vrcp.pop %v2983
  %v3048 = vrcp.pop %v2984
  %v3049 = vrcp.pop %v2985
  %v3050 = vrcp.pop %v2986
  %v3051 = vrcp.pop %v2987
  %v3052 = vrcp.pop %v2988
  %v3053 = vrcp.pop %v2989
  %v3054 = vrcp.pop %v2990
  %v3055 = vrcp.pop %v2991
  %v3056 = vrcp.pop %v2992
  %v3057 = vrcp.pop %v2993
  %v3058 = vrcp.pop %v2994
  %v3059 = vrcp.pop %v2995
  %v3060 = vrcp.pop %v2996
  %v3061 = vrcp.pop %v2997
  %v3062 = vrcp.pop %v2998
  %v3063 = vrcp.pop %v2999
  %v3064 = vrcp.pop %v3000
  %v3065 = vrcp.pop %v3001
  %v3066 = vrcp.pop %v3002
  %v3067 = vrcp.pop %v3003
  %v3068 = vrcp.pop %v3004
  %v3069 = vrcp.pop %v3005
  %v3070 = vrcp.pop %v3006
  %v3071 = vrcp.pop %v3007
  %v3072 = vrcp.pop %v3008
  %v3073 = vrcp.pop %v3009
  %v3074 = vrcp.pop %v3010
  %v3075 = vrcp.pop %v3011
  %v3076 = vrcp.pop %v3012
  %v3077 = vrcp.pop %v3013
  %v3078 = vrcp.pop %v3014
  %v3079 = vmul.f32 %v2505, %v3015
  %v3080 = vmul.f32 %v2508, %v3016
  %v3081 = vmul.f32 %v2513, %v3017
  %v3082 = vmul.f32 %v2516, %v3018
  %v3083 = vmul.f32 %v2521, %v3019
  %v3084 = vmul.f32 %v2524, %v3020
  %v3085 = vmul.f32 %v2529, %v3021
  %v3086 = vmul.f32 %v2532, %v3022
  %v3087 = vmul.f32 %v2537, %v3023
  %v3088 = vmul.f32 %v2540, %v3024
  %v3089 = vmul.f32 %v2545, %v3025
  %v3090 = vmul.f32 %v2548, %v3026
  %v3091 = vmul.f32 %v2553, %v3027
  %v3092 = vmul.f32 %v2556, %v3028
  %v3093 = vmul.f32 %v2561, %v3029
  %v3094 = vmul.f32 %v2564, %v3030
  %v3095 = vmul.f32 %v2569, %v3031
  %v3096 = vmul.f32 %v2572, %v3032
  %v3097 = vmul.f32 %v2577, %v3033
  %v3098 = vmul.f32 %v2580, %v3034
  %v3099 = vmul.f32 %v2585, %v3035
  %v3100 = vmul.f32 %v2588, %v3036
  %v3101 = vmul.f32 %v2593, %v3037
  %v3102 = vmul.f32 %v2596, %v3038
  %v3103 = vmul.f32 %v2601, %v3039
  %v3104 = vmul.f32 %v2604, %v3040
  %v3105 = vmul.f32 %v2609, %v3041
  %v3106 = vmul.f32 %v2612, %v3042
  %v3107 = vmul.f32 %v2617, %v3043
  %v3108 = vmul.f32 %v2620, %v3044
  %v3109 = vmul.f32 %v2625, %v3045
  %v3110 = vmul.f32 %v2628, %v3046
  %v3111 = vmul.f32 %v2633, %v3047
  %v3112 = vmul.f32 %v2636, %v3048
  %v3113 = vmul.f32 %v2641, %v3049
  %v3114 = vmul.f32 %v2644, %v3050
  %v3115 = vmul.f32 %v2649, %v3051
  %v3116 = vmul.f32 %v2652, %v3052
  %v3117 = vmul.f32 %v2657, %v3053
  %v3118 = vmul.f32 %v2660, %v3054
  %v3119 = vmul.f32 %v2665, %v3055
  %v3120 = vmul.f32 %v2668, %v3056
  %v3121 = vmul.f32 %v2673, %v3057
  %v3122 = vmul.f32 %v2676, %v3058
  %v3123 = vmul.f32 %v2681, %v3059
  %v3124 = vmul.f32 %v2684, %v3060
  %v3125 = vmul.f32 %v2689, %v3061
  %v3126 = vmul.f32 %v2692, %v3062
  %v3127 = vmul.f32 %v2697, %v3063
  %v3128 = vmul.f32 %v2700, %v3064
  %v3129 = vmul.f32 %v2705, %v3065
  %v3130 = vmul.f32 %v2708, %v3066
  %v3131 = vmul.f32 %v2713, %v3067
  %v3132 = vmul.f32 %v2716, %v3068
  %v3133 = vmul.f32 %v2721, %v3069
  %v3134 = vmul.f32 %v2724, %v3070
  %v3135 = vmul.f32 %v2729, %v3071
  %v3136 = vmul.f32 %v2732, %v3072
  %v3137 = vmul.f32 %v2737, %v3073
  %v3138 = vmul.f32 %v2740, %v3074
  %v3139 = vmul.f32 %v2745, %v3075
  %v3140 = vmul.f32 %v2748, %v3076
  %v3141 = vmul.f32 %v2753, %v3077
  %v3142 = vmul.f32 %v2756, %v3078
  %v3143 = vpack.c.bf16 %v3080, %v3079
  %v3144 = vpack.c.bf16 %v3082, %v3081
  %v3145 = vpack.c.bf16 %v3084, %v3083
  %v3146 = vpack.c.bf16 %v3086, %v3085
  %v3147 = vpack.c.bf16 %v3088, %v3087
  %v3148 = vpack.c.bf16 %v3090, %v3089
  %v3149 = vpack.c.bf16 %v3092, %v3091
  %v3150 = vpack.c.bf16 %v3094, %v3093
  %v3151 = vpack.c.bf16 %v3096, %v3095
  %v3152 = vpack.c.bf16 %v3098, %v3097
  %v3153 = vpack.c.bf16 %v3100, %v3099
  %v3154 = vpack.c.bf16 %v3102, %v3101
  %v3155 = vpack.c.bf16 %v3104, %v3103
  %v3156 = vpack.c.bf16 %v3106, %v3105
  %v3157 = vpack.c.bf16 %v3108, %v3107
  %v3158 = vpack.c.bf16 %v3110, %v3109
  %v3159 = vpack.c.bf16 %v3112, %v3111
  %v3160 = vpack.c.bf16 %v3114, %v3113
  %v3161 = vpack.c.bf16 %v3116, %v3115
  %v3162 = vpack.c.bf16 %v3118, %v3117
  %v3163 = vpack.c.bf16 %v3120, %v3119
  %v3164 = vpack.c.bf16 %v3122, %v3121
  %v3165 = vpack.c.bf16 %v3124, %v3123
  %v3166 = vpack.c.bf16 %v3126, %v3125
  %v3167 = vpack.c.bf16 %v3128, %v3127
  %v3168 = vpack.c.bf16 %v3130, %v3129
  %v3169 = vpack.c.bf16 %v3132, %v3131
  %v3170 = vpack.c.bf16 %v3134, %v3133
  %v3171 = vpack.c.bf16 %v3136, %v3135
  %v3172 = vpack.c.bf16 %v3138, %v3137
  %v3173 = vpack.c.bf16 %v3140, %v3139
  %v3174 = vpack.c.bf16 %v3142, %v3141
  %v3207 = vunpack.c.l.b16 %v3143
  %v3208 = vunpack.c.h.b16 %v3143
  %v3209 = vunpack.c.l.b16 %v3144
  %v3210 = vunpack.c.h.b16 %v3144
  %v3211 = vunpack.c.l.b16 %v3145
  %v3212 = vunpack.c.h.b16 %v3145
  %v3213 = vunpack.c.l.b16 %v3146
  %v3214 = vunpack.c.h.b16 %v3146
  %v3215 = vunpack.c.l.b16 %v3147
  %v3216 = vunpack.c.h.b16 %v3147
  %v3217 = vunpack.c.l.b16 %v3148
  %v3218 = vunpack.c.h.b16 %v3148
  %v3219 = vunpack.c.l.b16 %v3149
  %v3220 = vunpack.c.h.b16 %v3149
  %v3221 = vunpack.c.l.b16 %v3150
  %v3222 = vunpack.c.h.b16 %v3150
  %v3223 = vunpack.c.l.b16 %v3151
  %v3224 = vunpack.c.h.b16 %v3151
  %v3225 = vunpack.c.l.b16 %v3152
  %v3226 = vunpack.c.h.b16 %v3152
  %v3227 = vunpack.c.l.b16 %v3153
  %v3228 = vunpack.c.h.b16 %v3153
  %v3229 = vunpack.c.l.b16 %v3154
  %v3230 = vunpack.c.h.b16 %v3154
  %v3231 = vunpack.c.l.b16 %v3155
  %v3232 = vunpack.c.h.b16 %v3155
  %v3233 = vunpack.c.l.b16 %v3156
  %v3234 = vunpack.c.h.b16 %v3156
  %v3235 = vunpack.c.l.b16 %v3157
  %v3236 = vunpack.c.h.b16 %v3157
  %v3237 = vunpack.c.l.b16 %v3158
  %v3238 = vunpack.c.h.b16 %v3158
  %v3239 = vunpack.c.l.b16 %v3159
  %v3240 = vunpack.c.h.b16 %v3159
  %v3241 = vunpack.c.l.b16 %v3160
  %v3242 = vunpack.c.h.b16 %v3160
  %v3243 = vunpack.c.l.b16 %v3161
  %v3244 = vunpack.c.h.b16 %v3161
  %v3245 = vunpack.c.l.b16 %v3162
  %v3246 = vunpack.c.h.b16 %v3162
  %v3247 = vunpack.c.l.b16 %v3163
  %v3248 = vunpack.c.h.b16 %v3163
  %v3249 = vunpack.c.l.b16 %v3164
  %v3250 = vunpack.c.h.b16 %v3164
  %v3251 = vunpack.c.l.b16 %v3165
  %v3252 = vunpack.c.h.b16 %v3165
  %v3253 = vunpack.c.l.b16 %v3166
  %v3254 = vunpack.c.h.b16 %v3166
  %v3255 = vunpack.c.l.b16 %v3167
  %v3256 = vunpack.c.h.b16 %v3167
  %v3257 = vunpack.c.l.b16 %v3168
  %v3258 = vunpack.c.h.b16 %v3168
  %v3259 = vunpack.c.l.b16 %v3169
  %v3260 = vunpack.c.h.b16 %v3169
  %v3261 = vunpack.c.l.b16 %v3170
  %v3262 = vunpack.c.h.b16 %v3170
  %v3263 = vunpack.c.l.b16 %v3171
  %v3264 = vunpack.c.h.b16 %v3171
  %v3265 = vunpack.c.l.b16 %v3172
  %v3266 = vunpack.c.h.b16 %v3172
  %v3267 = vunpack.c.l.b16 %v3173
  %v3268 = vunpack.c.h.b16 %v3173
  %v3269 = vunpack.c.l.b16 %v3174
  %v3270 = vunpack.c.h.b16 %v3174
  %v3271 = vpack.c.b16 %v3207, %v3207
  %v3272 = vpack.c.b16 %v3208, %v3208
  %v3273 = vpack.c.b16 %v3209, %v3209
  %v3274 = vpack.c.b16 %v3210, %v3210
  %v3275 = vpack.c.b16 %v3211, %v3211
  %v3276 = vpack.c.b16 %v3212, %v3212
  %v3277 = vpack.c.b16 %v3213, %v3213
  %v3278 = vpack.c.b16 %v3214, %v3214
  %v3279 = vpack.c.b16 %v3215, %v3215
  %v3280 = vpack.c.b16 %v3216, %v3216
  %v3281 = vpack.c.b16 %v3217, %v3217
  %v3282 = vpack.c.b16 %v3218, %v3218
  %v3283 = vpack.c.b16 %v3219, %v3219
  %v3284 = vpack.c.b16 %v3220, %v3220
  %v3285 = vpack.c.b16 %v3221, %v3221
  %v3286 = vpack.c.b16 %v3222, %v3222
  %v3287 = vpack.c.b16 %v3223, %v3223
  %v3288 = vpack.c.b16 %v3224, %v3224
  %v3289 = vpack.c.b16 %v3225, %v3225
  %v3290 = vpack.c.b16 %v3226, %v3226
  %v3291 = vpack.c.b16 %v3227, %v3227
  %v3292 = vpack.c.b16 %v3228, %v3228
  %v3293 = vpack.c.b16 %v3229, %v3229
  %v3294 = vpack.c.b16 %v3230, %v3230
  %v3295 = vpack.c.b16 %v3231, %v3231
  %v3296 = vpack.c.b16 %v3232, %v3232
  %v3297 = vpack.c.b16 %v3233, %v3233
  %v3298 = vpack.c.b16 %v3234, %v3234
  %v3299 = vpack.c.b16 %v3235, %v3235
  %v3300 = vpack.c.b16 %v3236, %v3236
  %v3301 = vpack.c.b16 %v3237, %v3237
  %v3302 = vpack.c.b16 %v3238, %v3238
  %v3303 = vpack.c.b16 %v3239, %v3239
  %v3304 = vpack.c.b16 %v3240, %v3240
  %v3305 = vpack.c.b16 %v3241, %v3241
  %v3306 = vpack.c.b16 %v3242, %v3242
  %v3307 = vpack.c.b16 %v3243, %v3243
  %v3308 = vpack.c.b16 %v3244, %v3244
  %v3309 = vpack.c.b16 %v3245, %v3245
  %v3310 = vpack.c.b16 %v3246, %v3246
  %v3311 = vpack.c.b16 %v3247, %v3247
  %v3312 = vpack.c.b16 %v3248, %v3248
  %v3313 = vpack.c.b16 %v3249, %v3249
  %v3314 = vpack.c.b16 %v3250, %v3250
  %v3315 = vpack.c.b16 %v3251, %v3251
  %v3316 = vpack.c.b16 %v3252, %v3252
  %v3317 = vpack.c.b16 %v3253, %v3253
  %v3318 = vpack.c.b16 %v3254, %v3254
  %v3319 = vpack.c.b16 %v3255, %v3255
  %v3320 = vpack.c.b16 %v3256, %v3256
  %v3321 = vpack.c.b16 %v3257, %v3257
  %v3322 = vpack.c.b16 %v3258, %v3258
  %v3323 = vpack.c.b16 %v3259, %v3259
  %v3324 = vpack.c.b16 %v3260, %v3260
  %v3325 = vpack.c.b16 %v3261, %v3261
  %v3326 = vpack.c.b16 %v3262, %v3262
  %v3327 = vpack.c.b16 %v3263, %v3263
  %v3328 = vpack.c.b16 %v3264, %v3264
  %v3329 = vpack.c.b16 %v3265, %v3265
  %v3330 = vpack.c.b16 %v3266, %v3266
  %v3331 = vpack.c.b16 %v3267, %v3267
  %v3332 = vpack.c.b16 %v3268, %v3268
  %v3333 = vpack.c.b16 %v3269, %v3269
  %v3334 = vpack.c.b16 %v3270, %v3270
  %3399 = vst.msk [vmem:[%s9] sm:$0xf] %vm1976, %v3271
  %3400 = vst.msk [vmem:[%s9 + $0x4] sm:$0xf] %vm1976, %v3272
  %3401 = vst.msk [vmem:[%s9 + $0x8] sm:$0xf] %vm1976, %v3273
  %3402 = vst.msk [vmem:[%s9 + $0xc] sm:$0xf] %vm1976, %v3274
  %3403 = vst.msk [vmem:[%s9 + $0x10] sm:$0xf] %vm1976, %v3275
  %3404 = vst.msk [vmem:[%s9 + $0x14] sm:$0xf] %vm1976, %v3276
  %3405 = vst.msk [vmem:[%s9 + $0x18] sm:$0xf] %vm1976, %v3277
  %3406 = vst.msk [vmem:[%s9 + $0x1c] sm:$0xf] %vm1976, %v3278
  %3407 = vst.msk [vmem:[%s9 + $0x20] sm:$0xf] %vm1976, %v3279
  %3408 = vst.msk [vmem:[%s9 + $0x24] sm:$0xf] %vm1976, %v3280
  %3409 = vst.msk [vmem:[%s9 + $0x28] sm:$0xf] %vm1976, %v3281
  %3410 = vst.msk [vmem:[%s9 + $0x2c] sm:$0xf] %vm1976, %v3282
  %3411 = vst.msk [vmem:[%s9 + $0x30] sm:$0xf] %vm1976, %v3283
  %3412 = vst.msk [vmem:[%s9 + $0x34] sm:$0xf] %vm1976, %v3284
  %3413 = vst.msk [vmem:[%s9 + $0x38] sm:$0xf] %vm1976, %v3285
  %3414 = vst.msk [vmem:[%s9 + $0x3c] sm:$0xf] %vm1976, %v3286
  %3415 = vst.msk [vmem:[%s9 + $0x40] sm:$0xf] %vm1976, %v3287
  %3416 = vst.msk [vmem:[%s9 + $0x44] sm:$0xf] %vm1976, %v3288
  %3417 = vst.msk [vmem:[%s9 + $0x48] sm:$0xf] %vm1976, %v3289
  %3418 = vst.msk [vmem:[%s9 + $0x4c] sm:$0xf] %vm1976, %v3290
  %3419 = vst.msk [vmem:[%s9 + $0x50] sm:$0xf] %vm1976, %v3291
  %3420 = vst.msk [vmem:[%s9 + $0x54] sm:$0xf] %vm1976, %v3292
  %3421 = vst.msk [vmem:[%s9 + $0x58] sm:$0xf] %vm1976, %v3293
  %3422 = vst.msk [vmem:[%s9 + $0x5c] sm:$0xf] %vm1976, %v3294
  %3423 = vst.msk [vmem:[%s9 + $0x60] sm:$0xf] %vm1976, %v3295
  %3424 = vst.msk [vmem:[%s9 + $0x64] sm:$0xf] %vm1976, %v3296
  %3425 = vst.msk [vmem:[%s9 + $0x68] sm:$0xf] %vm1976, %v3297
  %3426 = vst.msk [vmem:[%s9 + $0x6c] sm:$0xf] %vm1976, %v3298
  %3427 = vst.msk [vmem:[%s9 + $0x70] sm:$0xf] %vm1976, %v3299
  %3428 = vst.msk [vmem:[%s9 + $0x74] sm:$0xf] %vm1976, %v3300
  %3429 = vst.msk [vmem:[%s9 + $0x78] sm:$0xf] %vm1976, %v3301
  %3430 = vst.msk [vmem:[%s9 + $0x7c] sm:$0xf] %vm1976, %v3302
  %3431 = vst.msk [vmem:[%s9 + $0x80] sm:$0xf] %vm1976, %v3303
  %3432 = vst.msk [vmem:[%s9 + $0x84] sm:$0xf] %vm1976, %v3304
  %3433 = vst.msk [vmem:[%s9 + $0x88] sm:$0xf] %vm1976, %v3305
  %3434 = vst.msk [vmem:[%s9 + $0x8c] sm:$0xf] %vm1976, %v3306
  %3435 = vst.msk [vmem:[%s9 + $0x90] sm:$0xf] %vm1976, %v3307
  %3436 = vst.msk [vmem:[%s9 + $0x94] sm:$0xf] %vm1976, %v3308
  %3437 = vst.msk [vmem:[%s9 + $0x98] sm:$0xf] %vm1976, %v3309
  %3438 = vst.msk [vmem:[%s9 + $0x9c] sm:$0xf] %vm1976, %v3310
  %3439 = vst.msk [vmem:[%s9 + $0xa0] sm:$0xf] %vm1976, %v3311
  %3440 = vst.msk [vmem:[%s9 + $0xa4] sm:$0xf] %vm1976, %v3312
  %3441 = vst.msk [vmem:[%s9 + $0xa8] sm:$0xf] %vm1976, %v3313
  %3442 = vst.msk [vmem:[%s9 + $0xac] sm:$0xf] %vm1976, %v3314
  %3443 = vst.msk [vmem:[%s9 + $0xb0] sm:$0xf] %vm1976, %v3315
  %3444 = vst.msk [vmem:[%s9 + $0xb4] sm:$0xf] %vm1976, %v3316
  %3445 = vst.msk [vmem:[%s9 + $0xb8] sm:$0xf] %vm1976, %v3317
  %3446 = vst.msk [vmem:[%s9 + $0xbc] sm:$0xf] %vm1976, %v3318
  %3447 = vst.msk [vmem:[%s9 + $0xc0] sm:$0xf] %vm1976, %v3319
  %3448 = vst.msk [vmem:[%s9 + $0xc4] sm:$0xf] %vm1976, %v3320
  %3449 = vst.msk [vmem:[%s9 + $0xc8] sm:$0xf] %vm1976, %v3321
  %3450 = vst.msk [vmem:[%s9 + $0xcc] sm:$0xf] %vm1976, %v3322
  %3451 = vst.msk [vmem:[%s9 + $0xd0] sm:$0xf] %vm1976, %v3323
  %3452 = vst.msk [vmem:[%s9 + $0xd4] sm:$0xf] %vm1976, %v3324
  %3453 = vst.msk [vmem:[%s9 + $0xd8] sm:$0xf] %vm1976, %v3325
  %3454 = vst.msk [vmem:[%s9 + $0xdc] sm:$0xf] %vm1976, %v3326
  %3455 = vst.msk [vmem:[%s9 + $0xe0] sm:$0xf] %vm1976, %v3327
  %3456 = vst.msk [vmem:[%s9 + $0xe4] sm:$0xf] %vm1976, %v3328
  %3457 = vst.msk [vmem:[%s9 + $0xe8] sm:$0xf] %vm1976, %v3329
  %3458 = vst.msk [vmem:[%s9 + $0xec] sm:$0xf] %vm1976, %v3330
  %3459 = vst.msk [vmem:[%s9 + $0xf0] sm:$0xf] %vm1976, %v3331
  %3460 = vst.msk [vmem:[%s9 + $0xf4] sm:$0xf] %vm1976, %v3332
  %3461 = vst.msk [vmem:[%s9 + $0xf8] sm:$0xf] %vm1976, %v3333
  %3462 = vst.msk [vmem:[%s9 + $0xfc] sm:$0xf] %vm1976, %v3334
  // Predicated region
  $region30: #{tpu_custom_call.1} parent=0 // pred_check
    _
  $region31: #{tpu_custom_call.1} parent=0 // pred_check_branch
    %3464 = sbr.rel (0) target = $region33
  $region32: #{tpu_custom_call.1} parent=0 // pred_region
    _
  $region33: #{tpu_custom_call.1} parent=0 // pred_fallthru
    _
  // Predicated region
  $region34: #{tpu_custom_call.1} parent=0 // pred_check
    _
  $region35: #{tpu_custom_call.1} parent=0 // pred_check_branch
    %3466 = sbr.rel (0) target = $region37
  $region36: #{tpu_custom_call.1} parent=0 // pred_region
    _
  $region37: #{tpu_custom_call.1} parent=0 // pred_fallthru
    _
  // Predicated region
  $region38: #{tpu_custom_call.1} parent=0 // pred_check
    _
  $region39: #{tpu_custom_call.1} parent=0 // pred_check_branch
    %3468 = sbr.rel (0) target = $region41
  $region40: #{tpu_custom_call.1} parent=0 // pred_region
    _
  $region41: #{tpu_custom_call.1} parent=0 // pred_fallthru
    _
  // Predicated region
  $region42: #{tpu_custom_call.1} parent=0 // pred_check
    _
  $region43: #{tpu_custom_call.1} parent=0 // pred_check_branch
    %3470 = sbr.rel (0) target = $region45
  $region44: #{tpu_custom_call.1} parent=0 // pred_region
    _
  $region45: #{tpu_custom_call.1} parent=0 // pred_fallthru
    _
  // Predicated region
  $region46: #{tpu_custom_call.1} parent=0 // pred_check
    _
  $region47: #{tpu_custom_call.1} parent=0 // pred_check_branch
    %3472 = sbr.rel (0) target = $region49
  $region48: #{tpu_custom_call.1} parent=0 // pred_region
    _
  $region49: #{tpu_custom_call.1} parent=0 // pred_fallthru
    _
  // Predicated region
  $region50: #{tpu_custom_call.1} parent=0 // pred_check
    _
  $region51: #{tpu_custom_call.1} parent=0 // pred_check_branch
    %3474 = sbr.rel (0) target = $region53
  $region52: #{tpu_custom_call.1} parent=0 // pred_region
    _
  $region53: #{tpu_custom_call.1} parent=0 // pred_fallthru
    _

</llo_original>
